<compile_context>
chip_gen: v6e
topology: v6e:2x2x1
jax: 0.10.0
libtpu: 0.0.40
codegen_flags: <defaults>
</compile_context>

<pallas_src>
import math
import numpy as np
import jax
import jax.numpy as jnp
from jax.experimental import pallas as pl
from jax.experimental.pallas import tpu as pltpu

# ---- synthetic config `p` (module __init__ / forward tell us the shapes) ----
B, C_IN, H, W = 2, 3, 16, 16      # batch of images (B x 3 x H x W), saliency (B x H x W)
HW = H * W
NPIX = B * HW                     # 512 pixels total
C_PAD = 8                         # channels padded to 8: [rgb, 1.0 (bias), 0, 0, 0, 0]
BIAS_CH = C_IN                    # constant-1.0 channel used to fold the biases
DIM = 32                          # p['model_kwargs']['ndim']  (embedding dim)
DIM_LAT = 256                     # self.dim_lat hard-coded in forward()
SEG = 128                         # lane-aligned segment holding the emb head (32 real + 96 zero)
NOUT = DIM_LAT + SEG              # fused head width: [lat(256) | emb(32)+pad] = 384
ROW_PAD = 8                       # sublane-aligned row offset of the emb block in protoD
K_QUEUE = 128                     # p['moco_kwargs']['K']
M_MOM = 0.999                     # p['moco_kwargs']['m']

V_LAT, V_EMB = 100.0, 1.0


def cal_gamma(v):
    # CalGamma from the reference (mpmath.gamma -> math.gamma, same float value here)
    a = math.gamma((v + 1.0) / 2.0)
    b = math.sqrt(v * math.pi) * math.gamma(v / 2.0)
    return a / b


GAMMA_LAT = cal_gamma(V_LAT)
GAMMA_EMB = cal_gamma(V_EMB)


# --------------------------------------------------------------------------
# The single fused kernel
# --------------------------------------------------------------------------
def _fused_forward_kernel(x2_ref, w2_ref, xqt_ref, wbg_ref, salq_ref,
                          salsel2_ref, pscale_ref,
                          qout_ref, pout_ref, proto_ref, loss_ref):
    # ---- both encoders: ONE block-diagonal MXU matmul, biases folded into weights ----
    act2 = jnp.dot(x2_ref[...], w2_ref[...],
                   preferred_element_type=jnp.float32)            # (2*NPIX, 384)

    # per-segment L2 normalisation: rsqrt (EUP) + multiply, no divides
    sq = act2 * act2
    inv_lat = jax.lax.rsqrt(jnp.maximum(
        jnp.sum(sq[:, :DIM_LAT], axis=-1, keepdims=True), 1e-24))  # (2*NPIX, 1)
    inv_emb = jax.lax.rsqrt(jnp.maximum(
        jnp.sum(sq[:, DIM_LAT:], axis=-1, keepdims=True), 1e-24))
    slab2 = jnp.concatenate([act2[:, :DIM_LAT] * inv_lat,
                             act2[:, DIM_LAT:] * inv_emb], axis=1)  # (2*NPIX, 384)
    slab_q = slab2[:NPIX]                                           # normalized [q_lat | q_emb]
    slab_k = slab2[NPIX:]                                           # normalized [k_lat | k_emb]

    # ---- balanced BCE saliency loss, lane-dense (bg logits as a (1, NPIX) row) ----
    # bg = w_bg . x_q  computed channel-major: broadcast-mul + sublane reduce (no MXU).
    bg = jnp.sum(xqt_ref[...] * wbg_ref[...], axis=0, keepdims=True)   # (1, NPIX)
    labels = (salq_ref[...] >= 0.5).astype(jnp.float32)                # (1, NPIX)
    num_pos = jnp.sum(labels)
    num_total = float(NPIX)                                            # labels are 0/1 everywhere
    w_bce = (num_total - num_pos) / num_total
    ogz = (bg >= 0.0).astype(jnp.float32)
    loss_val = bg * (labels - ogz) - jnp.log(1.0 + jnp.exp(bg - 2.0 * bg * ogz))
    loss_pos = jnp.sum(-labels * loss_val)
    loss_neg = jnp.sum(-(1.0 - labels) * loss_val)
    loss_ref[0, 0] = (w_bce * loss_pos + (1.0 - w_bce) * loss_neg) / num_total

    # ---- foreground prototypes: ONE MXU contraction gives lat+emb prototypes ----
    # salsel2 rows [0,B) and [ROW_PAD, ROW_PAD+B) both hold the block-diag key saliency.
    proto_raw = jnp.dot(salsel2_ref[...], slab_k,
                        preferred_element_type=jnp.float32)            # (2*ROW_PAD, 384)
    rowi = jax.lax.broadcasted_iota(jnp.int32, (2 * ROW_PAD, NOUT), 0)
    coli = jax.lax.broadcasted_iota(jnp.int32, (2 * ROW_PAD, NOUT), 1)
    lat_row = (rowi < ROW_PAD).astype(jnp.float32)
    lat_col = (coli < DIM_LAT).astype(jnp.float32)
    seg_mask = lat_row * lat_col + (1.0 - lat_row) * (1.0 - lat_col)
    proto_blk = proto_raw * seg_mask            # top block: lat cols only; bottom: emb cols only
    pinv = jax.lax.rsqrt(jnp.maximum(
        jnp.sum(proto_blk * proto_blk, axis=-1, keepdims=True), 1e-24))
    protoD = proto_blk * pinv                   # block-diag normalized prototypes
    proto_ref[...] = protoD[ROW_PAD:ROW_PAD + B, DIM_LAT:]   # (B, SEG) emb prototypes (lane-padded)

    # ---- pdist2 on unit rows for BOTH branches with one block-diag dot ----
    # d = clamp(2 - 2 x.y, 1e-12)   (== ||x||^2+||y||^2-2xy up to fp rounding of ||.||=1)
    dall = jax.lax.dot_general(protoD, slab_q, (((1,), (1,)), ((), ())),
                               preferred_element_type=jnp.float32)     # (2*ROW_PAD, NPIX)
    dall = jnp.maximum(2.0 - 2.0 * dall, 1e-12)
    d1 = dall[:B] * pscale_ref[...]             # lat distances; d_1[posi==1] /= 10 pre-baked as *0.1
    d2 = dall[ROW_PAD:ROW_PAD + B]              # emb distances

    # UMAP similarities (the reference uses the literal 2*3.14; keep it)
    pout_ref[...] = (GAMMA_LAT * 6.28 * GAMMA_LAT) * jnp.exp(
        -(V_LAT + 1.0) * jnp.log(1.0 + d1 * (1.0 / V_LAT)))            # P, transposed (B, NPIX)
    r = pl.reciprocal(1.0 + d2, approx=True)    # exponent is exactly -2 for v_emb = 1
    qout_ref[...] = (GAMMA_EMB * 6.28 * GAMMA_EMB) * (r * r)           # Q, transposed (B, NPIX)


def _vmem_spec():
    return pl.BlockSpec(memory_space=pltpu.MemorySpace.VMEM)


def fused_forward_call(x2, w2, xqt, wbg, salq_row, salsel2, pscale):
    # Single grid step: whole problem (<2 MiB of inputs, ~5 MiB live) fits in VMEM on
    # v5e/v6e/v7x; gridding would only add per-step overhead to a latency-bound kernel.
    return pl.pallas_call(
        _fused_forward_kernel,
        out_shape=(jax.ShapeDtypeStruct((B, NPIX), jnp.float32),   # Q (transposed)
                   jax.ShapeDtypeStruct((B, NPIX), jnp.float32),   # P (transposed)
                   jax.ShapeDtypeStruct((B, SEG), jnp.float32),    # emb prototypes (lane-padded)
                   jax.ShapeDtypeStruct((1, 1), jnp.float32)),     # sal_loss
        in_specs=[_vmem_spec()] * 7,
        out_specs=(_vmem_spec(), _vmem_spec(), _vmem_spec(),
                   pl.BlockSpec(memory_space=pltpu.MemorySpace.SMEM)),
        compiler_params=pltpu.CompilerParams(vmem_limit_bytes=32 * 1024 * 1024),
    )(x2, w2, xqt, wbg, salq_row, salsel2, pscale)


# --------------------------------------------------------------------------
# Glue (plain JAX, all fused under one jax.jit)
# --------------------------------------------------------------------------
def _to_pix(x):
    # NCHW -> (B,H,W,C) -> (B*H*W, C_PAD); channel BIAS_CH is the constant 1.0 bias carrier.
    x = jnp.transpose(x, (0, 2, 3, 1)).reshape(NPIX, C_IN).astype(jnp.float32)
    return jnp.concatenate(
        [x, jnp.ones((NPIX, 1), jnp.float32),
         jnp.zeros((NPIX, C_PAD - C_IN - 1), jnp.float32)], axis=1)


def _fuse_head_params(params):
    """Pack lat/emb 1x1-conv heads into one (C_PAD, NOUT) weight with the biases folded
    into the BIAS_CH row; bg head becomes a (C_PAD, 1) column (bias folded too)."""
    w_lat, b_lat, w_emb, b_emb, w_bg, b_bg = params
    w = jnp.zeros((C_PAD, NOUT), jnp.float32)
    w = w.at[:C_IN, :DIM_LAT].set(w_lat)
    w = w.at[BIAS_CH, :DIM_LAT].set(b_lat)
    w = w.at[:C_IN, DIM_LAT:DIM_LAT + DIM].set(w_emb)
    w = w.at[BIAS_CH, DIM_LAT:DIM_LAT + DIM].set(b_emb)
    wbg = jnp.zeros((C_PAD, 1), jnp.float32)
    wbg = wbg.at[:C_IN, 0].set(w_bg)
    wbg = wbg.at[BIAS_CH, 0].set(b_bg)
    return w, wbg


def _block_diag_saliency(sal):
    # (B, H, W) -> (B, NPIX): row b holds sal of image b at that image's pixel slots.
    s = sal.reshape(1, B, HW).astype(jnp.float32)
    eye = jnp.eye(B, dtype=jnp.float32)[:, :, None]
    return (eye * s).reshape(B, NPIX)


@jax.jit
def contrastive_forward(im_q, im_k, sal_q, sal_k, params_q, params_k,
                        queue, queue_ptr, mask_idx_pad):
    # momentum update of the key encoder (updated state is RETURNED so it can persist)
    params_k = jax.tree_util.tree_map(
        lambda pk, pq: pk * M_MOM + pq * (1.0 - M_MOM), params_k, params_q)

    xq, xk = _to_pix(im_q), _to_pix(im_k)
    # block-diagonal packing: one MXU matmul drives both encoders
    zeros = jnp.zeros((NPIX, C_PAD), jnp.float32)
    x2 = jnp.concatenate([jnp.concatenate([xq, zeros], axis=1),
                          jnp.concatenate([zeros, xk], axis=1)], axis=0)   # (2*NPIX, 16)
    wq, wbg_q = _fuse_head_params(params_q)
    wk, _ = _fuse_head_params(params_k)
    w2 = jnp.concatenate([wq, wk], axis=0)                                 # (16, NOUT)

    # concat_all_gather / batch shuffle / unshuffle are identities for world_size == 1
    # with a BatchNorm-free per-pixel encoder.
    salq_row = sal_q.reshape(1, NPIX).astype(jnp.float32)
    sal_sel = _block_diag_saliency(sal_k)
    salsel2 = jnp.zeros((2 * ROW_PAD, NPIX), jnp.float32)
    salsel2 = salsel2.at[:B].set(sal_sel).at[ROW_PAD:ROW_PAD + B].set(sal_sel)
    pscale = 1.0 - 0.9 * _block_diag_saliency(sal_q)   # 0.1 on fg pixels of image b, else 1.0

    Qt, Pt, proto_pad, loss = fused_forward_call(
        x2, w2, xq.T, wbg_q, salq_row, salsel2, pscale)

    sal_loss = loss[0, 0]
    prototypes = proto_pad[:, :DIM]                               # (B, DIM), L2-normalized

    # torch.index_select of foreground query pixels: FIXED-shape gather with padded
    # indices (caller slices the first n_fg rows); transpose back to the reference (N, B).
    Qm = jnp.take(Qt, mask_idx_pad, axis=1).T                     # (NPIX, B)
    Pm = jnp.take(Pt, mask_idx_pad, axis=1).T                     # (NPIX, B)

    # NOTE: l_batch = q @ prototypes.T is dead code in the reference forward -> omitted.

    # --- _dequeue_and_enqueue (single device: keys == prototypes).
    #     Reference asserts K % batch_size == 0, so ptr never wraps mid-update.
    ptr = queue_ptr[0]
    new_queue = jax.lax.dynamic_update_slice(queue, prototypes.T, (0, ptr))
    new_ptr = queue_ptr.at[0].set((ptr + B) % K_QUEUE)
    return Qm, Pm, sal_loss, new_queue, new_ptr, params_k


# --------------------------------------------------------------------------
if __name__ == "__main__":
    key = jax.random.PRNGKey(0)
    ks = jax.random.split(key, 12)

    im_q = jax.random.normal(ks[0], (B, C_IN, H, W), jnp.float32)
    im_k = jax.random.normal(ks[1], (B, C_IN, H, W), jnp.float32)
    sal_q = (jax.random.uniform(ks[2], (B, H, W)) > 0.5).astype(jnp.int32)
    sal_k = (jax.random.uniform(ks[3], (B, H, W)) > 0.5).astype(jnp.int32)
    sal_q = sal_q.at[:, 0, 0].set(1)   # ensure >=1 foreground pixel per image
    sal_k = sal_k.at[:, 0, 0].set(1)

    # per-pixel 1x1-conv heads stand in for the backbone of get_model(p)
    # TODO(synk): the real p['backbone'] (ResNet + decoder) is not reproduced here.
    params_q = (0.1 * jax.random.normal(ks[4], (C_IN, DIM_LAT), jnp.float32),
                0.01 * jax.random.normal(ks[5], (DIM_LAT,), jnp.float32),
                0.1 * jax.random.normal(ks[6], (C_IN, DIM), jnp.float32),
                0.01 * jax.random.normal(ks[7], (DIM,), jnp.float32),
                0.1 * jax.random.normal(ks[8], (C_IN,), jnp.float32),
                0.01 * jax.random.normal(ks[9], (), jnp.float32))
    params_k = tuple(jnp.array(p) for p in params_q)   # key encoder starts as a copy

    # queue buffer: randn(dim, K), column-normalized; queue_ptr = 0
    queue = jax.random.normal(ks[10], (DIM, K_QUEUE), jnp.float32)
    queue = queue / jnp.maximum(jnp.sqrt(jnp.sum(queue * queue, axis=0, keepdims=True)), 1e-12)
    queue_ptr = jnp.zeros((1,), jnp.int32)

    # torch.nonzero foreground selection (data-dependent shape) stays host-side, but the
    # device program only ever sees a fixed-length index vector (no per-batch recompiles).
    sal_q_np = np.asarray(sal_q)
    offset = np.arange(0, 2 * B, 2).reshape(-1, 1, 1)
    flat = ((sal_q_np + offset) * sal_q_np).reshape(-1)
    mask_indexes = np.nonzero(flat)[0].astype(np.int32)
    sel_labels = (flat[mask_indexes] // 2).astype(np.int32)     # the returned "sal_q"
    n_fg = int(mask_indexes.shape[0])
    mask_idx_pad = np.zeros((NPIX,), np.int32)
    mask_idx_pad[:n_fg] = mask_indexes

    Qm_pad, Pm_pad, sal_loss, new_queue, new_ptr, new_params_k = contrastive_forward(
        im_q, im_k, sal_q, sal_k, params_q, params_k,
        queue, queue_ptr, jnp.asarray(mask_idx_pad))
    jax.block_until_ready((Qm_pad, Pm_pad, sal_loss, new_queue, new_ptr, new_params_k))

    Qm = np.asarray(Qm_pad)[:n_fg]       # (n_fg, B) == reference Q
    Pm = np.asarray(Pm_pad)[:n_fg]       # (n_fg, B) == reference P
    outputs = (Qm, sel_labels, Pm, np.asarray(sal_loss))

    assert Qm.shape == (n_fg, B) and Pm.shape == (n_fg, B)
    assert np.isfinite(outputs[3])
    assert np.all(np.isfinite(Qm)) and np.all(np.isfinite(Pm))
    assert np.all(np.isfinite(np.asarray(new_queue)))
    print("KERNEL_OK")
</pallas_src>

<mosaic_0001>
module attributes {stable_mosaic.version = 11 : i64} {
  func.func @_fused_forward_kernel(%arg0: memref<1024x16xf32, #tpu.memory_space<vmem>>, %arg1: memref<16x384xf32, #tpu.memory_space<vmem>>, %arg2: memref<8x512xf32, #tpu.memory_space<vmem>>, %arg3: memref<8x1xf32, #tpu.memory_space<vmem>>, %arg4: memref<1x512xf32, #tpu.memory_space<vmem>>, %arg5: memref<16x512xf32, #tpu.memory_space<vmem>>, %arg6: memref<2x512xf32, #tpu.memory_space<vmem>>, %arg7: memref<2x512xf32, #tpu.memory_space<vmem>>, %arg8: memref<2x512xf32, #tpu.memory_space<vmem>>, %arg9: memref<2x128xf32, #tpu.memory_space<vmem>>, %arg10: memref<1x1xf32, #tpu.memory_space<smem>>) attributes {dimension_semantics = [], scalar_prefetch = 0 : i64, scratch_operands = 0 : i64, tpu.core_type = #tpu.core_type<tc>} {
    %c0 = arith.constant 0 : index
    %c0_0 = arith.constant 0 : index
    %0 = vector.load %arg0[%c0, %c0_0] : memref<1024x16xf32, #tpu.memory_space<vmem>>, vector<1024x16xf32>
    %c0_1 = arith.constant 0 : index
    %c0_2 = arith.constant 0 : index
    %1 = vector.load %arg1[%c0_1, %c0_2] : memref<16x384xf32, #tpu.memory_space<vmem>>, vector<16x384xf32>
    %cst = arith.constant dense<0.000000e+00> : vector<1024x384xf32>
    %2 = tpu.matmul %0, %1, %cst {dimension_numbers = #tpu.dot_dimension_numbers<[1], [0], [0], [1], [0, 0, 1, 1], [], []>} : vector<1024x16xf32>, vector<16x384xf32>, vector<1024x384xf32> -> vector<1024x384xf32>
    %3 = arith.mulf %2, %2 : vector<1024x384xf32>
    %4 = vector.extract_strided_slice %3 {offsets = [0, 0], sizes = [1024, 256], strides = [1, 1]} : vector<1024x384xf32> to vector<1024x256xf32>
    %cst_3 = arith.constant dense<0.000000e+00> : vector<1024xf32>
    %5 = vector.multi_reduction <add>, %4, %cst_3 [1] : vector<1024x256xf32> to vector<1024xf32>
    %6 = vector.shape_cast %5 : vector<1024xf32> to vector<1024x1xf32>
    %cst_4 = arith.constant 1.000000e-24 : f32
    %7 = vector.broadcast %cst_4 : f32 to vector<1024x1xf32>
    %8 = arith.maximumf %6, %7 : vector<1024x1xf32>
    %9 = math.rsqrt %8 : vector<1024x1xf32>
    %10 = vector.extract_strided_slice %3 {offsets = [0, 256], sizes = [1024, 128], strides = [1, 1]} : vector<1024x384xf32> to vector<1024x128xf32>
    %cst_5 = arith.constant dense<0.000000e+00> : vector<1024xf32>
    %11 = vector.multi_reduction <add>, %10, %cst_5 [1] : vector<1024x128xf32> to vector<1024xf32>
    %12 = vector.shape_cast %11 : vector<1024xf32> to vector<1024x1xf32>
    %cst_6 = arith.constant 1.000000e-24 : f32
    %13 = vector.broadcast %cst_6 : f32 to vector<1024x1xf32>
    %14 = arith.maximumf %12, %13 : vector<1024x1xf32>
    %15 = math.rsqrt %14 : vector<1024x1xf32>
    %16 = vector.extract_strided_slice %2 {offsets = [0, 0], sizes = [1024, 256], strides = [1, 1]} : vector<1024x384xf32> to vector<1024x256xf32>
    %17 = vector.broadcast %9 : vector<1024x1xf32> to vector<1024x256xf32>
    %18 = arith.mulf %16, %17 : vector<1024x256xf32>
    %19 = vector.extract_strided_slice %2 {offsets = [0, 256], sizes = [1024, 128], strides = [1, 1]} : vector<1024x384xf32> to vector<1024x128xf32>
    %20 = vector.broadcast %15 : vector<1024x1xf32> to vector<1024x128xf32>
    %21 = arith.mulf %19, %20 : vector<1024x128xf32>
    %22 = tpu.concatenate %18, %21 in 1 : vector<1024x256xf32>, vector<1024x128xf32> -> vector<1024x384xf32>
    %23 = vector.extract_strided_slice %22 {offsets = [0, 0], sizes = [512, 384], strides = [1, 1]} : vector<1024x384xf32> to vector<512x384xf32>
    %24 = vector.extract_strided_slice %22 {offsets = [512, 0], sizes = [512, 384], strides = [1, 1]} : vector<1024x384xf32> to vector<512x384xf32>
    %c0_7 = arith.constant 0 : index
    %c0_8 = arith.constant 0 : index
    %25 = vector.load %arg2[%c0_7, %c0_8] : memref<8x512xf32, #tpu.memory_space<vmem>>, vector<8x512xf32>
    %c0_9 = arith.constant 0 : index
    %c0_10 = arith.constant 0 : index
    %26 = vector.load %arg3[%c0_9, %c0_10] : memref<8x1xf32, #tpu.memory_space<vmem>>, vector<8x1xf32>
    %27 = vector.broadcast %26 : vector<8x1xf32> to vector<8x512xf32>
    %28 = arith.mulf %25, %27 : vector<8x512xf32>
    %cst_11 = arith.constant dense<0.000000e+00> : vector<512xf32>
    %29 = vector.multi_reduction <add>, %28, %cst_11 [0] : vector<8x512xf32> to vector<512xf32>
    %30 = vector.shape_cast %29 : vector<512xf32> to vector<1x512xf32>
    %c0_12 = arith.constant 0 : index
    %c0_13 = arith.constant 0 : index
    %31 = vector.load %arg4[%c0_12, %c0_13] : memref<1x512xf32, #tpu.memory_space<vmem>>, vector<1x512xf32>
    %cst_14 = arith.constant 5.000000e-01 : f32
    %32 = vector.broadcast %cst_14 : f32 to vector<1x512xf32>
    %33 = arith.cmpf oge, %31, %32 : vector<1x512xf32>
    %34 = arith.extui %33 : vector<1x512xi1> to vector<1x512xi32>
    %35 = arith.sitofp %34 : vector<1x512xi32> to vector<1x512xf32>
    %36 = vector.shape_cast %35 : vector<1x512xf32> to vector<1x1x512xf32>
    %cst_15 = arith.constant dense<0.000000e+00> : vector<1xf32>
    %37 = vector.multi_reduction <add>, %36, %cst_15 [1, 2] : vector<1x1x512xf32> to vector<1xf32>
    %38 = vector.shape_cast %37 : vector<1xf32> to vector<1x1x1xf32>
    %39 = vector.extract %38[0, 0, 0] : f32 from vector<1x1x1xf32>
    %cst_16 = arith.constant 5.120000e+02 : f32
    %40 = arith.subf %cst_16, %39 : f32
    %cst_17 = arith.constant 5.120000e+02 : f32
    %41 = arith.divf %40, %cst_17 : f32
    %cst_18 = arith.constant 0.000000e+00 : f32
    %42 = vector.broadcast %cst_18 : f32 to vector<1x512xf32>
    %43 = arith.cmpf oge, %30, %42 : vector<1x512xf32>
    %44 = arith.extui %43 : vector<1x512xi1> to vector<1x512xi32>
    %45 = arith.sitofp %44 : vector<1x512xi32> to vector<1x512xf32>
    %46 = arith.subf %35, %45 : vector<1x512xf32>
    %47 = arith.mulf %30, %46 : vector<1x512xf32>
    %cst_19 = arith.constant 2.000000e+00 : f32
    %48 = vector.broadcast %cst_19 : f32 to vector<1x512xf32>
    %49 = arith.mulf %48, %30 : vector<1x512xf32>
    %50 = arith.mulf %49, %45 : vector<1x512xf32>
    %51 = arith.subf %30, %50 : vector<1x512xf32>
    %52 = math.exp %51 : vector<1x512xf32>
    %cst_20 = arith.constant 1.000000e+00 : f32
    %53 = vector.broadcast %cst_20 : f32 to vector<1x512xf32>
    %54 = arith.addf %53, %52 : vector<1x512xf32>
    %55 = math.log %54 : vector<1x512xf32>
    %56 = arith.subf %47, %55 : vector<1x512xf32>
    %cst_21 = arith.constant 0.000000e+00 : f32
    %57 = vector.broadcast %cst_21 : f32 to vector<1x512xf32>
    %58 = arith.subf %57, %35 : vector<1x512xf32>
    %59 = arith.mulf %58, %56 : vector<1x512xf32>
    %60 = vector.shape_cast %59 : vector<1x512xf32> to vector<1x1x512xf32>
    %cst_22 = arith.constant dense<0.000000e+00> : vector<1xf32>
    %61 = vector.multi_reduction <add>, %60, %cst_22 [1, 2] : vector<1x1x512xf32> to vector<1xf32>
    %62 = vector.shape_cast %61 : vector<1xf32> to vector<1x1x1xf32>
    %63 = vector.extract %62[0, 0, 0] : f32 from vector<1x1x1xf32>
    %cst_23 = arith.constant 1.000000e+00 : f32
    %64 = vector.broadcast %cst_23 : f32 to vector<1x512xf32>
    %65 = arith.subf %64, %35 : vector<1x512xf32>
    %cst_24 = arith.constant 0.000000e+00 : f32
    %66 = vector.broadcast %cst_24 : f32 to vector<1x512xf32>
    %67 = arith.subf %66, %65 : vector<1x512xf32>
    %68 = arith.mulf %67, %56 : vector<1x512xf32>
    %69 = vector.shape_cast %68 : vector<1x512xf32> to vector<1x1x512xf32>
    %cst_25 = arith.constant dense<0.000000e+00> : vector<1xf32>
    %70 = vector.multi_reduction <add>, %69, %cst_25 [1, 2] : vector<1x1x512xf32> to vector<1xf32>
    %71 = vector.shape_cast %70 : vector<1xf32> to vector<1x1x1xf32>
    %72 = vector.extract %71[0, 0, 0] : f32 from vector<1x1x1xf32>
    %73 = arith.mulf %41, %63 : f32
    %cst_26 = arith.constant 1.000000e+00 : f32
    %74 = arith.subf %cst_26, %41 : f32
    %75 = arith.mulf %74, %72 : f32
    %76 = arith.addf %73, %75 : f32
    %cst_27 = arith.constant 5.120000e+02 : f32
    %77 = arith.divf %76, %cst_27 : f32
    %c0_28 = arith.constant 0 : index
    %c0_29 = arith.constant 0 : index
    %78 = memref.load %arg10[%c0_28, %c0_29] : memref<1x1xf32, #tpu.memory_space<smem>>
    memref.store %77, %arg10[%c0_28, %c0_29] : memref<1x1xf32, #tpu.memory_space<smem>>
    %c0_30 = arith.constant 0 : index
    %c0_31 = arith.constant 0 : index
    %79 = vector.load %arg5[%c0_30, %c0_31] : memref<16x512xf32, #tpu.memory_space<vmem>>, vector<16x512xf32>
    %cst_32 = arith.constant dense<0.000000e+00> : vector<16x384xf32>
    %80 = tpu.matmul %79, %24, %cst_32 {dimension_numbers = #tpu.dot_dimension_numbers<[1], [0], [0], [1], [0, 0, 1, 1], [], []>} : vector<16x512xf32>, vector<512x384xf32>, vector<16x384xf32> -> vector<16x384xf32>
    %81 = tpu.iota {dimensions = array<i32: 0>} : vector<16x384xi32>
    %82 = tpu.iota {dimensions = array<i32: 1>} : vector<16x384xi32>
    %c8_i32 = arith.constant 8 : i32
    %83 = vector.broadcast %c8_i32 : i32 to vector<16x384xi32>
    %84 = arith.cmpi slt, %81, %83 : vector<16x384xi32>
    %85 = arith.extui %84 : vector<16x384xi1> to vector<16x384xi32>
    %86 = arith.sitofp %85 : vector<16x384xi32> to vector<16x384xf32>
    %c256_i32 = arith.constant 256 : i32
    %87 = vector.broadcast %c256_i32 : i32 to vector<16x384xi32>
    %88 = arith.cmpi slt, %82, %87 : vector<16x384xi32>
    %89 = arith.extui %88 : vector<16x384xi1> to vector<16x384xi32>
    %90 = arith.sitofp %89 : vector<16x384xi32> to vector<16x384xf32>
    %91 = arith.mulf %86, %90 : vector<16x384xf32>
    %cst_33 = arith.constant 1.000000e+00 : f32
    %92 = vector.broadcast %cst_33 : f32 to vector<16x384xf32>
    %93 = arith.subf %92, %86 : vector<16x384xf32>
    %cst_34 = arith.constant 1.000000e+00 : f32
    %94 = vector.broadcast %cst_34 : f32 to vector<16x384xf32>
    %95 = arith.subf %94, %90 : vector<16x384xf32>
    %96 = arith.mulf %93, %95 : vector<16x384xf32>
    %97 = arith.addf %91, %96 : vector<16x384xf32>
    %98 = arith.mulf %80, %97 : vector<16x384xf32>
    %99 = arith.mulf %98, %98 : vector<16x384xf32>
    %cst_35 = arith.constant dense<0.000000e+00> : vector<16xf32>
    %100 = vector.multi_reduction <add>, %99, %cst_35 [1] : vector<16x384xf32> to vector<16xf32>
    %101 = vector.shape_cast %100 : vector<16xf32> to vector<16x1xf32>
    %cst_36 = arith.constant 1.000000e-24 : f32
    %102 = vector.broadcast %cst_36 : f32 to vector<16x1xf32>
    %103 = arith.maximumf %101, %102 : vector<16x1xf32>
    %104 = math.rsqrt %103 : vector<16x1xf32>
    %105 = vector.broadcast %104 : vector<16x1xf32> to vector<16x384xf32>
    %106 = arith.mulf %98, %105 : vector<16x384xf32>
    %107 = vector.extract_strided_slice %106 {offsets = [8, 256], sizes = [2, 128], strides = [1, 1]} : vector<16x384xf32> to vector<2x128xf32>
    %c0_37 = arith.constant 0 : index
    %c0_38 = arith.constant 0 : index
    %108 = vector.load %arg9[%c0_37, %c0_38] : memref<2x128xf32, #tpu.memory_space<vmem>>, vector<2x128xf32>
    tpu.vector_store %arg9[%c0_37, %c0_38], %107 {strides = array<i32>} : memref<2x128xf32, #tpu.memory_space<vmem>>, vector<2x128xf32>,
    %cst_39 = arith.constant dense<0.000000e+00> : vector<16x512xf32>
    %109 = tpu.matmul %106, %23, %cst_39 {dimension_numbers = #tpu.dot_dimension_numbers<[1], [1], [0], [0], [0, 0, 1, 0], [], []>} : vector<16x384xf32>, vector<512x384xf32>, vector<16x512xf32> -> vector<16x512xf32>
    %cst_40 = arith.constant 2.000000e+00 : f32
    %110 = vector.broadcast %cst_40 : f32 to vector<16x512xf32>
    %111 = arith.mulf %110, %109 : vector<16x512xf32>
    %cst_41 = arith.constant 2.000000e+00 : f32
    %112 = vector.broadcast %cst_41 : f32 to vector<16x512xf32>
    %113 = arith.subf %112, %111 : vector<16x512xf32>
    %cst_42 = arith.constant 9.99999996E-13 : f32
    %114 = vector.broadcast %cst_42 : f32 to vector<16x512xf32>
    %115 = arith.maximumf %113, %114 : vector<16x512xf32>
    %116 = vector.extract_strided_slice %115 {offsets = [0, 0], sizes = [2, 512], strides = [1, 1]} : vector<16x512xf32> to vector<2x512xf32>
    %c0_43 = arith.constant 0 : index
    %c0_44 = arith.constant 0 : index
    %117 = vector.load %arg6[%c0_43, %c0_44] : memref<2x512xf32, #tpu.memory_space<vmem>>, vector<2x512xf32>
    %118 = arith.mulf %116, %117 : vector<2x512xf32>
    %119 = vector.extract_strided_slice %115 {offsets = [8, 0], sizes = [2, 512], strides = [1, 1]} : vector<16x512xf32> to vector<2x512xf32>
    %cst_45 = arith.constant 0.00999999977 : f32
    %120 = vector.broadcast %cst_45 : f32 to vector<2x512xf32>
    %121 = arith.mulf %118, %120 : vector<2x512xf32>
    %cst_46 = arith.constant 1.000000e+00 : f32
    %122 = vector.broadcast %cst_46 : f32 to vector<2x512xf32>
    %123 = arith.addf %122, %121 : vector<2x512xf32>
    %124 = math.log %123 : vector<2x512xf32>
    %cst_47 = arith.constant -1.010000e+02 : f32
    %125 = vector.broadcast %cst_47 : f32 to vector<2x512xf32>
    %126 = arith.mulf %125, %124 : vector<2x512xf32>
    %127 = math.exp %126 : vector<2x512xf32>
    %cst_48 = arith.constant 0.994508147 : f32
    %128 = vector.broadcast %cst_48 : f32 to vector<2x512xf32>
    %129 = arith.mulf %128, %127 : vector<2x512xf32>
    %c0_49 = arith.constant 0 : index
    %c0_50 = arith.constant 0 : index
    %130 = vector.load %arg8[%c0_49, %c0_50] : memref<2x512xf32, #tpu.memory_space<vmem>>, vector<2x512xf32>
    tpu.vector_store %arg8[%c0_49, %c0_50], %129 {strides = array<i32>} : memref<2x512xf32, #tpu.memory_space<vmem>>, vector<2x512xf32>,
    %cst_51 = arith.constant 1.000000e+00 : f32
    %131 = vector.broadcast %cst_51 : f32 to vector<2x512xf32>
    %132 = arith.addf %131, %119 : vector<2x512xf32>
    %133 = tpu.reciprocal %132 {approx = true} : vector<2x512xf32> -> vector<2x512xf32>
    %134 = arith.mulf %133, %133 : vector<2x512xf32>
    %cst_52 = arith.constant 0.636297047 : f32
    %135 = vector.broadcast %cst_52 : f32 to vector<2x512xf32>
    %136 = arith.mulf %135, %134 : vector<2x512xf32>
    %c0_53 = arith.constant 0 : index
    %c0_54 = arith.constant 0 : index
    %137 = vector.load %arg7[%c0_53, %c0_54] : memref<2x512xf32, #tpu.memory_space<vmem>>, vector<2x512xf32>
    tpu.vector_store %arg7[%c0_53, %c0_54], %136 {strides = array<i32>} : memref<2x512xf32, #tpu.memory_space<vmem>>, vector<2x512xf32>,
    return
  }
}

</mosaic_0001>

<llo_original>
// kernel: contrastive_forward.1
$region0: #{contrastive_forward.1}
  #allocation0 [shape = 'u32[]', space=smem, size = 0x4, offset = 0x4, fixed_abs, tag = 'smem constant byte address 0x4 - core index']
  #allocation1 [shape = 'u32[144,128]{1,0:T(1,128)}', space=vmem, size = 0x12000, scoped, tag = 'internal scratch']
  %s0 = inlined_call_operand.vmem [shape: f32[1024,16], index: 0, kind: input, shape index: {}]
  %s1 = inlined_call_operand.vmem [shape: f32[16,384], index: 1, kind: input, shape index: {}]
  %s2 = inlined_call_operand.vmem [shape: f32[8,512], index: 2, kind: input, shape index: {}]
  %s3 = inlined_call_operand.vmem [shape: f32[8,1], index: 3, kind: input, shape index: {}]
  %s4 = inlined_call_operand.vmem [shape: f32[1,512], index: 4, kind: input, shape index: {}]
  %s5 = inlined_call_operand.vmem [shape: f32[16,512], index: 5, kind: input, shape index: {}]
  %s6 = inlined_call_operand.vmem [shape: f32[2,512], index: 6, kind: input, shape index: {}]
  %s7 = inlined_call_operand.vmem [shape: f32[2,512], index: 7, kind: output, shape index: {0}]
  %s8 = inlined_call_operand.vmem [shape: f32[2,512], index: 8, kind: output, shape index: {1}]
  %s9 = inlined_call_operand.vmem [shape: f32[2,128], index: 9, kind: output, shape index: {2}]
  %s10 = inlined_call_operand.hbm [shape: f32[1,1], index: 10, kind: output, shape index: {3}]
  %11 = xla_tuple %s7, %s8, %s9, %s10
  %s12 = sld [smem:[#allocation0]]
  $region62: #{contrastive_forward.1} parent=0
    _
  %s14 = ssub.s32 1, %s12
  %s15 = scalar_select 0, %s14, %s12
  $region1: #{contrastive_forward.1} parent=0
    #allocation2 [shape = 'u8[512]{0}', space=smem, size = 0x200, scoped, tag = 'output window, operand 3, single buffered']
    #allocation3 [shape = 's32[1]{0}', space=sflag, size = 0x4, scoped, tag = 'scoped memory for contrastive_forward.1']
    %16 = vsyncpa [#allocation3], 0
    // Predicated region
    $region2: #{contrastive_forward.1} parent=1 // pred_check
      _
    $region3: #{contrastive_forward.1} parent=1 // pred_check_branch
      %18 = sbr.rel (0) target = $region5
    $region4: #{contrastive_forward.1} parent=1 // pred_region
      _
    $region5: #{contrastive_forward.1} parent=1 // pred_fallthru
      _
    // Predicated region
    $region6: #{contrastive_forward.1} parent=1 // pred_check
      _
    $region7: #{contrastive_forward.1} parent=1 // pred_check_branch
      %20 = sbr.rel (0) target = $region9
    $region8: #{contrastive_forward.1} parent=1 // pred_region
      _
    $region9: #{contrastive_forward.1} parent=1 // pred_fallthru
      _
    // Predicated region
    $region10: #{contrastive_forward.1} parent=1 // pred_check
      _
    $region11: #{contrastive_forward.1} parent=1 // pred_check_branch
      %22 = sbr.rel (0) target = $region13
    $region12: #{contrastive_forward.1} parent=1 // pred_region
      _
    $region13: #{contrastive_forward.1} parent=1 // pred_fallthru
      _
    // Predicated region
    $region14: #{contrastive_forward.1} parent=1 // pred_check
      _
    $region15: #{contrastive_forward.1} parent=1 // pred_check_branch
      %24 = sbr.rel (0) target = $region17
    $region16: #{contrastive_forward.1} parent=1 // pred_region
      _
    $region17: #{contrastive_forward.1} parent=1 // pred_fallthru
      _
    // Predicated region
    $region18: #{contrastive_forward.1} parent=1 // pred_check
      _
    $region19: #{contrastive_forward.1} parent=1 // pred_check_branch
      %26 = sbr.rel (0) target = $region21
    $region20: #{contrastive_forward.1} parent=1 // pred_region
      _
    $region21: #{contrastive_forward.1} parent=1 // pred_fallthru
      _
    // Predicated region
    $region22: #{contrastive_forward.1} parent=1 // pred_check
      _
    $region23: #{contrastive_forward.1} parent=1 // pred_check_branch
      %28 = sbr.rel (0) target = $region25
    $region24: #{contrastive_forward.1} parent=1 // pred_region
      _
    $region25: #{contrastive_forward.1} parent=1 // pred_fallthru
      _
    // Predicated region
    $region26: #{contrastive_forward.1} parent=1 // pred_check
      _
    $region27: #{contrastive_forward.1} parent=1 // pred_check_branch
      %30 = sbr.rel (0) target = $region29
    $region28: #{contrastive_forward.1} parent=1 // pred_region
      _
    $region29: #{contrastive_forward.1} parent=1 // pred_fallthru
      _
    %v31 = vld [vmem:[%s0] sm:$0xff]
    %v32 = vld [vmem:[%s0 + $0x8] sm:$0xff]
    %v33 = vld [vmem:[%s0 + $0x10] sm:$0xff]
    %v34 = vld [vmem:[%s0 + $0x18] sm:$0xff]
    %v35 = vld [vmem:[%s0 + $0x20] sm:$0xff]
    %v36 = vld [vmem:[%s0 + $0x28] sm:$0xff]
    %v37 = vld [vmem:[%s0 + $0x30] sm:$0xff]
    %v38 = vld [vmem:[%s0 + $0x38] sm:$0xff]
    %v39 = vld [vmem:[%s0 + $0x40] sm:$0xff]
    %v40 = vld [vmem:[%s0 + $0x48] sm:$0xff]
    %v41 = vld [vmem:[%s0 + $0x50] sm:$0xff]
    %v42 = vld [vmem:[%s0 + $0x58] sm:$0xff]
    %v43 = vld [vmem:[%s0 + $0x60] sm:$0xff]
    %v44 = vld [vmem:[%s0 + $0x68] sm:$0xff]
    %v45 = vld [vmem:[%s0 + $0x70] sm:$0xff]
    %v46 = vld [vmem:[%s0 + $0x78] sm:$0xff]
    %v47 = vld [vmem:[%s0 + $0x80] sm:$0xff]
    %v48 = vld [vmem:[%s0 + $0x88] sm:$0xff]
    %v49 = vld [vmem:[%s0 + $0x90] sm:$0xff]
    %v50 = vld [vmem:[%s0 + $0x98] sm:$0xff]
    %v51 = vld [vmem:[%s0 + $0xa0] sm:$0xff]
    %v52 = vld [vmem:[%s0 + $0xa8] sm:$0xff]
    %v53 = vld [vmem:[%s0 + $0xb0] sm:$0xff]
    %v54 = vld [vmem:[%s0 + $0xb8] sm:$0xff]
    %v55 = vld [vmem:[%s0 + $0xc0] sm:$0xff]
    %v56 = vld [vmem:[%s0 + $0xc8] sm:$0xff]
    %v57 = vld [vmem:[%s0 + $0xd0] sm:$0xff]
    %v58 = vld [vmem:[%s0 + $0xd8] sm:$0xff]
    %v59 = vld [vmem:[%s0 + $0xe0] sm:$0xff]
    %v60 = vld [vmem:[%s0 + $0xe8] sm:$0xff]
    %v61 = vld [vmem:[%s0 + $0xf0] sm:$0xff]
    %v62 = vld [vmem:[%s0 + $0xf8] sm:$0xff]
    %v63 = vld [vmem:[%s0 + $0x100] sm:$0xff]
    %v64 = vld [vmem:[%s0 + $0x108] sm:$0xff]
    %v65 = vld [vmem:[%s0 + $0x110] sm:$0xff]
    %v66 = vld [vmem:[%s0 + $0x118] sm:$0xff]
    %v67 = vld [vmem:[%s0 + $0x120] sm:$0xff]
    %v68 = vld [vmem:[%s0 + $0x128] sm:$0xff]
    %v69 = vld [vmem:[%s0 + $0x130] sm:$0xff]
    %v70 = vld [vmem:[%s0 + $0x138] sm:$0xff]
    %v71 = vld [vmem:[%s0 + $0x140] sm:$0xff]
    %v72 = vld [vmem:[%s0 + $0x148] sm:$0xff]
    %v73 = vld [vmem:[%s0 + $0x150] sm:$0xff]
    %v74 = vld [vmem:[%s0 + $0x158] sm:$0xff]
    %v75 = vld [vmem:[%s0 + $0x160] sm:$0xff]
    %v76 = vld [vmem:[%s0 + $0x168] sm:$0xff]
    %v77 = vld [vmem:[%s0 + $0x170] sm:$0xff]
    %v78 = vld [vmem:[%s0 + $0x178] sm:$0xff]
    %v79 = vld [vmem:[%s0 + $0x180] sm:$0xff]
    %v80 = vld [vmem:[%s0 + $0x188] sm:$0xff]
    %v81 = vld [vmem:[%s0 + $0x190] sm:$0xff]
    %v82 = vld [vmem:[%s0 + $0x198] sm:$0xff]
    %v83 = vld [vmem:[%s0 + $0x1a0] sm:$0xff]
    %v84 = vld [vmem:[%s0 + $0x1a8] sm:$0xff]
    %v85 = vld [vmem:[%s0 + $0x1b0] sm:$0xff]
    %v86 = vld [vmem:[%s0 + $0x1b8] sm:$0xff]
    %v87 = vld [vmem:[%s0 + $0x1c0] sm:$0xff]
    %v88 = vld [vmem:[%s0 + $0x1c8] sm:$0xff]
    %v89 = vld [vmem:[%s0 + $0x1d0] sm:$0xff]
    %v90 = vld [vmem:[%s0 + $0x1d8] sm:$0xff]
    %v91 = vld [vmem:[%s0 + $0x1e0] sm:$0xff]
    %v92 = vld [vmem:[%s0 + $0x1e8] sm:$0xff]
    %v93 = vld [vmem:[%s0 + $0x1f0] sm:$0xff]
    %v94 = vld [vmem:[%s0 + $0x1f8] sm:$0xff]
    %v95 = vld [vmem:[%s0 + $0x200] sm:$0xff]
    %v96 = vld [vmem:[%s0 + $0x208] sm:$0xff]
    %v97 = vld [vmem:[%s0 + $0x210] sm:$0xff]
    %v98 = vld [vmem:[%s0 + $0x218] sm:$0xff]
    %v99 = vld [vmem:[%s0 + $0x220] sm:$0xff]
    %v100 = vld [vmem:[%s0 + $0x228] sm:$0xff]
    %v101 = vld [vmem:[%s0 + $0x230] sm:$0xff]
    %v102 = vld [vmem:[%s0 + $0x238] sm:$0xff]
    %v103 = vld [vmem:[%s0 + $0x240] sm:$0xff]
    %v104 = vld [vmem:[%s0 + $0x248] sm:$0xff]
    %v105 = vld [vmem:[%s0 + $0x250] sm:$0xff]
    %v106 = vld [vmem:[%s0 + $0x258] sm:$0xff]
    %v107 = vld [vmem:[%s0 + $0x260] sm:$0xff]
    %v108 = vld [vmem:[%s0 + $0x268] sm:$0xff]
    %v109 = vld [vmem:[%s0 + $0x270] sm:$0xff]
    %v110 = vld [vmem:[%s0 + $0x278] sm:$0xff]
    %v111 = vld [vmem:[%s0 + $0x280] sm:$0xff]
    %v112 = vld [vmem:[%s0 + $0x288] sm:$0xff]
    %v113 = vld [vmem:[%s0 + $0x290] sm:$0xff]
    %v114 = vld [vmem:[%s0 + $0x298] sm:$0xff]
    %v115 = vld [vmem:[%s0 + $0x2a0] sm:$0xff]
    %v116 = vld [vmem:[%s0 + $0x2a8] sm:$0xff]
    %v117 = vld [vmem:[%s0 + $0x2b0] sm:$0xff]
    %v118 = vld [vmem:[%s0 + $0x2b8] sm:$0xff]
    %v119 = vld [vmem:[%s0 + $0x2c0] sm:$0xff]
    %v120 = vld [vmem:[%s0 + $0x2c8] sm:$0xff]
    %v121 = vld [vmem:[%s0 + $0x2d0] sm:$0xff]
    %v122 = vld [vmem:[%s0 + $0x2d8] sm:$0xff]
    %v123 = vld [vmem:[%s0 + $0x2e0] sm:$0xff]
    %v124 = vld [vmem:[%s0 + $0x2e8] sm:$0xff]
    %v125 = vld [vmem:[%s0 + $0x2f0] sm:$0xff]
    %v126 = vld [vmem:[%s0 + $0x2f8] sm:$0xff]
    %v127 = vld [vmem:[%s0 + $0x300] sm:$0xff]
    %v128 = vld [vmem:[%s0 + $0x308] sm:$0xff]
    %v129 = vld [vmem:[%s0 + $0x310] sm:$0xff]
    %v130 = vld [vmem:[%s0 + $0x318] sm:$0xff]
    %v131 = vld [vmem:[%s0 + $0x320] sm:$0xff]
    %v132 = vld [vmem:[%s0 + $0x328] sm:$0xff]
    %v133 = vld [vmem:[%s0 + $0x330] sm:$0xff]
    %v134 = vld [vmem:[%s0 + $0x338] sm:$0xff]
    %v135 = vld [vmem:[%s0 + $0x340] sm:$0xff]
    %v136 = vld [vmem:[%s0 + $0x348] sm:$0xff]
    %v137 = vld [vmem:[%s0 + $0x350] sm:$0xff]
    %v138 = vld [vmem:[%s0 + $0x358] sm:$0xff]
    %v139 = vld [vmem:[%s0 + $0x360] sm:$0xff]
    %v140 = vld [vmem:[%s0 + $0x368] sm:$0xff]
    %v141 = vld [vmem:[%s0 + $0x370] sm:$0xff]
    %v142 = vld [vmem:[%s0 + $0x378] sm:$0xff]
    %v143 = vld [vmem:[%s0 + $0x380] sm:$0xff]
    %v144 = vld [vmem:[%s0 + $0x388] sm:$0xff]
    %v145 = vld [vmem:[%s0 + $0x390] sm:$0xff]
    %v146 = vld [vmem:[%s0 + $0x398] sm:$0xff]
    %v147 = vld [vmem:[%s0 + $0x3a0] sm:$0xff]
    %v148 = vld [vmem:[%s0 + $0x3a8] sm:$0xff]
    %v149 = vld [vmem:[%s0 + $0x3b0] sm:$0xff]
    %v150 = vld [vmem:[%s0 + $0x3b8] sm:$0xff]
    %v151 = vld [vmem:[%s0 + $0x3c0] sm:$0xff]
    %v152 = vld [vmem:[%s0 + $0x3c8] sm:$0xff]
    %v153 = vld [vmem:[%s0 + $0x3d0] sm:$0xff]
    %v154 = vld [vmem:[%s0 + $0x3d8] sm:$0xff]
    %v155 = vld [vmem:[%s0 + $0x3e0] sm:$0xff]
    %v156 = vld [vmem:[%s0 + $0x3e8] sm:$0xff]
    %v157 = vld [vmem:[%s0 + $0x3f0] sm:$0xff]
    %v158 = vld [vmem:[%s0 + $0x3f8] sm:$0xff]
    %v159 = vld [vmem:[%s1] sm:$0xff]
    %v160 = vld [vmem:[%s1 + $0x8] sm:$0xff]
    %v161 = vld [vmem:[%s1 + $0x10] sm:$0xff]
    %v162 = vld [vmem:[%s1 + $0x18] sm:$0xff]
    %v163 = vld [vmem:[%s1 + $0x20] sm:$0xff]
    %v164 = vld [vmem:[%s1 + $0x28] sm:$0xff]
    %vm165 = vcmask 130048
    %v167 = vsel %vm165, %v31, 0
    %v170 = vsel %vm165, %v32, 0
    %v173 = vsel %vm165, %v33, 0
    %v176 = vsel %vm165, %v34, 0
    %v179 = vsel %vm165, %v35, 0
    %v182 = vsel %vm165, %v36, 0
    %v185 = vsel %vm165, %v37, 0
    %v188 = vsel %vm165, %v38, 0
    %v191 = vsel %vm165, %v39, 0
    %v194 = vsel %vm165, %v40, 0
    %v197 = vsel %vm165, %v41, 0
    %v200 = vsel %vm165, %v42, 0
    %v203 = vsel %vm165, %v43, 0
    %v206 = vsel %vm165, %v44, 0
    %v209 = vsel %vm165, %v45, 0
    %v212 = vsel %vm165, %v46, 0
    %v215 = vsel %vm165, %v47, 0
    %v218 = vsel %vm165, %v48, 0
    %v221 = vsel %vm165, %v49, 0
    %v224 = vsel %vm165, %v50, 0
    %v227 = vsel %vm165, %v51, 0
    %v230 = vsel %vm165, %v52, 0
    %v233 = vsel %vm165, %v53, 0
    %v236 = vsel %vm165, %v54, 0
    %v239 = vsel %vm165, %v55, 0
    %v242 = vsel %vm165, %v56, 0
    %v245 = vsel %vm165, %v57, 0
    %v248 = vsel %vm165, %v58, 0
    %v251 = vsel %vm165, %v59, 0
    %v254 = vsel %vm165, %v60, 0
    %v257 = vsel %vm165, %v61, 0
    %v260 = vsel %vm165, %v62, 0
    %v263 = vsel %vm165, %v63, 0
    %v266 = vsel %vm165, %v64, 0
    %v269 = vsel %vm165, %v65, 0
    %v272 = vsel %vm165, %v66, 0
    %v275 = vsel %vm165, %v67, 0
    %v278 = vsel %vm165, %v68, 0
    %v281 = vsel %vm165, %v69, 0
    %v284 = vsel %vm165, %v70, 0
    %v287 = vsel %vm165, %v71, 0
    %v290 = vsel %vm165, %v72, 0
    %v293 = vsel %vm165, %v73, 0
    %v296 = vsel %vm165, %v74, 0
    %v299 = vsel %vm165, %v75, 0
    %v302 = vsel %vm165, %v76, 0
    %v305 = vsel %vm165, %v77, 0
    %v308 = vsel %vm165, %v78, 0
    %v311 = vsel %vm165, %v79, 0
    %v314 = vsel %vm165, %v80, 0
    %v317 = vsel %vm165, %v81, 0
    %v320 = vsel %vm165, %v82, 0
    %v323 = vsel %vm165, %v83, 0
    %v326 = vsel %vm165, %v84, 0
    %v329 = vsel %vm165, %v85, 0
    %v332 = vsel %vm165, %v86, 0
    %v335 = vsel %vm165, %v87, 0
    %v338 = vsel %vm165, %v88, 0
    %v341 = vsel %vm165, %v89, 0
    %v344 = vsel %vm165, %v90, 0
    %v347 = vsel %vm165, %v91, 0
    %v350 = vsel %vm165, %v92, 0
    %v353 = vsel %vm165, %v93, 0
    %v356 = vsel %vm165, %v94, 0
    %v359 = vsel %vm165, %v95, 0
    %v362 = vsel %vm165, %v96, 0
    %v365 = vsel %vm165, %v97, 0
    %v368 = vsel %vm165, %v98, 0
    %v371 = vsel %vm165, %v99, 0
    %v374 = vsel %vm165, %v100, 0
    %v377 = vsel %vm165, %v101, 0
    %v380 = vsel %vm165, %v102, 0
    %v383 = vsel %vm165, %v103, 0
    %v386 = vsel %vm165, %v104, 0
    %v389 = vsel %vm165, %v105, 0
    %v392 = vsel %vm165, %v106, 0
    %v395 = vsel %vm165, %v107, 0
    %v398 = vsel %vm165, %v108, 0
    %v401 = vsel %vm165, %v109, 0
    %v404 = vsel %vm165, %v110, 0
    %v407 = vsel %vm165, %v111, 0
    %v410 = vsel %vm165, %v112, 0
    %v413 = vsel %vm165, %v113, 0
    %v416 = vsel %vm165, %v114, 0
    %v419 = vsel %vm165, %v115, 0
    %v422 = vsel %vm165, %v116, 0
    %v425 = vsel %vm165, %v117, 0
    %v428 = vsel %vm165, %v118, 0
    %v431 = vsel %vm165, %v119, 0
    %v434 = vsel %vm165, %v120, 0
    %v437 = vsel %vm165, %v121, 0
    %v440 = vsel %vm165, %v122, 0
    %v443 = vsel %vm165, %v123, 0
    %v446 = vsel %vm165, %v124, 0
    %v449 = vsel %vm165, %v125, 0
    %v452 = vsel %vm165, %v126, 0
    %v455 = vsel %vm165, %v127, 0
    %v458 = vsel %vm165, %v128, 0
    %v461 = vsel %vm165, %v129, 0
    %v464 = vsel %vm165, %v130, 0
    %v467 = vsel %vm165, %v131, 0
    %v470 = vsel %vm165, %v132, 0
    %v473 = vsel %vm165, %v133, 0
    %v476 = vsel %vm165, %v134, 0
    %v479 = vsel %vm165, %v135, 0
    %v482 = vsel %vm165, %v136, 0
    %v485 = vsel %vm165, %v137, 0
    %v488 = vsel %vm165, %v138, 0
    %v491 = vsel %vm165, %v139, 0
    %v494 = vsel %vm165, %v140, 0
    %v497 = vsel %vm165, %v141, 0
    %v500 = vsel %vm165, %v142, 0
    %v503 = vsel %vm165, %v143, 0
    %v506 = vsel %vm165, %v144, 0
    %v509 = vsel %vm165, %v145, 0
    %v512 = vsel %vm165, %v146, 0
    %v515 = vsel %vm165, %v147, 0
    %v518 = vsel %vm165, %v148, 0
    %v521 = vsel %vm165, %v149, 0
    %v524 = vsel %vm165, %v150, 0
    %v527 = vsel %vm165, %v151, 0
    %v530 = vsel %vm165, %v152, 0
    %v533 = vsel %vm165, %v153, 0
    %v536 = vsel %vm165, %v154, 0
    %v539 = vsel %vm165, %v155, 0
    %v542 = vsel %vm165, %v156, 0
    %v545 = vsel %vm165, %v157, 0
    %v548 = vsel %vm165, %v158, 0
    %550 = vmatprep.subr.mxu0 0.0
    %551 = vmatpush1.msra.mxu0 0.0
    %552 = vmatprep.subr.mxu0 0.0
    %553 = vmatpush1.msra.mxu0 0.0
    %554 = vmatprep.subr.mxu0 0.0
    %555 = vmatpush1.msra.mxu0 0.0
    %556 = vmatprep.subr.mxu0 0.0
    %557 = vmatpush1.msra.mxu0 0.0
    %558 = vmatprep.subr.mxu0 0.0
    %559 = vmatpush1.msra.mxu0 0.0
    %560 = vmatprep.subr.mxu0 0.0
    %561 = vmatpush1.msra.mxu0 0.0
    %562 = vmatprep.subr.mxu0 0.0
    %563 = vmatpush1.msra.mxu0 0.0
    %564 = vmatprep.subr.mxu0 0.0
    %565 = vmatpush1.msra.mxu0 0.0
    %566 = vmatprep.subr.mxu0 0.0
    %567 = vmatpush1.msra.mxu0 0.0
    %568 = vmatprep.subr.mxu0 0.0
    %569 = vmatpush1.msra.mxu0 0.0
    %570 = vmatprep.subr.mxu0 0.0
    %571 = vmatpush1.msra.mxu0 0.0
    %572 = vmatprep.subr.mxu0 0.0
    %573 = vmatpush1.msra.mxu0 0.0
    %574 = vmatprep.subr.mxu0 0.0
    %575 = vmatpush1.msra.mxu0 0.0
    %576 = vmatprep.subr.mxu0 0.0
    %577 = vmatpush1.msra.mxu0 0.0
    %578 = vmatprep.subr.mxu0 %v163
    %579 = vmatpush1.msra.mxu0 %v162
    %580 = vmatprep.subr.mxu0 %v160
    %581 = vmatpush1.msra.mxu0 %v159
    %582 = vmatprep.subr.mxu0 0.0
    %583 = vmatpush2.msra.mxu0 0.0
    %584 = vmatprep.subr.mxu0 0.0
    %585 = vmatpush2.msra.mxu0 0.0
    %586 = vmatprep.subr.mxu0 0.0
    %587 = vmatpush2.msra.mxu0 0.0
    %588 = vmatprep.subr.mxu0 0.0
    %589 = vmatpush2.msra.mxu0 0.0
    %590 = vmatprep.subr.mxu0 0.0
    %591 = vmatpush2.msra.mxu0 0.0
    %592 = vmatprep.subr.mxu0 0.0
    %593 = vmatpush2.msra.mxu0 0.0
    %594 = vmatprep.subr.mxu0 0.0
    %595 = vmatpush2.msra.mxu0 0.0
    %596 = vmatprep.subr.mxu0 0.0
    %597 = vmatpush2.msra.mxu0 0.0
    %598 = vmatprep.subr.mxu0 0.0
    %599 = vmatpush2.msra.mxu0 0.0
    %600 = vmatprep.subr.mxu0 0.0
    %601 = vmatpush2.msra.mxu0 0.0
    %602 = vmatprep.subr.mxu0 0.0
    %603 = vmatpush2.msra.mxu0 0.0
    %604 = vmatprep.subr.mxu0 0.0
    %605 = vmatpush2.msra.mxu0 0.0
    %606 = vmatprep.subr.mxu0 0.0
    %607 = vmatpush2.msra.mxu0 0.0
    %608 = vmatprep.subr.mxu0 0.0
    %609 = vmatpush2.msra.mxu0 0.0
    %610 = vmatprep.subr.mxu0 0.0
    %611 = vmatpush2.msra.mxu0 0.0
    %612 = vmatprep.subr.mxu0 0.0
    %613 = vmatpush2.msra.mxu0 0.0
    %614 = vmatprep.mubr.f32.mxu0 0.0
    %615 = vmatmul.mubr.f32.gmra.mxu0 %v167
    %v616 = vpop.f32.mrf.mxu0
    %v617 = vadd.f32 0.0, %v616
    %v618 = vpop.f32.mrf.mxu0
    %v619 = vadd.f32 0.0, %v618
    %620 = vmatprep.mubr.f32.mxu0 0.0
    %621 = vmatmul.mubr.f32.gmra.mxu0 %v170
    %v622 = vpop.f32.mrf.mxu0
    %v623 = vadd.f32 0.0, %v622
    %v624 = vpop.f32.mrf.mxu0
    %v625 = vadd.f32 0.0, %v624
    %626 = vmatprep.mubr.f32.mxu0 0.0
    %627 = vmatmul.mubr.f32.gmra.mxu0 %v173
    %v628 = vpop.f32.mrf.mxu0
    %v629 = vadd.f32 0.0, %v628
    %v630 = vpop.f32.mrf.mxu0
    %v631 = vadd.f32 0.0, %v630
    %632 = vmatprep.mubr.f32.mxu0 0.0
    %633 = vmatmul.mubr.f32.gmra.mxu0 %v176
    %v634 = vpop.f32.mrf.mxu0
    %v635 = vadd.f32 0.0, %v634
    %v636 = vpop.f32.mrf.mxu0
    %v637 = vadd.f32 0.0, %v636
    %638 = vmatprep.mubr.f32.mxu0 0.0
    %639 = vmatmul.mubr.f32.gmra.mxu0 %v179
    %v640 = vpop.f32.mrf.mxu0
    %v641 = vadd.f32 0.0, %v640
    %v642 = vpop.f32.mrf.mxu0
    %v643 = vadd.f32 0.0, %v642
    %644 = vmatprep.mubr.f32.mxu0 0.0
    %645 = vmatmul.mubr.f32.gmra.mxu0 %v182
    %v646 = vpop.f32.mrf.mxu0
    %v647 = vadd.f32 0.0, %v646
    %v648 = vpop.f32.mrf.mxu0
    %v649 = vadd.f32 0.0, %v648
    %650 = vmatprep.mubr.f32.mxu0 0.0
    %651 = vmatmul.mubr.f32.gmra.mxu0 %v185
    %v652 = vpop.f32.mrf.mxu0
    %v653 = vadd.f32 0.0, %v652
    %v654 = vpop.f32.mrf.mxu0
    %v655 = vadd.f32 0.0, %v654
    %656 = vmatprep.mubr.f32.mxu0 0.0
    %657 = vmatmul.mubr.f32.gmra.mxu0 %v188
    %v658 = vpop.f32.mrf.mxu0
    %v659 = vadd.f32 0.0, %v658
    %v660 = vpop.f32.mrf.mxu0
    %v661 = vadd.f32 0.0, %v660
    %662 = vmatprep.mubr.f32.mxu0 0.0
    %663 = vmatmul.mubr.f32.gmra.mxu0 %v191
    %v664 = vpop.f32.mrf.mxu0
    %v665 = vadd.f32 0.0, %v664
    %v666 = vpop.f32.mrf.mxu0
    %v667 = vadd.f32 0.0, %v666
    %668 = vmatprep.mubr.f32.mxu0 0.0
    %669 = vmatmul.mubr.f32.gmra.mxu0 %v194
    %v670 = vpop.f32.mrf.mxu0
    %v671 = vadd.f32 0.0, %v670
    %v672 = vpop.f32.mrf.mxu0
    %v673 = vadd.f32 0.0, %v672
    %674 = vmatprep.mubr.f32.mxu0 0.0
    %675 = vmatmul.mubr.f32.gmra.mxu0 %v197
    %v676 = vpop.f32.mrf.mxu0
    %v677 = vadd.f32 0.0, %v676
    %v678 = vpop.f32.mrf.mxu0
    %v679 = vadd.f32 0.0, %v678
    %680 = vmatprep.mubr.f32.mxu0 0.0
    %681 = vmatmul.mubr.f32.gmra.mxu0 %v200
    %v682 = vpop.f32.mrf.mxu0
    %v683 = vadd.f32 0.0, %v682
    %v684 = vpop.f32.mrf.mxu0
    %v685 = vadd.f32 0.0, %v684
    %686 = vmatprep.mubr.f32.mxu0 0.0
    %687 = vmatmul.mubr.f32.gmra.mxu0 %v203
    %v688 = vpop.f32.mrf.mxu0
    %v689 = vadd.f32 0.0, %v688
    %v690 = vpop.f32.mrf.mxu0
    %v691 = vadd.f32 0.0, %v690
    %692 = vmatprep.mubr.f32.mxu0 0.0
    %693 = vmatmul.mubr.f32.gmra.mxu0 %v206
    %v694 = vpop.f32.mrf.mxu0
    %v695 = vadd.f32 0.0, %v694
    %v696 = vpop.f32.mrf.mxu0
    %v697 = vadd.f32 0.0, %v696
    %698 = vmatprep.mubr.f32.mxu0 0.0
    %699 = vmatmul.mubr.f32.gmra.mxu0 %v209
    %v700 = vpop.f32.mrf.mxu0
    %v701 = vadd.f32 0.0, %v700
    %v702 = vpop.f32.mrf.mxu0
    %v703 = vadd.f32 0.0, %v702
    %704 = vmatprep.mubr.f32.mxu0 0.0
    %705 = vmatmul.mubr.f32.gmra.mxu0 %v212
    %v706 = vpop.f32.mrf.mxu0
    %v707 = vadd.f32 0.0, %v706
    %v708 = vpop.f32.mrf.mxu0
    %v709 = vadd.f32 0.0, %v708
    %710 = vmatprep.mubr.f32.mxu0 0.0
    %711 = vmatmul.mubr.f32.gmra.mxu0 %v215
    %v712 = vpop.f32.mrf.mxu0
    %v713 = vadd.f32 0.0, %v712
    %v714 = vpop.f32.mrf.mxu0
    %v715 = vadd.f32 0.0, %v714
    %716 = vmatprep.mubr.f32.mxu0 0.0
    %717 = vmatmul.mubr.f32.gmra.mxu0 %v218
    %v718 = vpop.f32.mrf.mxu0
    %v719 = vadd.f32 0.0, %v718
    %v720 = vpop.f32.mrf.mxu0
    %v721 = vadd.f32 0.0, %v720
    %722 = vmatprep.mubr.f32.mxu0 0.0
    %723 = vmatmul.mubr.f32.gmra.mxu0 %v221
    %v724 = vpop.f32.mrf.mxu0
    %v725 = vadd.f32 0.0, %v724
    %v726 = vpop.f32.mrf.mxu0
    %v727 = vadd.f32 0.0, %v726
    %728 = vmatprep.mubr.f32.mxu0 0.0
    %729 = vmatmul.mubr.f32.gmra.mxu0 %v224
    %v730 = vpop.f32.mrf.mxu0
    %v731 = vadd.f32 0.0, %v730
    %v732 = vpop.f32.mrf.mxu0
    %v733 = vadd.f32 0.0, %v732
    %734 = vmatprep.mubr.f32.mxu0 0.0
    %735 = vmatmul.mubr.f32.gmra.mxu0 %v227
    %v736 = vpop.f32.mrf.mxu0
    %v737 = vadd.f32 0.0, %v736
    %v738 = vpop.f32.mrf.mxu0
    %v739 = vadd.f32 0.0, %v738
    %740 = vmatprep.mubr.f32.mxu0 0.0
    %741 = vmatmul.mubr.f32.gmra.mxu0 %v230
    %v742 = vpop.f32.mrf.mxu0
    %v743 = vadd.f32 0.0, %v742
    %v744 = vpop.f32.mrf.mxu0
    %v745 = vadd.f32 0.0, %v744
    %746 = vmatprep.mubr.f32.mxu0 0.0
    %747 = vmatmul.mubr.f32.gmra.mxu0 %v233
    %v748 = vpop.f32.mrf.mxu0
    %v749 = vadd.f32 0.0, %v748
    %v750 = vpop.f32.mrf.mxu0
    %v751 = vadd.f32 0.0, %v750
    %752 = vmatprep.mubr.f32.mxu0 0.0
    %753 = vmatmul.mubr.f32.gmra.mxu0 %v236
    %v754 = vpop.f32.mrf.mxu0
    %v755 = vadd.f32 0.0, %v754
    %v756 = vpop.f32.mrf.mxu0
    %v757 = vadd.f32 0.0, %v756
    %758 = vmatprep.mubr.f32.mxu0 0.0
    %759 = vmatmul.mubr.f32.gmra.mxu0 %v239
    %v760 = vpop.f32.mrf.mxu0
    %v761 = vadd.f32 0.0, %v760
    %v762 = vpop.f32.mrf.mxu0
    %v763 = vadd.f32 0.0, %v762
    %764 = vmatprep.mubr.f32.mxu0 0.0
    %765 = vmatmul.mubr.f32.gmra.mxu0 %v242
    %v766 = vpop.f32.mrf.mxu0
    %v767 = vadd.f32 0.0, %v766
    %v768 = vpop.f32.mrf.mxu0
    %v769 = vadd.f32 0.0, %v768
    %770 = vmatprep.mubr.f32.mxu0 0.0
    %771 = vmatmul.mubr.f32.gmra.mxu0 %v245
    %v772 = vpop.f32.mrf.mxu0
    %v773 = vadd.f32 0.0, %v772
    %v774 = vpop.f32.mrf.mxu0
    %v775 = vadd.f32 0.0, %v774
    %776 = vmatprep.mubr.f32.mxu0 0.0
    %777 = vmatmul.mubr.f32.gmra.mxu0 %v248
    %v778 = vpop.f32.mrf.mxu0
    %v779 = vadd.f32 0.0, %v778
    %v780 = vpop.f32.mrf.mxu0
    %v781 = vadd.f32 0.0, %v780
    %782 = vmatprep.mubr.f32.mxu0 0.0
    %783 = vmatmul.mubr.f32.gmra.mxu0 %v251
    %v784 = vpop.f32.mrf.mxu0
    %v785 = vadd.f32 0.0, %v784
    %v786 = vpop.f32.mrf.mxu0
    %v787 = vadd.f32 0.0, %v786
    %788 = vmatprep.mubr.f32.mxu0 0.0
    %789 = vmatmul.mubr.f32.gmra.mxu0 %v254
    %v790 = vpop.f32.mrf.mxu0
    %v791 = vadd.f32 0.0, %v790
    %v792 = vpop.f32.mrf.mxu0
    %v793 = vadd.f32 0.0, %v792
    %794 = vmatprep.mubr.f32.mxu0 0.0
    %795 = vmatmul.mubr.f32.gmra.mxu0 %v257
    %v796 = vpop.f32.mrf.mxu0
    %v797 = vadd.f32 0.0, %v796
    %v798 = vpop.f32.mrf.mxu0
    %v799 = vadd.f32 0.0, %v798
    %800 = vmatprep.mubr.f32.mxu0 0.0
    %801 = vmatmul.mubr.f32.gmra.mxu0 %v260
    %v802 = vpop.f32.mrf.mxu0
    %v803 = vadd.f32 0.0, %v802
    %v804 = vpop.f32.mrf.mxu0
    %v805 = vadd.f32 0.0, %v804
    %806 = vmatprep.mubr.f32.mxu0 0.0
    %807 = vmatmul.mubr.f32.gmra.mxu0 %v263
    %v808 = vpop.f32.mrf.mxu0
    %v809 = vadd.f32 0.0, %v808
    %v810 = vpop.f32.mrf.mxu0
    %v811 = vadd.f32 0.0, %v810
    %812 = vmatprep.mubr.f32.mxu0 0.0
    %813 = vmatmul.mubr.f32.gmra.mxu0 %v266
    %v814 = vpop.f32.mrf.mxu0
    %v815 = vadd.f32 0.0, %v814
    %v816 = vpop.f32.mrf.mxu0
    %v817 = vadd.f32 0.0, %v816
    %818 = vmatprep.mubr.f32.mxu0 0.0
    %819 = vmatmul.mubr.f32.gmra.mxu0 %v269
    %v820 = vpop.f32.mrf.mxu0
    %v821 = vadd.f32 0.0, %v820
    %v822 = vpop.f32.mrf.mxu0
    %v823 = vadd.f32 0.0, %v822
    %824 = vmatprep.mubr.f32.mxu0 0.0
    %825 = vmatmul.mubr.f32.gmra.mxu0 %v272
    %v826 = vpop.f32.mrf.mxu0
    %v827 = vadd.f32 0.0, %v826
    %v828 = vpop.f32.mrf.mxu0
    %v829 = vadd.f32 0.0, %v828
    %830 = vmatprep.mubr.f32.mxu0 0.0
    %831 = vmatmul.mubr.f32.gmra.mxu0 %v275
    %v832 = vpop.f32.mrf.mxu0
    %v833 = vadd.f32 0.0, %v832
    %v834 = vpop.f32.mrf.mxu0
    %v835 = vadd.f32 0.0, %v834
    %836 = vmatprep.mubr.f32.mxu0 0.0
    %837 = vmatmul.mubr.f32.gmra.mxu0 %v278
    %v838 = vpop.f32.mrf.mxu0
    %v839 = vadd.f32 0.0, %v838
    %v840 = vpop.f32.mrf.mxu0
    %v841 = vadd.f32 0.0, %v840
    %842 = vmatprep.mubr.f32.mxu0 0.0
    %843 = vmatmul.mubr.f32.gmra.mxu0 %v281
    %v844 = vpop.f32.mrf.mxu0
    %v845 = vadd.f32 0.0, %v844
    %v846 = vpop.f32.mrf.mxu0
    %v847 = vadd.f32 0.0, %v846
    %848 = vmatprep.mubr.f32.mxu0 0.0
    %849 = vmatmul.mubr.f32.gmra.mxu0 %v284
    %v850 = vpop.f32.mrf.mxu0
    %v851 = vadd.f32 0.0, %v850
    %v852 = vpop.f32.mrf.mxu0
    %v853 = vadd.f32 0.0, %v852
    %854 = vmatprep.mubr.f32.mxu0 0.0
    %855 = vmatmul.mubr.f32.gmra.mxu0 %v287
    %v856 = vpop.f32.mrf.mxu0
    %v857 = vadd.f32 0.0, %v856
    %v858 = vpop.f32.mrf.mxu0
    %v859 = vadd.f32 0.0, %v858
    %860 = vmatprep.mubr.f32.mxu0 0.0
    %861 = vmatmul.mubr.f32.gmra.mxu0 %v290
    %v862 = vpop.f32.mrf.mxu0
    %v863 = vadd.f32 0.0, %v862
    %v864 = vpop.f32.mrf.mxu0
    %v865 = vadd.f32 0.0, %v864
    %866 = vmatprep.mubr.f32.mxu0 0.0
    %867 = vmatmul.mubr.f32.gmra.mxu0 %v293
    %v868 = vpop.f32.mrf.mxu0
    %v869 = vadd.f32 0.0, %v868
    %v870 = vpop.f32.mrf.mxu0
    %v871 = vadd.f32 0.0, %v870
    %872 = vmatprep.mubr.f32.mxu0 0.0
    %873 = vmatmul.mubr.f32.gmra.mxu0 %v296
    %v874 = vpop.f32.mrf.mxu0
    %v875 = vadd.f32 0.0, %v874
    %v876 = vpop.f32.mrf.mxu0
    %v877 = vadd.f32 0.0, %v876
    %878 = vmatprep.mubr.f32.mxu0 0.0
    %879 = vmatmul.mubr.f32.gmra.mxu0 %v299
    %v880 = vpop.f32.mrf.mxu0
    %v881 = vadd.f32 0.0, %v880
    %v882 = vpop.f32.mrf.mxu0
    %v883 = vadd.f32 0.0, %v882
    %884 = vmatprep.mubr.f32.mxu0 0.0
    %885 = vmatmul.mubr.f32.gmra.mxu0 %v302
    %v886 = vpop.f32.mrf.mxu0
    %v887 = vadd.f32 0.0, %v886
    %v888 = vpop.f32.mrf.mxu0
    %v889 = vadd.f32 0.0, %v888
    %890 = vmatprep.mubr.f32.mxu0 0.0
    %891 = vmatmul.mubr.f32.gmra.mxu0 %v305
    %v892 = vpop.f32.mrf.mxu0
    %v893 = vadd.f32 0.0, %v892
    %v894 = vpop.f32.mrf.mxu0
    %v895 = vadd.f32 0.0, %v894
    %896 = vmatprep.mubr.f32.mxu0 0.0
    %897 = vmatmul.mubr.f32.gmra.mxu0 %v308
    %v898 = vpop.f32.mrf.mxu0
    %v899 = vadd.f32 0.0, %v898
    %v900 = vpop.f32.mrf.mxu0
    %v901 = vadd.f32 0.0, %v900
    %902 = vmatprep.mubr.f32.mxu0 0.0
    %903 = vmatmul.mubr.f32.gmra.mxu0 %v311
    %v904 = vpop.f32.mrf.mxu0
    %v905 = vadd.f32 0.0, %v904
    %v906 = vpop.f32.mrf.mxu0
    %v907 = vadd.f32 0.0, %v906
    %908 = vmatprep.mubr.f32.mxu0 0.0
    %909 = vmatmul.mubr.f32.gmra.mxu0 %v314
    %v910 = vpop.f32.mrf.mxu0
    %v911 = vadd.f32 0.0, %v910
    %v912 = vpop.f32.mrf.mxu0
    %v913 = vadd.f32 0.0, %v912
    %914 = vmatprep.mubr.f32.mxu0 0.0
    %915 = vmatmul.mubr.f32.gmra.mxu0 %v317
    %v916 = vpop.f32.mrf.mxu0
    %v917 = vadd.f32 0.0, %v916
    %v918 = vpop.f32.mrf.mxu0
    %v919 = vadd.f32 0.0, %v918
    %920 = vmatprep.mubr.f32.mxu0 0.0
    %921 = vmatmul.mubr.f32.gmra.mxu0 %v320
    %v922 = vpop.f32.mrf.mxu0
    %v923 = vadd.f32 0.0, %v922
    %v924 = vpop.f32.mrf.mxu0
    %v925 = vadd.f32 0.0, %v924
    %926 = vmatprep.mubr.f32.mxu0 0.0
    %927 = vmatmul.mubr.f32.gmra.mxu0 %v323
    %v928 = vpop.f32.mrf.mxu0
    %v929 = vadd.f32 0.0, %v928
    %v930 = vpop.f32.mrf.mxu0
    %v931 = vadd.f32 0.0, %v930
    %932 = vmatprep.mubr.f32.mxu0 0.0
    %933 = vmatmul.mubr.f32.gmra.mxu0 %v326
    %v934 = vpop.f32.mrf.mxu0
    %v935 = vadd.f32 0.0, %v934
    %v936 = vpop.f32.mrf.mxu0
    %v937 = vadd.f32 0.0, %v936
    %938 = vmatprep.mubr.f32.mxu0 0.0
    %939 = vmatmul.mubr.f32.gmra.mxu0 %v329
    %v940 = vpop.f32.mrf.mxu0
    %v941 = vadd.f32 0.0, %v940
    %v942 = vpop.f32.mrf.mxu0
    %v943 = vadd.f32 0.0, %v942
    %944 = vmatprep.mubr.f32.mxu0 0.0
    %945 = vmatmul.mubr.f32.gmra.mxu0 %v332
    %v946 = vpop.f32.mrf.mxu0
    %v947 = vadd.f32 0.0, %v946
    %v948 = vpop.f32.mrf.mxu0
    %v949 = vadd.f32 0.0, %v948
    %950 = vmatprep.mubr.f32.mxu0 0.0
    %951 = vmatmul.mubr.f32.gmra.mxu0 %v335
    %v952 = vpop.f32.mrf.mxu0
    %v953 = vadd.f32 0.0, %v952
    %v954 = vpop.f32.mrf.mxu0
    %v955 = vadd.f32 0.0, %v954
    %956 = vmatprep.mubr.f32.mxu0 0.0
    %957 = vmatmul.mubr.f32.gmra.mxu0 %v338
    %v958 = vpop.f32.mrf.mxu0
    %v959 = vadd.f32 0.0, %v958
    %v960 = vpop.f32.mrf.mxu0
    %v961 = vadd.f32 0.0, %v960
    %962 = vmatprep.mubr.f32.mxu0 0.0
    %963 = vmatmul.mubr.f32.gmra.mxu0 %v341
    %v964 = vpop.f32.mrf.mxu0
    %v965 = vadd.f32 0.0, %v964
    %v966 = vpop.f32.mrf.mxu0
    %v967 = vadd.f32 0.0, %v966
    %968 = vmatprep.mubr.f32.mxu0 0.0
    %969 = vmatmul.mubr.f32.gmra.mxu0 %v344
    %v970 = vpop.f32.mrf.mxu0
    %v971 = vadd.f32 0.0, %v970
    %v972 = vpop.f32.mrf.mxu0
    %v973 = vadd.f32 0.0, %v972
    %974 = vmatprep.mubr.f32.mxu0 0.0
    %975 = vmatmul.mubr.f32.gmra.mxu0 %v347
    %v976 = vpop.f32.mrf.mxu0
    %v977 = vadd.f32 0.0, %v976
    %v978 = vpop.f32.mrf.mxu0
    %v979 = vadd.f32 0.0, %v978
    %980 = vmatprep.mubr.f32.mxu0 0.0
    %981 = vmatmul.mubr.f32.gmra.mxu0 %v350
    %v982 = vpop.f32.mrf.mxu0
    %v983 = vadd.f32 0.0, %v982
    %v984 = vpop.f32.mrf.mxu0
    %v985 = vadd.f32 0.0, %v984
    %986 = vmatprep.mubr.f32.mxu0 0.0
    %987 = vmatmul.mubr.f32.gmra.mxu0 %v353
    %v988 = vpop.f32.mrf.mxu0
    %v989 = vadd.f32 0.0, %v988
    %v990 = vpop.f32.mrf.mxu0
    %v991 = vadd.f32 0.0, %v990
    %992 = vmatprep.mubr.f32.mxu0 0.0
    %993 = vmatmul.mubr.f32.gmra.mxu0 %v356
    %v994 = vpop.f32.mrf.mxu0
    %v995 = vadd.f32 0.0, %v994
    %v996 = vpop.f32.mrf.mxu0
    %v997 = vadd.f32 0.0, %v996
    %998 = vmatprep.mubr.f32.mxu0 0.0
    %999 = vmatmul.mubr.f32.gmra.mxu0 %v359
    %v1000 = vpop.f32.mrf.mxu0
    %v1001 = vadd.f32 0.0, %v1000
    %v1002 = vpop.f32.mrf.mxu0
    %v1003 = vadd.f32 0.0, %v1002
    %1004 = vmatprep.mubr.f32.mxu0 0.0
    %1005 = vmatmul.mubr.f32.gmra.mxu0 %v362
    %v1006 = vpop.f32.mrf.mxu0
    %v1007 = vadd.f32 0.0, %v1006
    %v1008 = vpop.f32.mrf.mxu0
    %v1009 = vadd.f32 0.0, %v1008
    %1010 = vmatprep.mubr.f32.mxu0 0.0
    %1011 = vmatmul.mubr.f32.gmra.mxu0 %v365
    %v1012 = vpop.f32.mrf.mxu0
    %v1013 = vadd.f32 0.0, %v1012
    %v1014 = vpop.f32.mrf.mxu0
    %v1015 = vadd.f32 0.0, %v1014
    %1016 = vmatprep.mubr.f32.mxu0 0.0
    %1017 = vmatmul.mubr.f32.gmra.mxu0 %v368
    %v1018 = vpop.f32.mrf.mxu0
    %v1019 = vadd.f32 0.0, %v1018
    %v1020 = vpop.f32.mrf.mxu0
    %v1021 = vadd.f32 0.0, %v1020
    %1022 = vmatprep.mubr.f32.mxu0 0.0
    %1023 = vmatmul.mubr.f32.gmra.mxu0 %v371
    %v1024 = vpop.f32.mrf.mxu0
    %v1025 = vadd.f32 0.0, %v1024
    %v1026 = vpop.f32.mrf.mxu0
    %v1027 = vadd.f32 0.0, %v1026
    %1028 = vmatprep.mubr.f32.mxu0 0.0
    %1029 = vmatmul.mubr.f32.gmra.mxu0 %v374
    %v1030 = vpop.f32.mrf.mxu0
    %v1031 = vadd.f32 0.0, %v1030
    %v1032 = vpop.f32.mrf.mxu0
    %v1033 = vadd.f32 0.0, %v1032
    %1034 = vmatprep.mubr.f32.mxu0 0.0
    %1035 = vmatmul.mubr.f32.gmra.mxu0 %v377
    %v1036 = vpop.f32.mrf.mxu0
    %v1037 = vadd.f32 0.0, %v1036
    %v1038 = vpop.f32.mrf.mxu0
    %v1039 = vadd.f32 0.0, %v1038
    %1040 = vmatprep.mubr.f32.mxu0 0.0
    %1041 = vmatmul.mubr.f32.gmra.mxu0 %v380
    %v1042 = vpop.f32.mrf.mxu0
    %v1043 = vadd.f32 0.0, %v1042
    %v1044 = vpop.f32.mrf.mxu0
    %v1045 = vadd.f32 0.0, %v1044
    %1046 = vmatprep.mubr.f32.mxu0 0.0
    %1047 = vmatmul.mubr.f32.gmra.mxu0 %v383
    %v1048 = vpop.f32.mrf.mxu0
    %v1049 = vadd.f32 0.0, %v1048
    %v1050 = vpop.f32.mrf.mxu0
    %v1051 = vadd.f32 0.0, %v1050
    %1052 = vmatprep.mubr.f32.mxu0 0.0
    %1053 = vmatmul.mubr.f32.gmra.mxu0 %v386
    %v1054 = vpop.f32.mrf.mxu0
    %v1055 = vadd.f32 0.0, %v1054
    %v1056 = vpop.f32.mrf.mxu0
    %v1057 = vadd.f32 0.0, %v1056
    %1058 = vmatprep.mubr.f32.mxu0 0.0
    %1059 = vmatmul.mubr.f32.gmra.mxu0 %v389
    %v1060 = vpop.f32.mrf.mxu0
    %v1061 = vadd.f32 0.0, %v1060
    %v1062 = vpop.f32.mrf.mxu0
    %v1063 = vadd.f32 0.0, %v1062
    %1064 = vmatprep.mubr.f32.mxu0 0.0
    %1065 = vmatmul.mubr.f32.gmra.mxu0 %v392
    %v1066 = vpop.f32.mrf.mxu0
    %v1067 = vadd.f32 0.0, %v1066
    %v1068 = vpop.f32.mrf.mxu0
    %v1069 = vadd.f32 0.0, %v1068
    %1070 = vmatprep.mubr.f32.mxu0 0.0
    %1071 = vmatmul.mubr.f32.gmra.mxu0 %v395
    %v1072 = vpop.f32.mrf.mxu0
    %v1073 = vadd.f32 0.0, %v1072
    %v1074 = vpop.f32.mrf.mxu0
    %v1075 = vadd.f32 0.0, %v1074
    %1076 = vmatprep.mubr.f32.mxu0 0.0
    %1077 = vmatmul.mubr.f32.gmra.mxu0 %v398
    %v1078 = vpop.f32.mrf.mxu0
    %v1079 = vadd.f32 0.0, %v1078
    %v1080 = vpop.f32.mrf.mxu0
    %v1081 = vadd.f32 0.0, %v1080
    %1082 = vmatprep.mubr.f32.mxu0 0.0
    %1083 = vmatmul.mubr.f32.gmra.mxu0 %v401
    %v1084 = vpop.f32.mrf.mxu0
    %v1085 = vadd.f32 0.0, %v1084
    %v1086 = vpop.f32.mrf.mxu0
    %v1087 = vadd.f32 0.0, %v1086
    %1088 = vmatprep.mubr.f32.mxu0 0.0
    %1089 = vmatmul.mubr.f32.gmra.mxu0 %v404
    %v1090 = vpop.f32.mrf.mxu0
    %v1091 = vadd.f32 0.0, %v1090
    %v1092 = vpop.f32.mrf.mxu0
    %v1093 = vadd.f32 0.0, %v1092
    %1094 = vmatprep.mubr.f32.mxu0 0.0
    %1095 = vmatmul.mubr.f32.gmra.mxu0 %v407
    %v1096 = vpop.f32.mrf.mxu0
    %v1097 = vadd.f32 0.0, %v1096
    %v1098 = vpop.f32.mrf.mxu0
    %v1099 = vadd.f32 0.0, %v1098
    %1100 = vmatprep.mubr.f32.mxu0 0.0
    %1101 = vmatmul.mubr.f32.gmra.mxu0 %v410
    %v1102 = vpop.f32.mrf.mxu0
    %v1103 = vadd.f32 0.0, %v1102
    %v1104 = vpop.f32.mrf.mxu0
    %v1105 = vadd.f32 0.0, %v1104
    %1106 = vmatprep.mubr.f32.mxu0 0.0
    %1107 = vmatmul.mubr.f32.gmra.mxu0 %v413
    %v1108 = vpop.f32.mrf.mxu0
    %v1109 = vadd.f32 0.0, %v1108
    %v1110 = vpop.f32.mrf.mxu0
    %v1111 = vadd.f32 0.0, %v1110
    %1112 = vmatprep.mubr.f32.mxu0 0.0
    %1113 = vmatmul.mubr.f32.gmra.mxu0 %v416
    %v1114 = vpop.f32.mrf.mxu0
    %v1115 = vadd.f32 0.0, %v1114
    %v1116 = vpop.f32.mrf.mxu0
    %v1117 = vadd.f32 0.0, %v1116
    %1118 = vmatprep.mubr.f32.mxu0 0.0
    %1119 = vmatmul.mubr.f32.gmra.mxu0 %v419
    %v1120 = vpop.f32.mrf.mxu0
    %v1121 = vadd.f32 0.0, %v1120
    %v1122 = vpop.f32.mrf.mxu0
    %v1123 = vadd.f32 0.0, %v1122
    %1124 = vmatprep.mubr.f32.mxu0 0.0
    %1125 = vmatmul.mubr.f32.gmra.mxu0 %v422
    %v1126 = vpop.f32.mrf.mxu0
    %v1127 = vadd.f32 0.0, %v1126
    %v1128 = vpop.f32.mrf.mxu0
    %v1129 = vadd.f32 0.0, %v1128
    %1130 = vmatprep.mubr.f32.mxu0 0.0
    %1131 = vmatmul.mubr.f32.gmra.mxu0 %v425
    %v1132 = vpop.f32.mrf.mxu0
    %v1133 = vadd.f32 0.0, %v1132
    %v1134 = vpop.f32.mrf.mxu0
    %v1135 = vadd.f32 0.0, %v1134
    %1136 = vmatprep.mubr.f32.mxu0 0.0
    %1137 = vmatmul.mubr.f32.gmra.mxu0 %v428
    %v1138 = vpop.f32.mrf.mxu0
    %v1139 = vadd.f32 0.0, %v1138
    %v1140 = vpop.f32.mrf.mxu0
    %v1141 = vadd.f32 0.0, %v1140
    %1142 = vmatprep.mubr.f32.mxu0 0.0
    %1143 = vmatmul.mubr.f32.gmra.mxu0 %v431
    %v1144 = vpop.f32.mrf.mxu0
    %v1145 = vadd.f32 0.0, %v1144
    %v1146 = vpop.f32.mrf.mxu0
    %v1147 = vadd.f32 0.0, %v1146
    %1148 = vmatprep.mubr.f32.mxu0 0.0
    %1149 = vmatmul.mubr.f32.gmra.mxu0 %v434
    %v1150 = vpop.f32.mrf.mxu0
    %v1151 = vadd.f32 0.0, %v1150
    %v1152 = vpop.f32.mrf.mxu0
    %v1153 = vadd.f32 0.0, %v1152
    %1154 = vmatprep.mubr.f32.mxu0 0.0
    %1155 = vmatmul.mubr.f32.gmra.mxu0 %v437
    %v1156 = vpop.f32.mrf.mxu0
    %v1157 = vadd.f32 0.0, %v1156
    %v1158 = vpop.f32.mrf.mxu0
    %v1159 = vadd.f32 0.0, %v1158
    %1160 = vmatprep.mubr.f32.mxu0 0.0
    %1161 = vmatmul.mubr.f32.gmra.mxu0 %v440
    %v1162 = vpop.f32.mrf.mxu0
    %v1163 = vadd.f32 0.0, %v1162
    %v1164 = vpop.f32.mrf.mxu0
    %v1165 = vadd.f32 0.0, %v1164
    %1166 = vmatprep.mubr.f32.mxu0 0.0
    %1167 = vmatmul.mubr.f32.gmra.mxu0 %v443
    %v1168 = vpop.f32.mrf.mxu0
    %v1169 = vadd.f32 0.0, %v1168
    %v1170 = vpop.f32.mrf.mxu0
    %v1171 = vadd.f32 0.0, %v1170
    %1172 = vmatprep.mubr.f32.mxu0 0.0
    %1173 = vmatmul.mubr.f32.gmra.mxu0 %v446
    %v1174 = vpop.f32.mrf.mxu0
    %v1175 = vadd.f32 0.0, %v1174
    %v1176 = vpop.f32.mrf.mxu0
    %v1177 = vadd.f32 0.0, %v1176
    %1178 = vmatprep.mubr.f32.mxu0 0.0
    %1179 = vmatmul.mubr.f32.gmra.mxu0 %v449
    %v1180 = vpop.f32.mrf.mxu0
    %v1181 = vadd.f32 0.0, %v1180
    %v1182 = vpop.f32.mrf.mxu0
    %v1183 = vadd.f32 0.0, %v1182
    %1184 = vmatprep.mubr.f32.mxu0 0.0
    %1185 = vmatmul.mubr.f32.gmra.mxu0 %v452
    %v1186 = vpop.f32.mrf.mxu0
    %v1187 = vadd.f32 0.0, %v1186
    %v1188 = vpop.f32.mrf.mxu0
    %v1189 = vadd.f32 0.0, %v1188
    %1190 = vmatprep.mubr.f32.mxu0 0.0
    %1191 = vmatmul.mubr.f32.gmra.mxu0 %v455
    %v1192 = vpop.f32.mrf.mxu0
    %v1193 = vadd.f32 0.0, %v1192
    %v1194 = vpop.f32.mrf.mxu0
    %v1195 = vadd.f32 0.0, %v1194
    %1196 = vmatprep.mubr.f32.mxu0 0.0
    %1197 = vmatmul.mubr.f32.gmra.mxu0 %v458
    %v1198 = vpop.f32.mrf.mxu0
    %v1199 = vadd.f32 0.0, %v1198
    %v1200 = vpop.f32.mrf.mxu0
    %v1201 = vadd.f32 0.0, %v1200
    %1202 = vmatprep.mubr.f32.mxu0 0.0
    %1203 = vmatmul.mubr.f32.gmra.mxu0 %v461
    %v1204 = vpop.f32.mrf.mxu0
    %v1205 = vadd.f32 0.0, %v1204
    %v1206 = vpop.f32.mrf.mxu0
    %v1207 = vadd.f32 0.0, %v1206
    %1208 = vmatprep.mubr.f32.mxu0 0.0
    %1209 = vmatmul.mubr.f32.gmra.mxu0 %v464
    %v1210 = vpop.f32.mrf.mxu0
    %v1211 = vadd.f32 0.0, %v1210
    %v1212 = vpop.f32.mrf.mxu0
    %v1213 = vadd.f32 0.0, %v1212
    %1214 = vmatprep.mubr.f32.mxu0 0.0
    %1215 = vmatmul.mubr.f32.gmra.mxu0 %v467
    %v1216 = vpop.f32.mrf.mxu0
    %v1217 = vadd.f32 0.0, %v1216
    %v1218 = vpop.f32.mrf.mxu0
    %v1219 = vadd.f32 0.0, %v1218
    %1220 = vmatprep.mubr.f32.mxu0 0.0
    %1221 = vmatmul.mubr.f32.gmra.mxu0 %v470
    %v1222 = vpop.f32.mrf.mxu0
    %v1223 = vadd.f32 0.0, %v1222
    %v1224 = vpop.f32.mrf.mxu0
    %v1225 = vadd.f32 0.0, %v1224
    %1226 = vmatprep.mubr.f32.mxu0 0.0
    %1227 = vmatmul.mubr.f32.gmra.mxu0 %v473
    %v1228 = vpop.f32.mrf.mxu0
    %v1229 = vadd.f32 0.0, %v1228
    %v1230 = vpop.f32.mrf.mxu0
    %v1231 = vadd.f32 0.0, %v1230
    %1232 = vmatprep.mubr.f32.mxu0 0.0
    %1233 = vmatmul.mubr.f32.gmra.mxu0 %v476
    %v1234 = vpop.f32.mrf.mxu0
    %v1235 = vadd.f32 0.0, %v1234
    %v1236 = vpop.f32.mrf.mxu0
    %v1237 = vadd.f32 0.0, %v1236
    %1238 = vmatprep.mubr.f32.mxu0 0.0
    %1239 = vmatmul.mubr.f32.gmra.mxu0 %v479
    %v1240 = vpop.f32.mrf.mxu0
    %v1241 = vadd.f32 0.0, %v1240
    %v1242 = vpop.f32.mrf.mxu0
    %v1243 = vadd.f32 0.0, %v1242
    %1244 = vmatprep.mubr.f32.mxu0 0.0
    %1245 = vmatmul.mubr.f32.gmra.mxu0 %v482
    %v1246 = vpop.f32.mrf.mxu0
    %v1247 = vadd.f32 0.0, %v1246
    %v1248 = vpop.f32.mrf.mxu0
    %v1249 = vadd.f32 0.0, %v1248
    %1250 = vmatprep.mubr.f32.mxu0 0.0
    %1251 = vmatmul.mubr.f32.gmra.mxu0 %v485
    %v1252 = vpop.f32.mrf.mxu0
    %v1253 = vadd.f32 0.0, %v1252
    %v1254 = vpop.f32.mrf.mxu0
    %v1255 = vadd.f32 0.0, %v1254
    %1256 = vmatprep.mubr.f32.mxu0 0.0
    %1257 = vmatmul.mubr.f32.gmra.mxu0 %v488
    %v1258 = vpop.f32.mrf.mxu0
    %v1259 = vadd.f32 0.0, %v1258
    %v1260 = vpop.f32.mrf.mxu0
    %v1261 = vadd.f32 0.0, %v1260
    %1262 = vmatprep.mubr.f32.mxu0 0.0
    %1263 = vmatmul.mubr.f32.gmra.mxu0 %v491
    %v1264 = vpop.f32.mrf.mxu0
    %v1265 = vadd.f32 0.0, %v1264
    %v1266 = vpop.f32.mrf.mxu0
    %v1267 = vadd.f32 0.0, %v1266
    %1268 = vmatprep.mubr.f32.mxu0 0.0
    %1269 = vmatmul.mubr.f32.gmra.mxu0 %v494
    %v1270 = vpop.f32.mrf.mxu0
    %v1271 = vadd.f32 0.0, %v1270
    %v1272 = vpop.f32.mrf.mxu0
    %v1273 = vadd.f32 0.0, %v1272
    %1274 = vmatprep.mubr.f32.mxu0 0.0
    %1275 = vmatmul.mubr.f32.gmra.mxu0 %v497
    %v1276 = vpop.f32.mrf.mxu0
    %v1277 = vadd.f32 0.0, %v1276
    %v1278 = vpop.f32.mrf.mxu0
    %v1279 = vadd.f32 0.0, %v1278
    %1280 = vmatprep.mubr.f32.mxu0 0.0
    %1281 = vmatmul.mubr.f32.gmra.mxu0 %v500
    %v1282 = vpop.f32.mrf.mxu0
    %v1283 = vadd.f32 0.0, %v1282
    %v1284 = vpop.f32.mrf.mxu0
    %v1285 = vadd.f32 0.0, %v1284
    %1286 = vmatprep.mubr.f32.mxu0 0.0
    %1287 = vmatmul.mubr.f32.gmra.mxu0 %v503
    %v1288 = vpop.f32.mrf.mxu0
    %v1289 = vadd.f32 0.0, %v1288
    %v1290 = vpop.f32.mrf.mxu0
    %v1291 = vadd.f32 0.0, %v1290
    %1292 = vmatprep.mubr.f32.mxu0 0.0
    %1293 = vmatmul.mubr.f32.gmra.mxu0 %v506
    %v1294 = vpop.f32.mrf.mxu0
    %v1295 = vadd.f32 0.0, %v1294
    %v1296 = vpop.f32.mrf.mxu0
    %v1297 = vadd.f32 0.0, %v1296
    %1298 = vmatprep.mubr.f32.mxu0 0.0
    %1299 = vmatmul.mubr.f32.gmra.mxu0 %v509
    %v1300 = vpop.f32.mrf.mxu0
    %v1301 = vadd.f32 0.0, %v1300
    %v1302 = vpop.f32.mrf.mxu0
    %v1303 = vadd.f32 0.0, %v1302
    %1304 = vmatprep.mubr.f32.mxu0 0.0
    %1305 = vmatmul.mubr.f32.gmra.mxu0 %v512
    %v1306 = vpop.f32.mrf.mxu0
    %v1307 = vadd.f32 0.0, %v1306
    %v1308 = vpop.f32.mrf.mxu0
    %v1309 = vadd.f32 0.0, %v1308
    %1310 = vmatprep.mubr.f32.mxu0 0.0
    %1311 = vmatmul.mubr.f32.gmra.mxu0 %v515
    %v1312 = vpop.f32.mrf.mxu0
    %v1313 = vadd.f32 0.0, %v1312
    %v1314 = vpop.f32.mrf.mxu0
    %v1315 = vadd.f32 0.0, %v1314
    %1316 = vmatprep.mubr.f32.mxu0 0.0
    %1317 = vmatmul.mubr.f32.gmra.mxu0 %v518
    %v1318 = vpop.f32.mrf.mxu0
    %v1319 = vadd.f32 0.0, %v1318
    %v1320 = vpop.f32.mrf.mxu0
    %v1321 = vadd.f32 0.0, %v1320
    %1322 = vmatprep.mubr.f32.mxu0 0.0
    %1323 = vmatmul.mubr.f32.gmra.mxu0 %v521
    %v1324 = vpop.f32.mrf.mxu0
    %v1325 = vadd.f32 0.0, %v1324
    %v1326 = vpop.f32.mrf.mxu0
    %v1327 = vadd.f32 0.0, %v1326
    %1328 = vmatprep.mubr.f32.mxu0 0.0
    %1329 = vmatmul.mubr.f32.gmra.mxu0 %v524
    %v1330 = vpop.f32.mrf.mxu0
    %v1331 = vadd.f32 0.0, %v1330
    %v1332 = vpop.f32.mrf.mxu0
    %v1333 = vadd.f32 0.0, %v1332
    %1334 = vmatprep.mubr.f32.mxu0 0.0
    %1335 = vmatmul.mubr.f32.gmra.mxu0 %v527
    %v1336 = vpop.f32.mrf.mxu0
    %v1337 = vadd.f32 0.0, %v1336
    %v1338 = vpop.f32.mrf.mxu0
    %v1339 = vadd.f32 0.0, %v1338
    %1340 = vmatprep.mubr.f32.mxu0 0.0
    %1341 = vmatmul.mubr.f32.gmra.mxu0 %v530
    %v1342 = vpop.f32.mrf.mxu0
    %v1343 = vadd.f32 0.0, %v1342
    %v1344 = vpop.f32.mrf.mxu0
    %v1345 = vadd.f32 0.0, %v1344
    %1346 = vmatprep.mubr.f32.mxu0 0.0
    %1347 = vmatmul.mubr.f32.gmra.mxu0 %v533
    %v1348 = vpop.f32.mrf.mxu0
    %v1349 = vadd.f32 0.0, %v1348
    %v1350 = vpop.f32.mrf.mxu0
    %v1351 = vadd.f32 0.0, %v1350
    %1352 = vmatprep.mubr.f32.mxu0 0.0
    %1353 = vmatmul.mubr.f32.gmra.mxu0 %v536
    %v1354 = vpop.f32.mrf.mxu0
    %v1355 = vadd.f32 0.0, %v1354
    %v1356 = vpop.f32.mrf.mxu0
    %v1357 = vadd.f32 0.0, %v1356
    %1358 = vmatprep.mubr.f32.mxu0 0.0
    %1359 = vmatmul.mubr.f32.gmra.mxu0 %v539
    %v1360 = vpop.f32.mrf.mxu0
    %v1361 = vadd.f32 0.0, %v1360
    %v1362 = vpop.f32.mrf.mxu0
    %v1363 = vadd.f32 0.0, %v1362
    %1364 = vmatprep.mubr.f32.mxu0 0.0
    %1365 = vmatmul.mubr.f32.gmra.mxu0 %v542
    %v1366 = vpop.f32.mrf.mxu0
    %v1367 = vadd.f32 0.0, %v1366
    %v1368 = vpop.f32.mrf.mxu0
    %v1369 = vadd.f32 0.0, %v1368
    %1370 = vmatprep.mubr.f32.mxu0 0.0
    %1371 = vmatmul.mubr.f32.gmra.mxu0 %v545
    %v1372 = vpop.f32.mrf.mxu0
    %v1373 = vadd.f32 0.0, %v1372
    %v1374 = vpop.f32.mrf.mxu0
    %v1375 = vadd.f32 0.0, %v1374
    %1376 = vmatprep.mubr.f32.mxu0 0.0
    %1377 = vmatmul.mubr.f32.gmra.mxu0 %v548
    %v1378 = vpop.f32.mrf.mxu0
    %v1379 = vadd.f32 0.0, %v1378
    %v1380 = vpop.f32.mrf.mxu0
    %v1381 = vadd.f32 0.0, %v1380
    %1382 = vdwg.mxu0
    %1383 = vmatprep.subr.mxu0 0.0
    %1384 = vmatpush1.msra.mxu0 0.0
    %1385 = vmatprep.subr.mxu0 0.0
    %1386 = vmatpush1.msra.mxu0 0.0
    %1387 = vmatprep.subr.mxu0 0.0
    %1388 = vmatpush1.msra.mxu0 0.0
    %1389 = vmatprep.subr.mxu0 0.0
    %1390 = vmatpush1.msra.mxu0 0.0
    %1391 = vmatprep.subr.mxu0 0.0
    %1392 = vmatpush1.msra.mxu0 0.0
    %1393 = vmatprep.subr.mxu0 0.0
    %1394 = vmatpush1.msra.mxu0 0.0
    %1395 = vmatprep.subr.mxu0 0.0
    %1396 = vmatpush1.msra.mxu0 0.0
    %1397 = vmatprep.subr.mxu0 0.0
    %1398 = vmatpush1.msra.mxu0 0.0
    %1399 = vmatprep.subr.mxu0 0.0
    %1400 = vmatpush1.msra.mxu0 0.0
    %1401 = vmatprep.subr.mxu0 0.0
    %1402 = vmatpush1.msra.mxu0 0.0
    %1403 = vmatprep.subr.mxu0 0.0
    %1404 = vmatpush1.msra.mxu0 0.0
    %1405 = vmatprep.subr.mxu0 0.0
    %1406 = vmatpush1.msra.mxu0 0.0
    %1407 = vmatprep.subr.mxu0 0.0
    %1408 = vmatpush1.msra.mxu0 0.0
    %1409 = vmatprep.subr.mxu0 0.0
    %1410 = vmatpush1.msra.mxu0 0.0
    %1411 = vmatprep.subr.mxu0 0.0
    %1412 = vmatpush1.msra.mxu0 %v164
    %1413 = vmatprep.subr.mxu0 0.0
    %1414 = vmatpush1.msra.mxu0 %v161
    %1415 = vmatprep.subr.mxu0 0.0
    %1416 = vmatpush2.msra.mxu0 0.0
    %1417 = vmatprep.subr.mxu0 0.0
    %1418 = vmatpush2.msra.mxu0 0.0
    %1419 = vmatprep.subr.mxu0 0.0
    %1420 = vmatpush2.msra.mxu0 0.0
    %1421 = vmatprep.subr.mxu0 0.0
    %1422 = vmatpush2.msra.mxu0 0.0
    %1423 = vmatprep.subr.mxu0 0.0
    %1424 = vmatpush2.msra.mxu0 0.0
    %1425 = vmatprep.subr.mxu0 0.0
    %1426 = vmatpush2.msra.mxu0 0.0
    %1427 = vmatprep.subr.mxu0 0.0
    %1428 = vmatpush2.msra.mxu0 0.0
    %1429 = vmatprep.subr.mxu0 0.0
    %1430 = vmatpush2.msra.mxu0 0.0
    %1431 = vmatprep.subr.mxu0 0.0
    %1432 = vmatpush2.msra.mxu0 0.0
    %1433 = vmatprep.subr.mxu0 0.0
    %1434 = vmatpush2.msra.mxu0 0.0
    %1435 = vmatprep.subr.mxu0 0.0
    %1436 = vmatpush2.msra.mxu0 0.0
    %1437 = vmatprep.subr.mxu0 0.0
    %1438 = vmatpush2.msra.mxu0 0.0
    %1439 = vmatprep.subr.mxu0 0.0
    %1440 = vmatpush2.msra.mxu0 0.0
    %1441 = vmatprep.subr.mxu0 0.0
    %1442 = vmatpush2.msra.mxu0 0.0
    %1443 = vmatprep.subr.mxu0 0.0
    %1444 = vmatpush2.msra.mxu0 0.0
    %1445 = vmatprep.subr.mxu0 0.0
    %1446 = vmatpush2.msra.mxu0 0.0
    %1447 = vmatprep.mubr.f32.mxu0 0.0
    %1448 = vmatmul.mubr.f32.gmra.mxu0 %v167
    %v1449 = vpop.f32.mrf.mxu0
    %v1450 = vadd.f32 0.0, %v1449
    %v1451 = vpop.f32.mrf.mxu0
    %1452 = vmatprep.mubr.f32.mxu0 0.0
    %1453 = vmatmul.mubr.f32.gmra.mxu0 %v170
    %v1454 = vpop.f32.mrf.mxu0
    %v1455 = vadd.f32 0.0, %v1454
    %v1456 = vpop.f32.mrf.mxu0
    %1457 = vmatprep.mubr.f32.mxu0 0.0
    %1458 = vmatmul.mubr.f32.gmra.mxu0 %v173
    %v1459 = vpop.f32.mrf.mxu0
    %v1460 = vadd.f32 0.0, %v1459
    %v1461 = vpop.f32.mrf.mxu0
    %1462 = vmatprep.mubr.f32.mxu0 0.0
    %1463 = vmatmul.mubr.f32.gmra.mxu0 %v176
    %v1464 = vpop.f32.mrf.mxu0
    %v1465 = vadd.f32 0.0, %v1464
    %v1466 = vpop.f32.mrf.mxu0
    %1467 = vmatprep.mubr.f32.mxu0 0.0
    %1468 = vmatmul.mubr.f32.gmra.mxu0 %v179
    %v1469 = vpop.f32.mrf.mxu0
    %v1470 = vadd.f32 0.0, %v1469
    %v1471 = vpop.f32.mrf.mxu0
    %1472 = vmatprep.mubr.f32.mxu0 0.0
    %1473 = vmatmul.mubr.f32.gmra.mxu0 %v182
    %v1474 = vpop.f32.mrf.mxu0
    %v1475 = vadd.f32 0.0, %v1474
    %v1476 = vpop.f32.mrf.mxu0
    %1477 = vmatprep.mubr.f32.mxu0 0.0
    %1478 = vmatmul.mubr.f32.gmra.mxu0 %v185
    %v1479 = vpop.f32.mrf.mxu0
    %v1480 = vadd.f32 0.0, %v1479
    %v1481 = vpop.f32.mrf.mxu0
    %1482 = vmatprep.mubr.f32.mxu0 0.0
    %1483 = vmatmul.mubr.f32.gmra.mxu0 %v188
    %v1484 = vpop.f32.mrf.mxu0
    %v1485 = vadd.f32 0.0, %v1484
    %v1486 = vpop.f32.mrf.mxu0
    %1487 = vmatprep.mubr.f32.mxu0 0.0
    %1488 = vmatmul.mubr.f32.gmra.mxu0 %v191
    %v1489 = vpop.f32.mrf.mxu0
    %v1490 = vadd.f32 0.0, %v1489
    %v1491 = vpop.f32.mrf.mxu0
    %1492 = vmatprep.mubr.f32.mxu0 0.0
    %1493 = vmatmul.mubr.f32.gmra.mxu0 %v194
    %v1494 = vpop.f32.mrf.mxu0
    %v1495 = vadd.f32 0.0, %v1494
    %v1496 = vpop.f32.mrf.mxu0
    %1497 = vmatprep.mubr.f32.mxu0 0.0
    %1498 = vmatmul.mubr.f32.gmra.mxu0 %v197
    %v1499 = vpop.f32.mrf.mxu0
    %v1500 = vadd.f32 0.0, %v1499
    %v1501 = vpop.f32.mrf.mxu0
    %1502 = vmatprep.mubr.f32.mxu0 0.0
    %1503 = vmatmul.mubr.f32.gmra.mxu0 %v200
    %v1504 = vpop.f32.mrf.mxu0
    %v1505 = vadd.f32 0.0, %v1504
    %v1506 = vpop.f32.mrf.mxu0
    %1507 = vmatprep.mubr.f32.mxu0 0.0
    %1508 = vmatmul.mubr.f32.gmra.mxu0 %v203
    %v1509 = vpop.f32.mrf.mxu0
    %v1510 = vadd.f32 0.0, %v1509
    %v1511 = vpop.f32.mrf.mxu0
    %1512 = vmatprep.mubr.f32.mxu0 0.0
    %1513 = vmatmul.mubr.f32.gmra.mxu0 %v206
    %v1514 = vpop.f32.mrf.mxu0
    %v1515 = vadd.f32 0.0, %v1514
    %v1516 = vpop.f32.mrf.mxu0
    %1517 = vmatprep.mubr.f32.mxu0 0.0
    %1518 = vmatmul.mubr.f32.gmra.mxu0 %v209
    %v1519 = vpop.f32.mrf.mxu0
    %v1520 = vadd.f32 0.0, %v1519
    %v1521 = vpop.f32.mrf.mxu0
    %1522 = vmatprep.mubr.f32.mxu0 0.0
    %1523 = vmatmul.mubr.f32.gmra.mxu0 %v212
    %v1524 = vpop.f32.mrf.mxu0
    %v1525 = vadd.f32 0.0, %v1524
    %v1526 = vpop.f32.mrf.mxu0
    %1527 = vmatprep.mubr.f32.mxu0 0.0
    %1528 = vmatmul.mubr.f32.gmra.mxu0 %v215
    %v1529 = vpop.f32.mrf.mxu0
    %v1530 = vadd.f32 0.0, %v1529
    %v1531 = vpop.f32.mrf.mxu0
    %1532 = vmatprep.mubr.f32.mxu0 0.0
    %1533 = vmatmul.mubr.f32.gmra.mxu0 %v218
    %v1534 = vpop.f32.mrf.mxu0
    %v1535 = vadd.f32 0.0, %v1534
    %v1536 = vpop.f32.mrf.mxu0
    %1537 = vmatprep.mubr.f32.mxu0 0.0
    %1538 = vmatmul.mubr.f32.gmra.mxu0 %v221
    %v1539 = vpop.f32.mrf.mxu0
    %v1540 = vadd.f32 0.0, %v1539
    %v1541 = vpop.f32.mrf.mxu0
    %1542 = vmatprep.mubr.f32.mxu0 0.0
    %1543 = vmatmul.mubr.f32.gmra.mxu0 %v224
    %v1544 = vpop.f32.mrf.mxu0
    %v1545 = vadd.f32 0.0, %v1544
    %v1546 = vpop.f32.mrf.mxu0
    %1547 = vmatprep.mubr.f32.mxu0 0.0
    %1548 = vmatmul.mubr.f32.gmra.mxu0 %v227
    %v1549 = vpop.f32.mrf.mxu0
    %v1550 = vadd.f32 0.0, %v1549
    %v1551 = vpop.f32.mrf.mxu0
    %1552 = vmatprep.mubr.f32.mxu0 0.0
    %1553 = vmatmul.mubr.f32.gmra.mxu0 %v230
    %v1554 = vpop.f32.mrf.mxu0
    %v1555 = vadd.f32 0.0, %v1554
    %v1556 = vpop.f32.mrf.mxu0
    %1557 = vmatprep.mubr.f32.mxu0 0.0
    %1558 = vmatmul.mubr.f32.gmra.mxu0 %v233
    %v1559 = vpop.f32.mrf.mxu0
    %v1560 = vadd.f32 0.0, %v1559
    %v1561 = vpop.f32.mrf.mxu0
    %1562 = vmatprep.mubr.f32.mxu0 0.0
    %1563 = vmatmul.mubr.f32.gmra.mxu0 %v236
    %v1564 = vpop.f32.mrf.mxu0
    %v1565 = vadd.f32 0.0, %v1564
    %v1566 = vpop.f32.mrf.mxu0
    %1567 = vmatprep.mubr.f32.mxu0 0.0
    %1568 = vmatmul.mubr.f32.gmra.mxu0 %v239
    %v1569 = vpop.f32.mrf.mxu0
    %v1570 = vadd.f32 0.0, %v1569
    %v1571 = vpop.f32.mrf.mxu0
    %1572 = vmatprep.mubr.f32.mxu0 0.0
    %1573 = vmatmul.mubr.f32.gmra.mxu0 %v242
    %v1574 = vpop.f32.mrf.mxu0
    %v1575 = vadd.f32 0.0, %v1574
    %v1576 = vpop.f32.mrf.mxu0
    %1577 = vmatprep.mubr.f32.mxu0 0.0
    %1578 = vmatmul.mubr.f32.gmra.mxu0 %v245
    %v1579 = vpop.f32.mrf.mxu0
    %v1580 = vadd.f32 0.0, %v1579
    %v1581 = vpop.f32.mrf.mxu0
    %1582 = vmatprep.mubr.f32.mxu0 0.0
    %1583 = vmatmul.mubr.f32.gmra.mxu0 %v248
    %v1584 = vpop.f32.mrf.mxu0
    %v1585 = vadd.f32 0.0, %v1584
    %v1586 = vpop.f32.mrf.mxu0
    %1587 = vmatprep.mubr.f32.mxu0 0.0
    %1588 = vmatmul.mubr.f32.gmra.mxu0 %v251
    %v1589 = vpop.f32.mrf.mxu0
    %v1590 = vadd.f32 0.0, %v1589
    %v1591 = vpop.f32.mrf.mxu0
    %1592 = vmatprep.mubr.f32.mxu0 0.0
    %1593 = vmatmul.mubr.f32.gmra.mxu0 %v254
    %v1594 = vpop.f32.mrf.mxu0
    %v1595 = vadd.f32 0.0, %v1594
    %v1596 = vpop.f32.mrf.mxu0
    %1597 = vmatprep.mubr.f32.mxu0 0.0
    %1598 = vmatmul.mubr.f32.gmra.mxu0 %v257
    %v1599 = vpop.f32.mrf.mxu0
    %v1600 = vadd.f32 0.0, %v1599
    %v1601 = vpop.f32.mrf.mxu0
    %1602 = vmatprep.mubr.f32.mxu0 0.0
    %1603 = vmatmul.mubr.f32.gmra.mxu0 %v260
    %v1604 = vpop.f32.mrf.mxu0
    %v1605 = vadd.f32 0.0, %v1604
    %v1606 = vpop.f32.mrf.mxu0
    %1607 = vmatprep.mubr.f32.mxu0 0.0
    %1608 = vmatmul.mubr.f32.gmra.mxu0 %v263
    %v1609 = vpop.f32.mrf.mxu0
    %v1610 = vadd.f32 0.0, %v1609
    %v1611 = vpop.f32.mrf.mxu0
    %1612 = vmatprep.mubr.f32.mxu0 0.0
    %1613 = vmatmul.mubr.f32.gmra.mxu0 %v266
    %v1614 = vpop.f32.mrf.mxu0
    %v1615 = vadd.f32 0.0, %v1614
    %v1616 = vpop.f32.mrf.mxu0
    %1617 = vmatprep.mubr.f32.mxu0 0.0
    %1618 = vmatmul.mubr.f32.gmra.mxu0 %v269
    %v1619 = vpop.f32.mrf.mxu0
    %v1620 = vadd.f32 0.0, %v1619
    %v1621 = vpop.f32.mrf.mxu0
    %1622 = vmatprep.mubr.f32.mxu0 0.0
    %1623 = vmatmul.mubr.f32.gmra.mxu0 %v272
    %v1624 = vpop.f32.mrf.mxu0
    %v1625 = vadd.f32 0.0, %v1624
    %v1626 = vpop.f32.mrf.mxu0
    %1627 = vmatprep.mubr.f32.mxu0 0.0
    %1628 = vmatmul.mubr.f32.gmra.mxu0 %v275
    %v1629 = vpop.f32.mrf.mxu0
    %v1630 = vadd.f32 0.0, %v1629
    %v1631 = vpop.f32.mrf.mxu0
    %1632 = vmatprep.mubr.f32.mxu0 0.0
    %1633 = vmatmul.mubr.f32.gmra.mxu0 %v278
    %v1634 = vpop.f32.mrf.mxu0
    %v1635 = vadd.f32 0.0, %v1634
    %v1636 = vpop.f32.mrf.mxu0
    %1637 = vmatprep.mubr.f32.mxu0 0.0
    %1638 = vmatmul.mubr.f32.gmra.mxu0 %v281
    %v1639 = vpop.f32.mrf.mxu0
    %v1640 = vadd.f32 0.0, %v1639
    %v1641 = vpop.f32.mrf.mxu0
    %1642 = vmatprep.mubr.f32.mxu0 0.0
    %1643 = vmatmul.mubr.f32.gmra.mxu0 %v284
    %v1644 = vpop.f32.mrf.mxu0
    %v1645 = vadd.f32 0.0, %v1644
    %v1646 = vpop.f32.mrf.mxu0
    %1647 = vmatprep.mubr.f32.mxu0 0.0
    %1648 = vmatmul.mubr.f32.gmra.mxu0 %v287
    %v1649 = vpop.f32.mrf.mxu0
    %v1650 = vadd.f32 0.0, %v1649
    %v1651 = vpop.f32.mrf.mxu0
    %1652 = vmatprep.mubr.f32.mxu0 0.0
    %1653 = vmatmul.mubr.f32.gmra.mxu0 %v290
    %v1654 = vpop.f32.mrf.mxu0
    %v1655 = vadd.f32 0.0, %v1654
    %v1656 = vpop.f32.mrf.mxu0
    %1657 = vmatprep.mubr.f32.mxu0 0.0
    %1658 = vmatmul.mubr.f32.gmra.mxu0 %v293
    %v1659 = vpop.f32.mrf.mxu0
    %v1660 = vadd.f32 0.0, %v1659
    %v1661 = vpop.f32.mrf.mxu0
    %1662 = vmatprep.mubr.f32.mxu0 0.0
    %1663 = vmatmul.mubr.f32.gmra.mxu0 %v296
    %v1664 = vpop.f32.mrf.mxu0
    %v1665 = vadd.f32 0.0, %v1664
    %v1666 = vpop.f32.mrf.mxu0
    %1667 = vmatprep.mubr.f32.mxu0 0.0
    %1668 = vmatmul.mubr.f32.gmra.mxu0 %v299
    %v1669 = vpop.f32.mrf.mxu0
    %v1670 = vadd.f32 0.0, %v1669
    %v1671 = vpop.f32.mrf.mxu0
    %1672 = vmatprep.mubr.f32.mxu0 0.0
    %1673 = vmatmul.mubr.f32.gmra.mxu0 %v302
    %v1674 = vpop.f32.mrf.mxu0
    %v1675 = vadd.f32 0.0, %v1674
    %v1676 = vpop.f32.mrf.mxu0
    %1677 = vmatprep.mubr.f32.mxu0 0.0
    %1678 = vmatmul.mubr.f32.gmra.mxu0 %v305
    %v1679 = vpop.f32.mrf.mxu0
    %v1680 = vadd.f32 0.0, %v1679
    %v1681 = vpop.f32.mrf.mxu0
    %1682 = vmatprep.mubr.f32.mxu0 0.0
    %1683 = vmatmul.mubr.f32.gmra.mxu0 %v308
    %v1684 = vpop.f32.mrf.mxu0
    %v1685 = vadd.f32 0.0, %v1684
    %v1686 = vpop.f32.mrf.mxu0
    %1687 = vmatprep.mubr.f32.mxu0 0.0
    %1688 = vmatmul.mubr.f32.gmra.mxu0 %v311
    %v1689 = vpop.f32.mrf.mxu0
    %v1690 = vadd.f32 0.0, %v1689
    %v1691 = vpop.f32.mrf.mxu0
    %1692 = vmatprep.mubr.f32.mxu0 0.0
    %1693 = vmatmul.mubr.f32.gmra.mxu0 %v314
    %v1694 = vpop.f32.mrf.mxu0
    %v1695 = vadd.f32 0.0, %v1694
    %v1696 = vpop.f32.mrf.mxu0
    %1697 = vmatprep.mubr.f32.mxu0 0.0
    %1698 = vmatmul.mubr.f32.gmra.mxu0 %v317
    %v1699 = vpop.f32.mrf.mxu0
    %v1700 = vadd.f32 0.0, %v1699
    %v1701 = vpop.f32.mrf.mxu0
    %1702 = vmatprep.mubr.f32.mxu0 0.0
    %1703 = vmatmul.mubr.f32.gmra.mxu0 %v320
    %v1704 = vpop.f32.mrf.mxu0
    %v1705 = vadd.f32 0.0, %v1704
    %v1706 = vpop.f32.mrf.mxu0
    %1707 = vmatprep.mubr.f32.mxu0 0.0
    %1708 = vmatmul.mubr.f32.gmra.mxu0 %v323
    %v1709 = vpop.f32.mrf.mxu0
    %v1710 = vadd.f32 0.0, %v1709
    %v1711 = vpop.f32.mrf.mxu0
    %1712 = vmatprep.mubr.f32.mxu0 0.0
    %1713 = vmatmul.mubr.f32.gmra.mxu0 %v326
    %v1714 = vpop.f32.mrf.mxu0
    %v1715 = vadd.f32 0.0, %v1714
    %v1716 = vpop.f32.mrf.mxu0
    %1717 = vmatprep.mubr.f32.mxu0 0.0
    %1718 = vmatmul.mubr.f32.gmra.mxu0 %v329
    %v1719 = vpop.f32.mrf.mxu0
    %v1720 = vadd.f32 0.0, %v1719
    %v1721 = vpop.f32.mrf.mxu0
    %1722 = vmatprep.mubr.f32.mxu0 0.0
    %1723 = vmatmul.mubr.f32.gmra.mxu0 %v332
    %v1724 = vpop.f32.mrf.mxu0
    %v1725 = vadd.f32 0.0, %v1724
    %v1726 = vpop.f32.mrf.mxu0
    %1727 = vmatprep.mubr.f32.mxu0 0.0
    %1728 = vmatmul.mubr.f32.gmra.mxu0 %v335
    %v1729 = vpop.f32.mrf.mxu0
    %v1730 = vadd.f32 0.0, %v1729
    %v1731 = vpop.f32.mrf.mxu0
    %1732 = vmatprep.mubr.f32.mxu0 0.0
    %1733 = vmatmul.mubr.f32.gmra.mxu0 %v338
    %v1734 = vpop.f32.mrf.mxu0
    %v1735 = vadd.f32 0.0, %v1734
    %v1736 = vpop.f32.mrf.mxu0
    %1737 = vmatprep.mubr.f32.mxu0 0.0
    %1738 = vmatmul.mubr.f32.gmra.mxu0 %v341
    %v1739 = vpop.f32.mrf.mxu0
    %v1740 = vadd.f32 0.0, %v1739
    %v1741 = vpop.f32.mrf.mxu0
    %1742 = vmatprep.mubr.f32.mxu0 0.0
    %1743 = vmatmul.mubr.f32.gmra.mxu0 %v344
    %v1744 = vpop.f32.mrf.mxu0
    %v1745 = vadd.f32 0.0, %v1744
    %v1746 = vpop.f32.mrf.mxu0
    %1747 = vmatprep.mubr.f32.mxu0 0.0
    %1748 = vmatmul.mubr.f32.gmra.mxu0 %v347
    %v1749 = vpop.f32.mrf.mxu0
    %v1750 = vadd.f32 0.0, %v1749
    %v1751 = vpop.f32.mrf.mxu0
    %1752 = vmatprep.mubr.f32.mxu0 0.0
    %1753 = vmatmul.mubr.f32.gmra.mxu0 %v350
    %v1754 = vpop.f32.mrf.mxu0
    %v1755 = vadd.f32 0.0, %v1754
    %v1756 = vpop.f32.mrf.mxu0
    %1757 = vmatprep.mubr.f32.mxu0 0.0
    %1758 = vmatmul.mubr.f32.gmra.mxu0 %v353
    %v1759 = vpop.f32.mrf.mxu0
    %v1760 = vadd.f32 0.0, %v1759
    %v1761 = vpop.f32.mrf.mxu0
    %1762 = vmatprep.mubr.f32.mxu0 0.0
    %1763 = vmatmul.mubr.f32.gmra.mxu0 %v356
    %v1764 = vpop.f32.mrf.mxu0
    %v1765 = vadd.f32 0.0, %v1764
    %v1766 = vpop.f32.mrf.mxu0
    %1767 = vmatprep.mubr.f32.mxu0 0.0
    %1768 = vmatmul.mubr.f32.gmra.mxu0 %v359
    %v1769 = vpop.f32.mrf.mxu0
    %v1770 = vadd.f32 0.0, %v1769
    %v1771 = vpop.f32.mrf.mxu0
    %1772 = vmatprep.mubr.f32.mxu0 0.0
    %1773 = vmatmul.mubr.f32.gmra.mxu0 %v362
    %v1774 = vpop.f32.mrf.mxu0
    %v1775 = vadd.f32 0.0, %v1774
    %v1776 = vpop.f32.mrf.mxu0
    %1777 = vmatprep.mubr.f32.mxu0 0.0
    %1778 = vmatmul.mubr.f32.gmra.mxu0 %v365
    %v1779 = vpop.f32.mrf.mxu0
    %v1780 = vadd.f32 0.0, %v1779
    %v1781 = vpop.f32.mrf.mxu0
    %1782 = vmatprep.mubr.f32.mxu0 0.0
    %1783 = vmatmul.mubr.f32.gmra.mxu0 %v368
    %v1784 = vpop.f32.mrf.mxu0
    %v1785 = vadd.f32 0.0, %v1784
    %v1786 = vpop.f32.mrf.mxu0
    %1787 = vmatprep.mubr.f32.mxu0 0.0
    %1788 = vmatmul.mubr.f32.gmra.mxu0 %v371
    %v1789 = vpop.f32.mrf.mxu0
    %v1790 = vadd.f32 0.0, %v1789
    %v1791 = vpop.f32.mrf.mxu0
    %1792 = vmatprep.mubr.f32.mxu0 0.0
    %1793 = vmatmul.mubr.f32.gmra.mxu0 %v374
    %v1794 = vpop.f32.mrf.mxu0
    %v1795 = vadd.f32 0.0, %v1794
    %v1796 = vpop.f32.mrf.mxu0
    %1797 = vmatprep.mubr.f32.mxu0 0.0
    %1798 = vmatmul.mubr.f32.gmra.mxu0 %v377
    %v1799 = vpop.f32.mrf.mxu0
    %v1800 = vadd.f32 0.0, %v1799
    %v1801 = vpop.f32.mrf.mxu0
    %1802 = vmatprep.mubr.f32.mxu0 0.0
    %1803 = vmatmul.mubr.f32.gmra.mxu0 %v380
    %v1804 = vpop.f32.mrf.mxu0
    %v1805 = vadd.f32 0.0, %v1804
    %v1806 = vpop.f32.mrf.mxu0
    %1807 = vmatprep.mubr.f32.mxu0 0.0
    %1808 = vmatmul.mubr.f32.gmra.mxu0 %v383
    %v1809 = vpop.f32.mrf.mxu0
    %v1810 = vadd.f32 0.0, %v1809
    %v1811 = vpop.f32.mrf.mxu0
    %1812 = vmatprep.mubr.f32.mxu0 0.0
    %1813 = vmatmul.mubr.f32.gmra.mxu0 %v386
    %v1814 = vpop.f32.mrf.mxu0
    %v1815 = vadd.f32 0.0, %v1814
    %v1816 = vpop.f32.mrf.mxu0
    %1817 = vmatprep.mubr.f32.mxu0 0.0
    %1818 = vmatmul.mubr.f32.gmra.mxu0 %v389
    %v1819 = vpop.f32.mrf.mxu0
    %v1820 = vadd.f32 0.0, %v1819
    %v1821 = vpop.f32.mrf.mxu0
    %1822 = vmatprep.mubr.f32.mxu0 0.0
    %1823 = vmatmul.mubr.f32.gmra.mxu0 %v392
    %v1824 = vpop.f32.mrf.mxu0
    %v1825 = vadd.f32 0.0, %v1824
    %v1826 = vpop.f32.mrf.mxu0
    %1827 = vmatprep.mubr.f32.mxu0 0.0
    %1828 = vmatmul.mubr.f32.gmra.mxu0 %v395
    %v1829 = vpop.f32.mrf.mxu0
    %v1830 = vadd.f32 0.0, %v1829
    %v1831 = vpop.f32.mrf.mxu0
    %1832 = vmatprep.mubr.f32.mxu0 0.0
    %1833 = vmatmul.mubr.f32.gmra.mxu0 %v398
    %v1834 = vpop.f32.mrf.mxu0
    %v1835 = vadd.f32 0.0, %v1834
    %v1836 = vpop.f32.mrf.mxu0
    %1837 = vmatprep.mubr.f32.mxu0 0.0
    %1838 = vmatmul.mubr.f32.gmra.mxu0 %v401
    %v1839 = vpop.f32.mrf.mxu0
    %v1840 = vadd.f32 0.0, %v1839
    %v1841 = vpop.f32.mrf.mxu0
    %1842 = vmatprep.mubr.f32.mxu0 0.0
    %1843 = vmatmul.mubr.f32.gmra.mxu0 %v404
    %v1844 = vpop.f32.mrf.mxu0
    %v1845 = vadd.f32 0.0, %v1844
    %v1846 = vpop.f32.mrf.mxu0
    %1847 = vmatprep.mubr.f32.mxu0 0.0
    %1848 = vmatmul.mubr.f32.gmra.mxu0 %v407
    %v1849 = vpop.f32.mrf.mxu0
    %v1850 = vadd.f32 0.0, %v1849
    %v1851 = vpop.f32.mrf.mxu0
    %1852 = vmatprep.mubr.f32.mxu0 0.0
    %1853 = vmatmul.mubr.f32.gmra.mxu0 %v410
    %v1854 = vpop.f32.mrf.mxu0
    %v1855 = vadd.f32 0.0, %v1854
    %v1856 = vpop.f32.mrf.mxu0
    %1857 = vmatprep.mubr.f32.mxu0 0.0
    %1858 = vmatmul.mubr.f32.gmra.mxu0 %v413
    %v1859 = vpop.f32.mrf.mxu0
    %v1860 = vadd.f32 0.0, %v1859
    %v1861 = vpop.f32.mrf.mxu0
    %1862 = vmatprep.mubr.f32.mxu0 0.0
    %1863 = vmatmul.mubr.f32.gmra.mxu0 %v416
    %v1864 = vpop.f32.mrf.mxu0
    %v1865 = vadd.f32 0.0, %v1864
    %v1866 = vpop.f32.mrf.mxu0
    %1867 = vmatprep.mubr.f32.mxu0 0.0
    %1868 = vmatmul.mubr.f32.gmra.mxu0 %v419
    %v1869 = vpop.f32.mrf.mxu0
    %v1870 = vadd.f32 0.0, %v1869
    %v1871 = vpop.f32.mrf.mxu0
    %1872 = vmatprep.mubr.f32.mxu0 0.0
    %1873 = vmatmul.mubr.f32.gmra.mxu0 %v422
    %v1874 = vpop.f32.mrf.mxu0
    %v1875 = vadd.f32 0.0, %v1874
    %v1876 = vpop.f32.mrf.mxu0
    %1877 = vmatprep.mubr.f32.mxu0 0.0
    %1878 = vmatmul.mubr.f32.gmra.mxu0 %v425
    %v1879 = vpop.f32.mrf.mxu0
    %v1880 = vadd.f32 0.0, %v1879
    %v1881 = vpop.f32.mrf.mxu0
    %1882 = vmatprep.mubr.f32.mxu0 0.0
    %1883 = vmatmul.mubr.f32.gmra.mxu0 %v428
    %v1884 = vpop.f32.mrf.mxu0
    %v1885 = vadd.f32 0.0, %v1884
    %v1886 = vpop.f32.mrf.mxu0
    %1887 = vmatprep.mubr.f32.mxu0 0.0
    %1888 = vmatmul.mubr.f32.gmra.mxu0 %v431
    %v1889 = vpop.f32.mrf.mxu0
    %v1890 = vadd.f32 0.0, %v1889
    %v1891 = vpop.f32.mrf.mxu0
    %1892 = vmatprep.mubr.f32.mxu0 0.0
    %1893 = vmatmul.mubr.f32.gmra.mxu0 %v434
    %v1894 = vpop.f32.mrf.mxu0
    %v1895 = vadd.f32 0.0, %v1894
    %v1896 = vpop.f32.mrf.mxu0
    %1897 = vmatprep.mubr.f32.mxu0 0.0
    %1898 = vmatmul.mubr.f32.gmra.mxu0 %v437
    %v1899 = vpop.f32.mrf.mxu0
    %v1900 = vadd.f32 0.0, %v1899
    %v1901 = vpop.f32.mrf.mxu0
    %1902 = vmatprep.mubr.f32.mxu0 0.0
    %1903 = vmatmul.mubr.f32.gmra.mxu0 %v440
    %v1904 = vpop.f32.mrf.mxu0
    %v1905 = vadd.f32 0.0, %v1904
    %v1906 = vpop.f32.mrf.mxu0
    %1907 = vmatprep.mubr.f32.mxu0 0.0
    %1908 = vmatmul.mubr.f32.gmra.mxu0 %v443
    %v1909 = vpop.f32.mrf.mxu0
    %v1910 = vadd.f32 0.0, %v1909
    %v1911 = vpop.f32.mrf.mxu0
    %1912 = vmatprep.mubr.f32.mxu0 0.0
    %1913 = vmatmul.mubr.f32.gmra.mxu0 %v446
    %v1914 = vpop.f32.mrf.mxu0
    %v1915 = vadd.f32 0.0, %v1914
    %v1916 = vpop.f32.mrf.mxu0
    %1917 = vmatprep.mubr.f32.mxu0 0.0
    %1918 = vmatmul.mubr.f32.gmra.mxu0 %v449
    %v1919 = vpop.f32.mrf.mxu0
    %v1920 = vadd.f32 0.0, %v1919
    %v1921 = vpop.f32.mrf.mxu0
    %1922 = vmatprep.mubr.f32.mxu0 0.0
    %1923 = vmatmul.mubr.f32.gmra.mxu0 %v452
    %v1924 = vpop.f32.mrf.mxu0
    %v1925 = vadd.f32 0.0, %v1924
    %v1926 = vpop.f32.mrf.mxu0
    %1927 = vmatprep.mubr.f32.mxu0 0.0
    %1928 = vmatmul.mubr.f32.gmra.mxu0 %v455
    %v1929 = vpop.f32.mrf.mxu0
    %v1930 = vadd.f32 0.0, %v1929
    %v1931 = vpop.f32.mrf.mxu0
    %1932 = vmatprep.mubr.f32.mxu0 0.0
    %1933 = vmatmul.mubr.f32.gmra.mxu0 %v458
    %v1934 = vpop.f32.mrf.mxu0
    %v1935 = vadd.f32 0.0, %v1934
    %v1936 = vpop.f32.mrf.mxu0
    %1937 = vmatprep.mubr.f32.mxu0 0.0
    %1938 = vmatmul.mubr.f32.gmra.mxu0 %v461
    %v1939 = vpop.f32.mrf.mxu0
    %v1940 = vadd.f32 0.0, %v1939
    %v1941 = vpop.f32.mrf.mxu0
    %1942 = vmatprep.mubr.f32.mxu0 0.0
    %1943 = vmatmul.mubr.f32.gmra.mxu0 %v464
    %v1944 = vpop.f32.mrf.mxu0
    %v1945 = vadd.f32 0.0, %v1944
    %v1946 = vpop.f32.mrf.mxu0
    %1947 = vmatprep.mubr.f32.mxu0 0.0
    %1948 = vmatmul.mubr.f32.gmra.mxu0 %v467
    %v1949 = vpop.f32.mrf.mxu0
    %v1950 = vadd.f32 0.0, %v1949
    %v1951 = vpop.f32.mrf.mxu0
    %1952 = vmatprep.mubr.f32.mxu0 0.0
    %1953 = vmatmul.mubr.f32.gmra.mxu0 %v470
    %v1954 = vpop.f32.mrf.mxu0
    %v1955 = vadd.f32 0.0, %v1954
    %v1956 = vpop.f32.mrf.mxu0
    %1957 = vmatprep.mubr.f32.mxu0 0.0
    %1958 = vmatmul.mubr.f32.gmra.mxu0 %v473
    %v1959 = vpop.f32.mrf.mxu0
    %v1960 = vadd.f32 0.0, %v1959
    %v1961 = vpop.f32.mrf.mxu0
    %1962 = vmatprep.mubr.f32.mxu0 0.0
    %1963 = vmatmul.mubr.f32.gmra.mxu0 %v476
    %v1964 = vpop.f32.mrf.mxu0
    %v1965 = vadd.f32 0.0, %v1964
    %v1966 = vpop.f32.mrf.mxu0
    %1967 = vmatprep.mubr.f32.mxu0 0.0
    %1968 = vmatmul.mubr.f32.gmra.mxu0 %v479
    %v1969 = vpop.f32.mrf.mxu0
    %v1970 = vadd.f32 0.0, %v1969
    %v1971 = vpop.f32.mrf.mxu0
    %1972 = vmatprep.mubr.f32.mxu0 0.0
    %1973 = vmatmul.mubr.f32.gmra.mxu0 %v482
    %v1974 = vpop.f32.mrf.mxu0
    %v1975 = vadd.f32 0.0, %v1974
    %v1976 = vpop.f32.mrf.mxu0
    %1977 = vmatprep.mubr.f32.mxu0 0.0
    %1978 = vmatmul.mubr.f32.gmra.mxu0 %v485
    %v1979 = vpop.f32.mrf.mxu0
    %v1980 = vadd.f32 0.0, %v1979
    %v1981 = vpop.f32.mrf.mxu0
    %1982 = vmatprep.mubr.f32.mxu0 0.0
    %1983 = vmatmul.mubr.f32.gmra.mxu0 %v488
    %v1984 = vpop.f32.mrf.mxu0
    %v1985 = vadd.f32 0.0, %v1984
    %v1986 = vpop.f32.mrf.mxu0
    %1987 = vmatprep.mubr.f32.mxu0 0.0
    %1988 = vmatmul.mubr.f32.gmra.mxu0 %v491
    %v1989 = vpop.f32.mrf.mxu0
    %v1990 = vadd.f32 0.0, %v1989
    %v1991 = vpop.f32.mrf.mxu0
    %1992 = vmatprep.mubr.f32.mxu0 0.0
    %1993 = vmatmul.mubr.f32.gmra.mxu0 %v494
    %v1994 = vpop.f32.mrf.mxu0
    %v1995 = vadd.f32 0.0, %v1994
    %v1996 = vpop.f32.mrf.mxu0
    %1997 = vmatprep.mubr.f32.mxu0 0.0
    %1998 = vmatmul.mubr.f32.gmra.mxu0 %v497
    %v1999 = vpop.f32.mrf.mxu0
    %v2000 = vadd.f32 0.0, %v1999
    %v2001 = vpop.f32.mrf.mxu0
    %2002 = vmatprep.mubr.f32.mxu0 0.0
    %2003 = vmatmul.mubr.f32.gmra.mxu0 %v500
    %v2004 = vpop.f32.mrf.mxu0
    %v2005 = vadd.f32 0.0, %v2004
    %v2006 = vpop.f32.mrf.mxu0
    %2007 = vmatprep.mubr.f32.mxu0 0.0
    %2008 = vmatmul.mubr.f32.gmra.mxu0 %v503
    %v2009 = vpop.f32.mrf.mxu0
    %v2010 = vadd.f32 0.0, %v2009
    %v2011 = vpop.f32.mrf.mxu0
    %2012 = vmatprep.mubr.f32.mxu0 0.0
    %2013 = vmatmul.mubr.f32.gmra.mxu0 %v506
    %v2014 = vpop.f32.mrf.mxu0
    %v2015 = vadd.f32 0.0, %v2014
    %v2016 = vpop.f32.mrf.mxu0
    %2017 = vmatprep.mubr.f32.mxu0 0.0
    %2018 = vmatmul.mubr.f32.gmra.mxu0 %v509
    %v2019 = vpop.f32.mrf.mxu0
    %v2020 = vadd.f32 0.0, %v2019
    %v2021 = vpop.f32.mrf.mxu0
    %2022 = vmatprep.mubr.f32.mxu0 0.0
    %2023 = vmatmul.mubr.f32.gmra.mxu0 %v512
    %v2024 = vpop.f32.mrf.mxu0
    %v2025 = vadd.f32 0.0, %v2024
    %v2026 = vpop.f32.mrf.mxu0
    %2027 = vmatprep.mubr.f32.mxu0 0.0
    %2028 = vmatmul.mubr.f32.gmra.mxu0 %v515
    %v2029 = vpop.f32.mrf.mxu0
    %v2030 = vadd.f32 0.0, %v2029
    %v2031 = vpop.f32.mrf.mxu0
    %2032 = vmatprep.mubr.f32.mxu0 0.0
    %2033 = vmatmul.mubr.f32.gmra.mxu0 %v518
    %v2034 = vpop.f32.mrf.mxu0
    %v2035 = vadd.f32 0.0, %v2034
    %v2036 = vpop.f32.mrf.mxu0
    %2037 = vmatprep.mubr.f32.mxu0 0.0
    %2038 = vmatmul.mubr.f32.gmra.mxu0 %v521
    %v2039 = vpop.f32.mrf.mxu0
    %v2040 = vadd.f32 0.0, %v2039
    %v2041 = vpop.f32.mrf.mxu0
    %2042 = vmatprep.mubr.f32.mxu0 0.0
    %2043 = vmatmul.mubr.f32.gmra.mxu0 %v524
    %v2044 = vpop.f32.mrf.mxu0
    %v2045 = vadd.f32 0.0, %v2044
    %v2046 = vpop.f32.mrf.mxu0
    %2047 = vmatprep.mubr.f32.mxu0 0.0
    %2048 = vmatmul.mubr.f32.gmra.mxu0 %v527
    %v2049 = vpop.f32.mrf.mxu0
    %v2050 = vadd.f32 0.0, %v2049
    %v2051 = vpop.f32.mrf.mxu0
    %2052 = vmatprep.mubr.f32.mxu0 0.0
    %2053 = vmatmul.mubr.f32.gmra.mxu0 %v530
    %v2054 = vpop.f32.mrf.mxu0
    %v2055 = vadd.f32 0.0, %v2054
    %v2056 = vpop.f32.mrf.mxu0
    %2057 = vmatprep.mubr.f32.mxu0 0.0
    %2058 = vmatmul.mubr.f32.gmra.mxu0 %v533
    %v2059 = vpop.f32.mrf.mxu0
    %v2060 = vadd.f32 0.0, %v2059
    %v2061 = vpop.f32.mrf.mxu0
    %2062 = vmatprep.mubr.f32.mxu0 0.0
    %2063 = vmatmul.mubr.f32.gmra.mxu0 %v536
    %v2064 = vpop.f32.mrf.mxu0
    %v2065 = vadd.f32 0.0, %v2064
    %v2066 = vpop.f32.mrf.mxu0
    %2067 = vmatprep.mubr.f32.mxu0 0.0
    %2068 = vmatmul.mubr.f32.gmra.mxu0 %v539
    %v2069 = vpop.f32.mrf.mxu0
    %v2070 = vadd.f32 0.0, %v2069
    %v2071 = vpop.f32.mrf.mxu0
    %2072 = vmatprep.mubr.f32.mxu0 0.0
    %2073 = vmatmul.mubr.f32.gmra.mxu0 %v542
    %v2074 = vpop.f32.mrf.mxu0
    %v2075 = vadd.f32 0.0, %v2074
    %v2076 = vpop.f32.mrf.mxu0
    %2077 = vmatprep.mubr.f32.mxu0 0.0
    %2078 = vmatmul.mubr.f32.gmra.mxu0 %v545
    %v2079 = vpop.f32.mrf.mxu0
    %v2080 = vadd.f32 0.0, %v2079
    %v2081 = vpop.f32.mrf.mxu0
    %2082 = vmatprep.mubr.f32.mxu0 0.0
    %2083 = vmatmul.mubr.f32.gmra.mxu0 %v548
    %v2084 = vpop.f32.mrf.mxu0
    %v2085 = vadd.f32 0.0, %v2084
    %v2086 = vpop.f32.mrf.mxu0
    %2087 = vdwg.mxu0
    %v2088 = vmul.f32 %v617, %v617
    %v2089 = vmul.f32 %v619, %v619
    %v2090 = vmul.f32 %v1450, %v1450
    %v2091 = vmul.f32 %v623, %v623
    %v2092 = vmul.f32 %v625, %v625
    %v2093 = vmul.f32 %v1455, %v1455
    %v2094 = vmul.f32 %v629, %v629
    %v2095 = vmul.f32 %v631, %v631
    %v2096 = vmul.f32 %v1460, %v1460
    %v2097 = vmul.f32 %v635, %v635
    %v2098 = vmul.f32 %v637, %v637
    %v2099 = vmul.f32 %v1465, %v1465
    %v2100 = vmul.f32 %v641, %v641
    %v2101 = vmul.f32 %v643, %v643
    %v2102 = vmul.f32 %v1470, %v1470
    %v2103 = vmul.f32 %v647, %v647
    %v2104 = vmul.f32 %v649, %v649
    %v2105 = vmul.f32 %v1475, %v1475
    %v2106 = vmul.f32 %v653, %v653
    %v2107 = vmul.f32 %v655, %v655
    %v2108 = vmul.f32 %v1480, %v1480
    %v2109 = vmul.f32 %v659, %v659
    %v2110 = vmul.f32 %v661, %v661
    %v2111 = vmul.f32 %v1485, %v1485
    %v2112 = vmul.f32 %v665, %v665
    %v2113 = vmul.f32 %v667, %v667
    %v2114 = vmul.f32 %v1490, %v1490
    %v2115 = vmul.f32 %v671, %v671
    %v2116 = vmul.f32 %v673, %v673
    %v2117 = vmul.f32 %v1495, %v1495
    %v2118 = vmul.f32 %v677, %v677
    %v2119 = vmul.f32 %v679, %v679
    %v2120 = vmul.f32 %v1500, %v1500
    %v2121 = vmul.f32 %v683, %v683
    %v2122 = vmul.f32 %v685, %v685
    %v2123 = vmul.f32 %v1505, %v1505
    %v2124 = vmul.f32 %v689, %v689
    %v2125 = vmul.f32 %v691, %v691
    %v2126 = vmul.f32 %v1510, %v1510
    %v2127 = vmul.f32 %v695, %v695
    %v2128 = vmul.f32 %v697, %v697
    %v2129 = vmul.f32 %v1515, %v1515
    %v2130 = vmul.f32 %v701, %v701
    %v2131 = vmul.f32 %v703, %v703
    %v2132 = vmul.f32 %v1520, %v1520
    %v2133 = vmul.f32 %v707, %v707
    %v2134 = vmul.f32 %v709, %v709
    %v2135 = vmul.f32 %v1525, %v1525
    %v2136 = vmul.f32 %v713, %v713
    %v2137 = vmul.f32 %v715, %v715
    %v2138 = vmul.f32 %v1530, %v1530
    %v2139 = vmul.f32 %v719, %v719
    %v2140 = vmul.f32 %v721, %v721
    %v2141 = vmul.f32 %v1535, %v1535
    %v2142 = vmul.f32 %v725, %v725
    %v2143 = vmul.f32 %v727, %v727
    %v2144 = vmul.f32 %v1540, %v1540
    %v2145 = vmul.f32 %v731, %v731
    %v2146 = vmul.f32 %v733, %v733
    %v2147 = vmul.f32 %v1545, %v1545
    %v2148 = vmul.f32 %v737, %v737
    %v2149 = vmul.f32 %v739, %v739
    %v2150 = vmul.f32 %v1550, %v1550
    %v2151 = vmul.f32 %v743, %v743
    %v2152 = vmul.f32 %v745, %v745
    %v2153 = vmul.f32 %v1555, %v1555
    %v2154 = vmul.f32 %v749, %v749
    %v2155 = vmul.f32 %v751, %v751
    %v2156 = vmul.f32 %v1560, %v1560
    %v2157 = vmul.f32 %v755, %v755
    %v2158 = vmul.f32 %v757, %v757
    %v2159 = vmul.f32 %v1565, %v1565
    %v2160 = vmul.f32 %v761, %v761
    %v2161 = vmul.f32 %v763, %v763
    %v2162 = vmul.f32 %v1570, %v1570
    %v2163 = vmul.f32 %v767, %v767
    %v2164 = vmul.f32 %v769, %v769
    %v2165 = vmul.f32 %v1575, %v1575
    %v2166 = vmul.f32 %v773, %v773
    %v2167 = vmul.f32 %v775, %v775
    %v2168 = vmul.f32 %v1580, %v1580
    %v2169 = vmul.f32 %v779, %v779
    %v2170 = vmul.f32 %v781, %v781
    %v2171 = vmul.f32 %v1585, %v1585
    %v2172 = vmul.f32 %v785, %v785
    %v2173 = vmul.f32 %v787, %v787
    %v2174 = vmul.f32 %v1590, %v1590
    %v2175 = vmul.f32 %v791, %v791
    %v2176 = vmul.f32 %v793, %v793
    %v2177 = vmul.f32 %v1595, %v1595
    %v2178 = vmul.f32 %v797, %v797
    %v2179 = vmul.f32 %v799, %v799
    %v2180 = vmul.f32 %v1600, %v1600
    %v2181 = vmul.f32 %v803, %v803
    %v2182 = vmul.f32 %v805, %v805
    %v2183 = vmul.f32 %v1605, %v1605
    %v2184 = vmul.f32 %v809, %v809
    %v2185 = vmul.f32 %v811, %v811
    %v2186 = vmul.f32 %v1610, %v1610
    %v2187 = vmul.f32 %v815, %v815
    %v2188 = vmul.f32 %v817, %v817
    %v2189 = vmul.f32 %v1615, %v1615
    %v2190 = vmul.f32 %v821, %v821
    %v2191 = vmul.f32 %v823, %v823
    %v2192 = vmul.f32 %v1620, %v1620
    %v2193 = vmul.f32 %v827, %v827
    %v2194 = vmul.f32 %v829, %v829
    %v2195 = vmul.f32 %v1625, %v1625
    %v2196 = vmul.f32 %v833, %v833
    %v2197 = vmul.f32 %v835, %v835
    %v2198 = vmul.f32 %v1630, %v1630
    %v2199 = vmul.f32 %v839, %v839
    %v2200 = vmul.f32 %v841, %v841
    %v2201 = vmul.f32 %v1635, %v1635
    %v2202 = vmul.f32 %v845, %v845
    %v2203 = vmul.f32 %v847, %v847
    %v2204 = vmul.f32 %v1640, %v1640
    %v2205 = vmul.f32 %v851, %v851
    %v2206 = vmul.f32 %v853, %v853
    %v2207 = vmul.f32 %v1645, %v1645
    %v2208 = vmul.f32 %v857, %v857
    %v2209 = vmul.f32 %v859, %v859
    %v2210 = vmul.f32 %v1650, %v1650
    %v2211 = vmul.f32 %v863, %v863
    %v2212 = vmul.f32 %v865, %v865
    %v2213 = vmul.f32 %v1655, %v1655
    %v2214 = vmul.f32 %v869, %v869
    %v2215 = vmul.f32 %v871, %v871
    %v2216 = vmul.f32 %v1660, %v1660
    %v2217 = vmul.f32 %v875, %v875
    %v2218 = vmul.f32 %v877, %v877
    %v2219 = vmul.f32 %v1665, %v1665
    %v2220 = vmul.f32 %v881, %v881
    %v2221 = vmul.f32 %v883, %v883
    %v2222 = vmul.f32 %v1670, %v1670
    %v2223 = vmul.f32 %v887, %v887
    %v2224 = vmul.f32 %v889, %v889
    %v2225 = vmul.f32 %v1675, %v1675
    %v2226 = vmul.f32 %v893, %v893
    %v2227 = vmul.f32 %v895, %v895
    %v2228 = vmul.f32 %v1680, %v1680
    %v2229 = vmul.f32 %v899, %v899
    %v2230 = vmul.f32 %v901, %v901
    %v2231 = vmul.f32 %v1685, %v1685
    %v2232 = vmul.f32 %v905, %v905
    %v2233 = vmul.f32 %v907, %v907
    %v2234 = vmul.f32 %v1690, %v1690
    %v2235 = vmul.f32 %v911, %v911
    %v2236 = vmul.f32 %v913, %v913
    %v2237 = vmul.f32 %v1695, %v1695
    %v2238 = vmul.f32 %v917, %v917
    %v2239 = vmul.f32 %v919, %v919
    %v2240 = vmul.f32 %v1700, %v1700
    %v2241 = vmul.f32 %v923, %v923
    %v2242 = vmul.f32 %v925, %v925
    %v2243 = vmul.f32 %v1705, %v1705
    %v2244 = vmul.f32 %v929, %v929
    %v2245 = vmul.f32 %v931, %v931
    %v2246 = vmul.f32 %v1710, %v1710
    %v2247 = vmul.f32 %v935, %v935
    %v2248 = vmul.f32 %v937, %v937
    %v2249 = vmul.f32 %v1715, %v1715
    %v2250 = vmul.f32 %v941, %v941
    %v2251 = vmul.f32 %v943, %v943
    %v2252 = vmul.f32 %v1720, %v1720
    %v2253 = vmul.f32 %v947, %v947
    %v2254 = vmul.f32 %v949, %v949
    %v2255 = vmul.f32 %v1725, %v1725
    %v2256 = vmul.f32 %v953, %v953
    %v2257 = vmul.f32 %v955, %v955
    %v2258 = vmul.f32 %v1730, %v1730
    %v2259 = vmul.f32 %v959, %v959
    %v2260 = vmul.f32 %v961, %v961
    %v2261 = vmul.f32 %v1735, %v1735
    %v2262 = vmul.f32 %v965, %v965
    %v2263 = vmul.f32 %v967, %v967
    %v2264 = vmul.f32 %v1740, %v1740
    %v2265 = vmul.f32 %v971, %v971
    %v2266 = vmul.f32 %v973, %v973
    %v2267 = vmul.f32 %v1745, %v1745
    %v2268 = vmul.f32 %v977, %v977
    %v2269 = vmul.f32 %v979, %v979
    %v2270 = vmul.f32 %v1750, %v1750
    %v2271 = vmul.f32 %v983, %v983
    %v2272 = vmul.f32 %v985, %v985
    %v2273 = vmul.f32 %v1755, %v1755
    %v2274 = vmul.f32 %v989, %v989
    %v2275 = vmul.f32 %v991, %v991
    %v2276 = vmul.f32 %v1760, %v1760
    %v2277 = vmul.f32 %v995, %v995
    %v2278 = vmul.f32 %v997, %v997
    %v2279 = vmul.f32 %v1765, %v1765
    %v2280 = vmul.f32 %v1001, %v1001
    %v2281 = vmul.f32 %v1003, %v1003
    %v2282 = vmul.f32 %v1770, %v1770
    %v2283 = vmul.f32 %v1007, %v1007
    %v2284 = vmul.f32 %v1009, %v1009
    %v2285 = vmul.f32 %v1775, %v1775
    %v2286 = vmul.f32 %v1013, %v1013
    %v2287 = vmul.f32 %v1015, %v1015
    %v2288 = vmul.f32 %v1780, %v1780
    %v2289 = vmul.f32 %v1019, %v1019
    %v2290 = vmul.f32 %v1021, %v1021
    %v2291 = vmul.f32 %v1785, %v1785
    %v2292 = vmul.f32 %v1025, %v1025
    %v2293 = vmul.f32 %v1027, %v1027
    %v2294 = vmul.f32 %v1790, %v1790
    %v2295 = vmul.f32 %v1031, %v1031
    %v2296 = vmul.f32 %v1033, %v1033
    %v2297 = vmul.f32 %v1795, %v1795
    %v2298 = vmul.f32 %v1037, %v1037
    %v2299 = vmul.f32 %v1039, %v1039
    %v2300 = vmul.f32 %v1800, %v1800
    %v2301 = vmul.f32 %v1043, %v1043
    %v2302 = vmul.f32 %v1045, %v1045
    %v2303 = vmul.f32 %v1805, %v1805
    %v2304 = vmul.f32 %v1049, %v1049
    %v2305 = vmul.f32 %v1051, %v1051
    %v2306 = vmul.f32 %v1810, %v1810
    %v2307 = vmul.f32 %v1055, %v1055
    %v2308 = vmul.f32 %v1057, %v1057
    %v2309 = vmul.f32 %v1815, %v1815
    %v2310 = vmul.f32 %v1061, %v1061
    %v2311 = vmul.f32 %v1063, %v1063
    %v2312 = vmul.f32 %v1820, %v1820
    %v2313 = vmul.f32 %v1067, %v1067
    %v2314 = vmul.f32 %v1069, %v1069
    %v2315 = vmul.f32 %v1825, %v1825
    %v2316 = vmul.f32 %v1073, %v1073
    %v2317 = vmul.f32 %v1075, %v1075
    %v2318 = vmul.f32 %v1830, %v1830
    %v2319 = vmul.f32 %v1079, %v1079
    %v2320 = vmul.f32 %v1081, %v1081
    %v2321 = vmul.f32 %v1835, %v1835
    %v2322 = vmul.f32 %v1085, %v1085
    %v2323 = vmul.f32 %v1087, %v1087
    %v2324 = vmul.f32 %v1840, %v1840
    %v2325 = vmul.f32 %v1091, %v1091
    %v2326 = vmul.f32 %v1093, %v1093
    %v2327 = vmul.f32 %v1845, %v1845
    %v2328 = vmul.f32 %v1097, %v1097
    %v2329 = vmul.f32 %v1099, %v1099
    %v2330 = vmul.f32 %v1850, %v1850
    %v2331 = vmul.f32 %v1103, %v1103
    %v2332 = vmul.f32 %v1105, %v1105
    %v2333 = vmul.f32 %v1855, %v1855
    %v2334 = vmul.f32 %v1109, %v1109
    %v2335 = vmul.f32 %v1111, %v1111
    %v2336 = vmul.f32 %v1860, %v1860
    %v2337 = vmul.f32 %v1115, %v1115
    %v2338 = vmul.f32 %v1117, %v1117
    %v2339 = vmul.f32 %v1865, %v1865
    %v2340 = vmul.f32 %v1121, %v1121
    %v2341 = vmul.f32 %v1123, %v1123
    %v2342 = vmul.f32 %v1870, %v1870
    %v2343 = vmul.f32 %v1127, %v1127
    %v2344 = vmul.f32 %v1129, %v1129
    %v2345 = vmul.f32 %v1875, %v1875
    %v2346 = vmul.f32 %v1133, %v1133
    %v2347 = vmul.f32 %v1135, %v1135
    %v2348 = vmul.f32 %v1880, %v1880
    %v2349 = vmul.f32 %v1139, %v1139
    %v2350 = vmul.f32 %v1141, %v1141
    %v2351 = vmul.f32 %v1885, %v1885
    %v2352 = vmul.f32 %v1145, %v1145
    %v2353 = vmul.f32 %v1147, %v1147
    %v2354 = vmul.f32 %v1890, %v1890
    %v2355 = vmul.f32 %v1151, %v1151
    %v2356 = vmul.f32 %v1153, %v1153
    %v2357 = vmul.f32 %v1895, %v1895
    %v2358 = vmul.f32 %v1157, %v1157
    %v2359 = vmul.f32 %v1159, %v1159
    %v2360 = vmul.f32 %v1900, %v1900
    %v2361 = vmul.f32 %v1163, %v1163
    %v2362 = vmul.f32 %v1165, %v1165
    %v2363 = vmul.f32 %v1905, %v1905
    %v2364 = vmul.f32 %v1169, %v1169
    %v2365 = vmul.f32 %v1171, %v1171
    %v2366 = vmul.f32 %v1910, %v1910
    %v2367 = vmul.f32 %v1175, %v1175
    %v2368 = vmul.f32 %v1177, %v1177
    %v2369 = vmul.f32 %v1915, %v1915
    %v2370 = vmul.f32 %v1181, %v1181
    %v2371 = vmul.f32 %v1183, %v1183
    %v2372 = vmul.f32 %v1920, %v1920
    %v2373 = vmul.f32 %v1187, %v1187
    %v2374 = vmul.f32 %v1189, %v1189
    %v2375 = vmul.f32 %v1925, %v1925
    %v2376 = vmul.f32 %v1193, %v1193
    %v2377 = vmul.f32 %v1195, %v1195
    %v2378 = vmul.f32 %v1930, %v1930
    %v2379 = vmul.f32 %v1199, %v1199
    %v2380 = vmul.f32 %v1201, %v1201
    %v2381 = vmul.f32 %v1935, %v1935
    %v2382 = vmul.f32 %v1205, %v1205
    %v2383 = vmul.f32 %v1207, %v1207
    %v2384 = vmul.f32 %v1940, %v1940
    %v2385 = vmul.f32 %v1211, %v1211
    %v2386 = vmul.f32 %v1213, %v1213
    %v2387 = vmul.f32 %v1945, %v1945
    %v2388 = vmul.f32 %v1217, %v1217
    %v2389 = vmul.f32 %v1219, %v1219
    %v2390 = vmul.f32 %v1950, %v1950
    %v2391 = vmul.f32 %v1223, %v1223
    %v2392 = vmul.f32 %v1225, %v1225
    %v2393 = vmul.f32 %v1955, %v1955
    %v2394 = vmul.f32 %v1229, %v1229
    %v2395 = vmul.f32 %v1231, %v1231
    %v2396 = vmul.f32 %v1960, %v1960
    %v2397 = vmul.f32 %v1235, %v1235
    %v2398 = vmul.f32 %v1237, %v1237
    %v2399 = vmul.f32 %v1965, %v1965
    %v2400 = vmul.f32 %v1241, %v1241
    %v2401 = vmul.f32 %v1243, %v1243
    %v2402 = vmul.f32 %v1970, %v1970
    %v2403 = vmul.f32 %v1247, %v1247
    %v2404 = vmul.f32 %v1249, %v1249
    %v2405 = vmul.f32 %v1975, %v1975
    %v2406 = vmul.f32 %v1253, %v1253
    %v2407 = vmul.f32 %v1255, %v1255
    %v2408 = vmul.f32 %v1980, %v1980
    %v2409 = vmul.f32 %v1259, %v1259
    %v2410 = vmul.f32 %v1261, %v1261
    %v2411 = vmul.f32 %v1985, %v1985
    %v2412 = vmul.f32 %v1265, %v1265
    %v2413 = vmul.f32 %v1267, %v1267
    %v2414 = vmul.f32 %v1990, %v1990
    %v2415 = vmul.f32 %v1271, %v1271
    %v2416 = vmul.f32 %v1273, %v1273
    %v2417 = vmul.f32 %v1995, %v1995
    %v2418 = vmul.f32 %v1277, %v1277
    %v2419 = vmul.f32 %v1279, %v1279
    %v2420 = vmul.f32 %v2000, %v2000
    %v2421 = vmul.f32 %v1283, %v1283
    %v2422 = vmul.f32 %v1285, %v1285
    %v2423 = vmul.f32 %v2005, %v2005
    %v2424 = vmul.f32 %v1289, %v1289
    %v2425 = vmul.f32 %v1291, %v1291
    %v2426 = vmul.f32 %v2010, %v2010
    %v2427 = vmul.f32 %v1295, %v1295
    %v2428 = vmul.f32 %v1297, %v1297
    %v2429 = vmul.f32 %v2015, %v2015
    %v2430 = vmul.f32 %v1301, %v1301
    %v2431 = vmul.f32 %v1303, %v1303
    %v2432 = vmul.f32 %v2020, %v2020
    %v2433 = vmul.f32 %v1307, %v1307
    %v2434 = vmul.f32 %v1309, %v1309
    %v2435 = vmul.f32 %v2025, %v2025
    %v2436 = vmul.f32 %v1313, %v1313
    %v2437 = vmul.f32 %v1315, %v1315
    %v2438 = vmul.f32 %v2030, %v2030
    %v2439 = vmul.f32 %v1319, %v1319
    %v2440 = vmul.f32 %v1321, %v1321
    %v2441 = vmul.f32 %v2035, %v2035
    %v2442 = vmul.f32 %v1325, %v1325
    %v2443 = vmul.f32 %v1327, %v1327
    %v2444 = vmul.f32 %v2040, %v2040
    %v2445 = vmul.f32 %v1331, %v1331
    %v2446 = vmul.f32 %v1333, %v1333
    %v2447 = vmul.f32 %v2045, %v2045
    %v2448 = vmul.f32 %v1337, %v1337
    %v2449 = vmul.f32 %v1339, %v1339
    %v2450 = vmul.f32 %v2050, %v2050
    %v2451 = vmul.f32 %v1343, %v1343
    %v2452 = vmul.f32 %v1345, %v1345
    %v2453 = vmul.f32 %v2055, %v2055
    %v2454 = vmul.f32 %v1349, %v1349
    %v2455 = vmul.f32 %v1351, %v1351
    %v2456 = vmul.f32 %v2060, %v2060
    %v2457 = vmul.f32 %v1355, %v1355
    %v2458 = vmul.f32 %v1357, %v1357
    %v2459 = vmul.f32 %v2065, %v2065
    %v2460 = vmul.f32 %v1361, %v1361
    %v2461 = vmul.f32 %v1363, %v1363
    %v2462 = vmul.f32 %v2070, %v2070
    %v2463 = vmul.f32 %v1367, %v1367
    %v2464 = vmul.f32 %v1369, %v1369
    %v2465 = vmul.f32 %v2075, %v2075
    %v2466 = vmul.f32 %v1373, %v1373
    %v2467 = vmul.f32 %v1375, %v1375
    %v2468 = vmul.f32 %v2080, %v2080
    %v2469 = vmul.f32 %v1379, %v1379
    %v2470 = vmul.f32 %v1381, %v1381
    %v2471 = vmul.f32 %v2085, %v2085
    %v2472 = vadd.f32 %v2088, %v2089
    %2473 = vadd.xlane.f32.xlu0 %v2472
    %v2474 = vpop.xlane.xlu0 %2473
    %v2475 = vadd.f32 %v2091, %v2092
    %2476 = vadd.xlane.f32.xlu0 %v2475
    %v2477 = vpop.xlane.xlu0 %2476
    %v2478 = vadd.f32 %v2094, %v2095
    %2479 = vadd.xlane.f32.xlu0 %v2478
    %v2480 = vpop.xlane.xlu0 %2479
    %v2481 = vadd.f32 %v2097, %v2098
    %2482 = vadd.xlane.f32.xlu0 %v2481
    %v2483 = vpop.xlane.xlu0 %2482
    %v2484 = vadd.f32 %v2100, %v2101
    %2485 = vadd.xlane.f32.xlu0 %v2484
    %v2486 = vpop.xlane.xlu0 %2485
    %v2487 = vadd.f32 %v2103, %v2104
    %2488 = vadd.xlane.f32.xlu0 %v2487
    %v2489 = vpop.xlane.xlu0 %2488
    %v2490 = vadd.f32 %v2106, %v2107
    %2491 = vadd.xlane.f32.xlu0 %v2490
    %v2492 = vpop.xlane.xlu0 %2491
    %v2493 = vadd.f32 %v2109, %v2110
    %2494 = vadd.xlane.f32.xlu0 %v2493
    %v2495 = vpop.xlane.xlu0 %2494
    %v2496 = vadd.f32 %v2112, %v2113
    %2497 = vadd.xlane.f32.xlu0 %v2496
    %v2498 = vpop.xlane.xlu0 %2497
    %v2499 = vadd.f32 %v2115, %v2116
    %2500 = vadd.xlane.f32.xlu0 %v2499
    %v2501 = vpop.xlane.xlu0 %2500
    %v2502 = vadd.f32 %v2118, %v2119
    %2503 = vadd.xlane.f32.xlu0 %v2502
    %v2504 = vpop.xlane.xlu0 %2503
    %v2505 = vadd.f32 %v2121, %v2122
    %2506 = vadd.xlane.f32.xlu0 %v2505
    %v2507 = vpop.xlane.xlu0 %2506
    %v2508 = vadd.f32 %v2124, %v2125
    %2509 = vadd.xlane.f32.xlu0 %v2508
    %v2510 = vpop.xlane.xlu0 %2509
    %v2511 = vadd.f32 %v2127, %v2128
    %2512 = vadd.xlane.f32.xlu0 %v2511
    %v2513 = vpop.xlane.xlu0 %2512
    %v2514 = vadd.f32 %v2130, %v2131
    %2515 = vadd.xlane.f32.xlu0 %v2514
    %v2516 = vpop.xlane.xlu0 %2515
    %v2517 = vadd.f32 %v2133, %v2134
    %2518 = vadd.xlane.f32.xlu0 %v2517
    %v2519 = vpop.xlane.xlu0 %2518
    %v2520 = vadd.f32 %v2136, %v2137
    %2521 = vadd.xlane.f32.xlu0 %v2520
    %v2522 = vpop.xlane.xlu0 %2521
    %v2523 = vadd.f32 %v2139, %v2140
    %2524 = vadd.xlane.f32.xlu0 %v2523
    %v2525 = vpop.xlane.xlu0 %2524
    %v2526 = vadd.f32 %v2142, %v2143
    %2527 = vadd.xlane.f32.xlu0 %v2526
    %v2528 = vpop.xlane.xlu0 %2527
    %v2529 = vadd.f32 %v2145, %v2146
    %2530 = vadd.xlane.f32.xlu0 %v2529
    %v2531 = vpop.xlane.xlu0 %2530
    %v2532 = vadd.f32 %v2148, %v2149
    %2533 = vadd.xlane.f32.xlu0 %v2532
    %v2534 = vpop.xlane.xlu0 %2533
    %v2535 = vadd.f32 %v2151, %v2152
    %2536 = vadd.xlane.f32.xlu0 %v2535
    %v2537 = vpop.xlane.xlu0 %2536
    %v2538 = vadd.f32 %v2154, %v2155
    %2539 = vadd.xlane.f32.xlu0 %v2538
    %v2540 = vpop.xlane.xlu0 %2539
    %v2541 = vadd.f32 %v2157, %v2158
    %2542 = vadd.xlane.f32.xlu0 %v2541
    %v2543 = vpop.xlane.xlu0 %2542
    %v2544 = vadd.f32 %v2160, %v2161
    %2545 = vadd.xlane.f32.xlu0 %v2544
    %v2546 = vpop.xlane.xlu0 %2545
    %v2547 = vadd.f32 %v2163, %v2164
    %2548 = vadd.xlane.f32.xlu0 %v2547
    %v2549 = vpop.xlane.xlu0 %2548
    %v2550 = vadd.f32 %v2166, %v2167
    %2551 = vadd.xlane.f32.xlu0 %v2550
    %v2552 = vpop.xlane.xlu0 %2551
    %v2553 = vadd.f32 %v2169, %v2170
    %2554 = vadd.xlane.f32.xlu0 %v2553
    %v2555 = vpop.xlane.xlu0 %2554
    %v2556 = vadd.f32 %v2172, %v2173
    %2557 = vadd.xlane.f32.xlu0 %v2556
    %v2558 = vpop.xlane.xlu0 %2557
    %v2559 = vadd.f32 %v2175, %v2176
    %2560 = vadd.xlane.f32.xlu0 %v2559
    %v2561 = vpop.xlane.xlu0 %2560
    %v2562 = vadd.f32 %v2178, %v2179
    %2563 = vadd.xlane.f32.xlu0 %v2562
    %v2564 = vpop.xlane.xlu0 %2563
    %v2565 = vadd.f32 %v2181, %v2182
    %2566 = vadd.xlane.f32.xlu0 %v2565
    %v2567 = vpop.xlane.xlu0 %2566
    %v2568 = vadd.f32 %v2184, %v2185
    %2569 = vadd.xlane.f32.xlu0 %v2568
    %v2570 = vpop.xlane.xlu0 %2569
    %v2571 = vadd.f32 %v2187, %v2188
    %2572 = vadd.xlane.f32.xlu0 %v2571
    %v2573 = vpop.xlane.xlu0 %2572
    %v2574 = vadd.f32 %v2190, %v2191
    %2575 = vadd.xlane.f32.xlu0 %v2574
    %v2576 = vpop.xlane.xlu0 %2575
    %v2577 = vadd.f32 %v2193, %v2194
    %2578 = vadd.xlane.f32.xlu0 %v2577
    %v2579 = vpop.xlane.xlu0 %2578
    %v2580 = vadd.f32 %v2196, %v2197
    %2581 = vadd.xlane.f32.xlu0 %v2580
    %v2582 = vpop.xlane.xlu0 %2581
    %v2583 = vadd.f32 %v2199, %v2200
    %2584 = vadd.xlane.f32.xlu0 %v2583
    %v2585 = vpop.xlane.xlu0 %2584
    %v2586 = vadd.f32 %v2202, %v2203
    %2587 = vadd.xlane.f32.xlu0 %v2586
    %v2588 = vpop.xlane.xlu0 %2587
    %v2589 = vadd.f32 %v2205, %v2206
    %2590 = vadd.xlane.f32.xlu0 %v2589
    %v2591 = vpop.xlane.xlu0 %2590
    %v2592 = vadd.f32 %v2208, %v2209
    %2593 = vadd.xlane.f32.xlu0 %v2592
    %v2594 = vpop.xlane.xlu0 %2593
    %v2595 = vadd.f32 %v2211, %v2212
    %2596 = vadd.xlane.f32.xlu0 %v2595
    %v2597 = vpop.xlane.xlu0 %2596
    %v2598 = vadd.f32 %v2214, %v2215
    %2599 = vadd.xlane.f32.xlu0 %v2598
    %v2600 = vpop.xlane.xlu0 %2599
    %v2601 = vadd.f32 %v2217, %v2218
    %2602 = vadd.xlane.f32.xlu0 %v2601
    %v2603 = vpop.xlane.xlu0 %2602
    %v2604 = vadd.f32 %v2220, %v2221
    %2605 = vadd.xlane.f32.xlu0 %v2604
    %v2606 = vpop.xlane.xlu0 %2605
    %v2607 = vadd.f32 %v2223, %v2224
    %2608 = vadd.xlane.f32.xlu0 %v2607
    %v2609 = vpop.xlane.xlu0 %2608
    %v2610 = vadd.f32 %v2226, %v2227
    %2611 = vadd.xlane.f32.xlu0 %v2610
    %v2612 = vpop.xlane.xlu0 %2611
    %v2613 = vadd.f32 %v2229, %v2230
    %2614 = vadd.xlane.f32.xlu0 %v2613
    %v2615 = vpop.xlane.xlu0 %2614
    %v2616 = vadd.f32 %v2232, %v2233
    %2617 = vadd.xlane.f32.xlu0 %v2616
    %v2618 = vpop.xlane.xlu0 %2617
    %v2619 = vadd.f32 %v2235, %v2236
    %2620 = vadd.xlane.f32.xlu0 %v2619
    %v2621 = vpop.xlane.xlu0 %2620
    %v2622 = vadd.f32 %v2238, %v2239
    %2623 = vadd.xlane.f32.xlu0 %v2622
    %v2624 = vpop.xlane.xlu0 %2623
    %v2625 = vadd.f32 %v2241, %v2242
    %2626 = vadd.xlane.f32.xlu0 %v2625
    %v2627 = vpop.xlane.xlu0 %2626
    %v2628 = vadd.f32 %v2244, %v2245
    %2629 = vadd.xlane.f32.xlu0 %v2628
    %v2630 = vpop.xlane.xlu0 %2629
    %v2631 = vadd.f32 %v2247, %v2248
    %2632 = vadd.xlane.f32.xlu0 %v2631
    %v2633 = vpop.xlane.xlu0 %2632
    %v2634 = vadd.f32 %v2250, %v2251
    %2635 = vadd.xlane.f32.xlu0 %v2634
    %v2636 = vpop.xlane.xlu0 %2635
    %v2637 = vadd.f32 %v2253, %v2254
    %2638 = vadd.xlane.f32.xlu0 %v2637
    %v2639 = vpop.xlane.xlu0 %2638
    %v2640 = vadd.f32 %v2256, %v2257
    %2641 = vadd.xlane.f32.xlu0 %v2640
    %v2642 = vpop.xlane.xlu0 %2641
    %v2643 = vadd.f32 %v2259, %v2260
    %2644 = vadd.xlane.f32.xlu0 %v2643
    %v2645 = vpop.xlane.xlu0 %2644
    %v2646 = vadd.f32 %v2262, %v2263
    %2647 = vadd.xlane.f32.xlu0 %v2646
    %v2648 = vpop.xlane.xlu0 %2647
    %v2649 = vadd.f32 %v2265, %v2266
    %2650 = vadd.xlane.f32.xlu0 %v2649
    %v2651 = vpop.xlane.xlu0 %2650
    %v2652 = vadd.f32 %v2268, %v2269
    %2653 = vadd.xlane.f32.xlu0 %v2652
    %v2654 = vpop.xlane.xlu0 %2653
    %v2655 = vadd.f32 %v2271, %v2272
    %2656 = vadd.xlane.f32.xlu0 %v2655
    %v2657 = vpop.xlane.xlu0 %2656
    %v2658 = vadd.f32 %v2274, %v2275
    %2659 = vadd.xlane.f32.xlu0 %v2658
    %v2660 = vpop.xlane.xlu0 %2659
    %v2661 = vadd.f32 %v2277, %v2278
    %2662 = vadd.xlane.f32.xlu0 %v2661
    %v2663 = vpop.xlane.xlu0 %2662
    %v2664 = vadd.f32 %v2280, %v2281
    %2665 = vadd.xlane.f32.xlu0 %v2664
    %v2666 = vpop.xlane.xlu0 %2665
    %v2667 = vadd.f32 %v2283, %v2284
    %2668 = vadd.xlane.f32.xlu0 %v2667
    %v2669 = vpop.xlane.xlu0 %2668
    %v2670 = vadd.f32 %v2286, %v2287
    %2671 = vadd.xlane.f32.xlu0 %v2670
    %v2672 = vpop.xlane.xlu0 %2671
    %v2673 = vadd.f32 %v2289, %v2290
    %2674 = vadd.xlane.f32.xlu0 %v2673
    %v2675 = vpop.xlane.xlu0 %2674
    %v2676 = vadd.f32 %v2292, %v2293
    %2677 = vadd.xlane.f32.xlu0 %v2676
    %v2678 = vpop.xlane.xlu0 %2677
    %v2679 = vadd.f32 %v2295, %v2296
    %2680 = vadd.xlane.f32.xlu0 %v2679
    %v2681 = vpop.xlane.xlu0 %2680
    %v2682 = vadd.f32 %v2298, %v2299
    %2683 = vadd.xlane.f32.xlu0 %v2682
    %v2684 = vpop.xlane.xlu0 %2683
    %v2685 = vadd.f32 %v2301, %v2302
    %2686 = vadd.xlane.f32.xlu0 %v2685
    %v2687 = vpop.xlane.xlu0 %2686
    %v2688 = vadd.f32 %v2304, %v2305
    %2689 = vadd.xlane.f32.xlu0 %v2688
    %v2690 = vpop.xlane.xlu0 %2689
    %v2691 = vadd.f32 %v2307, %v2308
    %2692 = vadd.xlane.f32.xlu0 %v2691
    %v2693 = vpop.xlane.xlu0 %2692
    %v2694 = vadd.f32 %v2310, %v2311
    %2695 = vadd.xlane.f32.xlu0 %v2694
    %v2696 = vpop.xlane.xlu0 %2695
    %v2697 = vadd.f32 %v2313, %v2314
    %2698 = vadd.xlane.f32.xlu0 %v2697
    %v2699 = vpop.xlane.xlu0 %2698
    %v2700 = vadd.f32 %v2316, %v2317
    %2701 = vadd.xlane.f32.xlu0 %v2700
    %v2702 = vpop.xlane.xlu0 %2701
    %v2703 = vadd.f32 %v2319, %v2320
    %2704 = vadd.xlane.f32.xlu0 %v2703
    %v2705 = vpop.xlane.xlu0 %2704
    %v2706 = vadd.f32 %v2322, %v2323
    %2707 = vadd.xlane.f32.xlu0 %v2706
    %v2708 = vpop.xlane.xlu0 %2707
    %v2709 = vadd.f32 %v2325, %v2326
    %2710 = vadd.xlane.f32.xlu0 %v2709
    %v2711 = vpop.xlane.xlu0 %2710
    %v2712 = vadd.f32 %v2328, %v2329
    %2713 = vadd.xlane.f32.xlu0 %v2712
    %v2714 = vpop.xlane.xlu0 %2713
    %v2715 = vadd.f32 %v2331, %v2332
    %2716 = vadd.xlane.f32.xlu0 %v2715
    %v2717 = vpop.xlane.xlu0 %2716
    %v2718 = vadd.f32 %v2334, %v2335
    %2719 = vadd.xlane.f32.xlu0 %v2718
    %v2720 = vpop.xlane.xlu0 %2719
    %v2721 = vadd.f32 %v2337, %v2338
    %2722 = vadd.xlane.f32.xlu0 %v2721
    %v2723 = vpop.xlane.xlu0 %2722
    %v2724 = vadd.f32 %v2340, %v2341
    %2725 = vadd.xlane.f32.xlu0 %v2724
    %v2726 = vpop.xlane.xlu0 %2725
    %v2727 = vadd.f32 %v2343, %v2344
    %2728 = vadd.xlane.f32.xlu0 %v2727
    %v2729 = vpop.xlane.xlu0 %2728
    %v2730 = vadd.f32 %v2346, %v2347
    %2731 = vadd.xlane.f32.xlu0 %v2730
    %v2732 = vpop.xlane.xlu0 %2731
    %v2733 = vadd.f32 %v2349, %v2350
    %2734 = vadd.xlane.f32.xlu0 %v2733
    %v2735 = vpop.xlane.xlu0 %2734
    %v2736 = vadd.f32 %v2352, %v2353
    %2737 = vadd.xlane.f32.xlu0 %v2736
    %v2738 = vpop.xlane.xlu0 %2737
    %v2739 = vadd.f32 %v2355, %v2356
    %2740 = vadd.xlane.f32.xlu0 %v2739
    %v2741 = vpop.xlane.xlu0 %2740
    %v2742 = vadd.f32 %v2358, %v2359
    %2743 = vadd.xlane.f32.xlu0 %v2742
    %v2744 = vpop.xlane.xlu0 %2743
    %v2745 = vadd.f32 %v2361, %v2362
    %2746 = vadd.xlane.f32.xlu0 %v2745
    %v2747 = vpop.xlane.xlu0 %2746
    %v2748 = vadd.f32 %v2364, %v2365
    %2749 = vadd.xlane.f32.xlu0 %v2748
    %v2750 = vpop.xlane.xlu0 %2749
    %v2751 = vadd.f32 %v2367, %v2368
    %2752 = vadd.xlane.f32.xlu0 %v2751
    %v2753 = vpop.xlane.xlu0 %2752
    %v2754 = vadd.f32 %v2370, %v2371
    %2755 = vadd.xlane.f32.xlu0 %v2754
    %v2756 = vpop.xlane.xlu0 %2755
    %v2757 = vadd.f32 %v2373, %v2374
    %2758 = vadd.xlane.f32.xlu0 %v2757
    %v2759 = vpop.xlane.xlu0 %2758
    %v2760 = vadd.f32 %v2376, %v2377
    %2761 = vadd.xlane.f32.xlu0 %v2760
    %v2762 = vpop.xlane.xlu0 %2761
    %v2763 = vadd.f32 %v2379, %v2380
    %2764 = vadd.xlane.f32.xlu0 %v2763
    %v2765 = vpop.xlane.xlu0 %2764
    %v2766 = vadd.f32 %v2382, %v2383
    %2767 = vadd.xlane.f32.xlu0 %v2766
    %v2768 = vpop.xlane.xlu0 %2767
    %v2769 = vadd.f32 %v2385, %v2386
    %2770 = vadd.xlane.f32.xlu0 %v2769
    %v2771 = vpop.xlane.xlu0 %2770
    %v2772 = vadd.f32 %v2388, %v2389
    %2773 = vadd.xlane.f32.xlu0 %v2772
    %v2774 = vpop.xlane.xlu0 %2773
    %v2775 = vadd.f32 %v2391, %v2392
    %2776 = vadd.xlane.f32.xlu0 %v2775
    %v2777 = vpop.xlane.xlu0 %2776
    %v2778 = vadd.f32 %v2394, %v2395
    %2779 = vadd.xlane.f32.xlu0 %v2778
    %v2780 = vpop.xlane.xlu0 %2779
    %v2781 = vadd.f32 %v2397, %v2398
    %2782 = vadd.xlane.f32.xlu0 %v2781
    %v2783 = vpop.xlane.xlu0 %2782
    %v2784 = vadd.f32 %v2400, %v2401
    %2785 = vadd.xlane.f32.xlu0 %v2784
    %v2786 = vpop.xlane.xlu0 %2785
    %v2787 = vadd.f32 %v2403, %v2404
    %2788 = vadd.xlane.f32.xlu0 %v2787
    %v2789 = vpop.xlane.xlu0 %2788
    %v2790 = vadd.f32 %v2406, %v2407
    %2791 = vadd.xlane.f32.xlu0 %v2790
    %v2792 = vpop.xlane.xlu0 %2791
    %v2793 = vadd.f32 %v2409, %v2410
    %2794 = vadd.xlane.f32.xlu0 %v2793
    %v2795 = vpop.xlane.xlu0 %2794
    %v2796 = vadd.f32 %v2412, %v2413
    %2797 = vadd.xlane.f32.xlu0 %v2796
    %v2798 = vpop.xlane.xlu0 %2797
    %v2799 = vadd.f32 %v2415, %v2416
    %2800 = vadd.xlane.f32.xlu0 %v2799
    %v2801 = vpop.xlane.xlu0 %2800
    %v2802 = vadd.f32 %v2418, %v2419
    %2803 = vadd.xlane.f32.xlu0 %v2802
    %v2804 = vpop.xlane.xlu0 %2803
    %v2805 = vadd.f32 %v2421, %v2422
    %2806 = vadd.xlane.f32.xlu0 %v2805
    %v2807 = vpop.xlane.xlu0 %2806
    %v2808 = vadd.f32 %v2424, %v2425
    %2809 = vadd.xlane.f32.xlu0 %v2808
    %v2810 = vpop.xlane.xlu0 %2809
    %v2811 = vadd.f32 %v2427, %v2428
    %2812 = vadd.xlane.f32.xlu0 %v2811
    %v2813 = vpop.xlane.xlu0 %2812
    %v2814 = vadd.f32 %v2430, %v2431
    %2815 = vadd.xlane.f32.xlu0 %v2814
    %v2816 = vpop.xlane.xlu0 %2815
    %v2817 = vadd.f32 %v2433, %v2434
    %2818 = vadd.xlane.f32.xlu0 %v2817
    %v2819 = vpop.xlane.xlu0 %2818
    %v2820 = vadd.f32 %v2436, %v2437
    %2821 = vadd.xlane.f32.xlu0 %v2820
    %v2822 = vpop.xlane.xlu0 %2821
    %v2823 = vadd.f32 %v2439, %v2440
    %2824 = vadd.xlane.f32.xlu0 %v2823
    %v2825 = vpop.xlane.xlu0 %2824
    %v2826 = vadd.f32 %v2442, %v2443
    %2827 = vadd.xlane.f32.xlu0 %v2826
    %v2828 = vpop.xlane.xlu0 %2827
    %v2829 = vadd.f32 %v2445, %v2446
    %2830 = vadd.xlane.f32.xlu0 %v2829
    %v2831 = vpop.xlane.xlu0 %2830
    %v2832 = vadd.f32 %v2448, %v2449
    %2833 = vadd.xlane.f32.xlu0 %v2832
    %v2834 = vpop.xlane.xlu0 %2833
    %v2835 = vadd.f32 %v2451, %v2452
    %2836 = vadd.xlane.f32.xlu0 %v2835
    %v2837 = vpop.xlane.xlu0 %2836
    %v2838 = vadd.f32 %v2454, %v2455
    %2839 = vadd.xlane.f32.xlu0 %v2838
    %v2840 = vpop.xlane.xlu0 %2839
    %v2841 = vadd.f32 %v2457, %v2458
    %2842 = vadd.xlane.f32.xlu0 %v2841
    %v2843 = vpop.xlane.xlu0 %2842
    %v2844 = vadd.f32 %v2460, %v2461
    %2845 = vadd.xlane.f32.xlu0 %v2844
    %v2846 = vpop.xlane.xlu0 %2845
    %v2847 = vadd.f32 %v2463, %v2464
    %2848 = vadd.xlane.f32.xlu0 %v2847
    %v2849 = vpop.xlane.xlu0 %2848
    %v2850 = vadd.f32 %v2466, %v2467
    %2851 = vadd.xlane.f32.xlu0 %v2850
    %v2852 = vpop.xlane.xlu0 %2851
    %v2853 = vadd.f32 %v2469, %v2470
    %2854 = vadd.xlane.f32.xlu0 %v2853
    %v2855 = vpop.xlane.xlu0 %2854
    %v2856 = vmax.f32 %v2474, 1e-24
    %v2857 = vmax.f32 %v2477, 1e-24
    %v2858 = vmax.f32 %v2480, 1e-24
    %v2859 = vmax.f32 %v2483, 1e-24
    %v2860 = vmax.f32 %v2486, 1e-24
    %v2861 = vmax.f32 %v2489, 1e-24
    %v2862 = vmax.f32 %v2492, 1e-24
    %v2863 = vmax.f32 %v2495, 1e-24
    %v2864 = vmax.f32 %v2498, 1e-24
    %v2865 = vmax.f32 %v2501, 1e-24
    %v2866 = vmax.f32 %v2504, 1e-24
    %v2867 = vmax.f32 %v2507, 1e-24
    %v2868 = vmax.f32 %v2510, 1e-24
    %v2869 = vmax.f32 %v2513, 1e-24
    %v2870 = vmax.f32 %v2516, 1e-24
    %v2871 = vmax.f32 %v2519, 1e-24
    %v2872 = vmax.f32 %v2522, 1e-24
    %v2873 = vmax.f32 %v2525, 1e-24
    %v2874 = vmax.f32 %v2528, 1e-24
    %v2875 = vmax.f32 %v2531, 1e-24
    %v2876 = vmax.f32 %v2534, 1e-24
    %v2877 = vmax.f32 %v2537, 1e-24
    %v2878 = vmax.f32 %v2540, 1e-24
    %v2879 = vmax.f32 %v2543, 1e-24
    %v2880 = vmax.f32 %v2546, 1e-24
    %v2881 = vmax.f32 %v2549, 1e-24
    %v2882 = vmax.f32 %v2552, 1e-24
    %v2883 = vmax.f32 %v2555, 1e-24
    %v2884 = vmax.f32 %v2558, 1e-24
    %v2885 = vmax.f32 %v2561, 1e-24
    %v2886 = vmax.f32 %v2564, 1e-24
    %v2887 = vmax.f32 %v2567, 1e-24
    %v2888 = vmax.f32 %v2570, 1e-24
    %v2889 = vmax.f32 %v2573, 1e-24
    %v2890 = vmax.f32 %v2576, 1e-24
    %v2891 = vmax.f32 %v2579, 1e-24
    %v2892 = vmax.f32 %v2582, 1e-24
    %v2893 = vmax.f32 %v2585, 1e-24
    %v2894 = vmax.f32 %v2588, 1e-24
    %v2895 = vmax.f32 %v2591, 1e-24
    %v2896 = vmax.f32 %v2594, 1e-24
    %v2897 = vmax.f32 %v2597, 1e-24
    %v2898 = vmax.f32 %v2600, 1e-24
    %v2899 = vmax.f32 %v2603, 1e-24
    %v2900 = vmax.f32 %v2606, 1e-24
    %v2901 = vmax.f32 %v2609, 1e-24
    %v2902 = vmax.f32 %v2612, 1e-24
    %v2903 = vmax.f32 %v2615, 1e-24
    %v2904 = vmax.f32 %v2618, 1e-24
    %v2905 = vmax.f32 %v2621, 1e-24
    %v2906 = vmax.f32 %v2624, 1e-24
    %v2907 = vmax.f32 %v2627, 1e-24
    %v2908 = vmax.f32 %v2630, 1e-24
    %v2909 = vmax.f32 %v2633, 1e-24
    %v2910 = vmax.f32 %v2636, 1e-24
    %v2911 = vmax.f32 %v2639, 1e-24
    %v2912 = vmax.f32 %v2642, 1e-24
    %v2913 = vmax.f32 %v2645, 1e-24
    %v2914 = vmax.f32 %v2648, 1e-24
    %v2915 = vmax.f32 %v2651, 1e-24
    %v2916 = vmax.f32 %v2654, 1e-24
    %v2917 = vmax.f32 %v2657, 1e-24
    %v2918 = vmax.f32 %v2660, 1e-24
    %v2919 = vmax.f32 %v2663, 1e-24
    %v2920 = vmax.f32 %v2666, 1e-24
    %v2921 = vmax.f32 %v2669, 1e-24
    %v2922 = vmax.f32 %v2672, 1e-24
    %v2923 = vmax.f32 %v2675, 1e-24
    %v2924 = vmax.f32 %v2678, 1e-24
    %v2925 = vmax.f32 %v2681, 1e-24
    %v2926 = vmax.f32 %v2684, 1e-24
    %v2927 = vmax.f32 %v2687, 1e-24
    %v2928 = vmax.f32 %v2690, 1e-24
    %v2929 = vmax.f32 %v2693, 1e-24
    %v2930 = vmax.f32 %v2696, 1e-24
    %v2931 = vmax.f32 %v2699, 1e-24
    %v2932 = vmax.f32 %v2702, 1e-24
    %v2933 = vmax.f32 %v2705, 1e-24
    %v2934 = vmax.f32 %v2708, 1e-24
    %v2935 = vmax.f32 %v2711, 1e-24
    %v2936 = vmax.f32 %v2714, 1e-24
    %v2937 = vmax.f32 %v2717, 1e-24
    %v2938 = vmax.f32 %v2720, 1e-24
    %v2939 = vmax.f32 %v2723, 1e-24
    %v2940 = vmax.f32 %v2726, 1e-24
    %v2941 = vmax.f32 %v2729, 1e-24
    %v2942 = vmax.f32 %v2732, 1e-24
    %v2943 = vmax.f32 %v2735, 1e-24
    %v2944 = vmax.f32 %v2738, 1e-24
    %v2945 = vmax.f32 %v2741, 1e-24
    %v2946 = vmax.f32 %v2744, 1e-24
    %v2947 = vmax.f32 %v2747, 1e-24
    %v2948 = vmax.f32 %v2750, 1e-24
    %v2949 = vmax.f32 %v2753, 1e-24
    %v2950 = vmax.f32 %v2756, 1e-24
    %v2951 = vmax.f32 %v2759, 1e-24
    %v2952 = vmax.f32 %v2762, 1e-24
    %v2953 = vmax.f32 %v2765, 1e-24
    %v2954 = vmax.f32 %v2768, 1e-24
    %v2955 = vmax.f32 %v2771, 1e-24
    %v2956 = vmax.f32 %v2774, 1e-24
    %v2957 = vmax.f32 %v2777, 1e-24
    %v2958 = vmax.f32 %v2780, 1e-24
    %v2959 = vmax.f32 %v2783, 1e-24
    %v2960 = vmax.f32 %v2786, 1e-24
    %v2961 = vmax.f32 %v2789, 1e-24
    %v2962 = vmax.f32 %v2792, 1e-24
    %v2963 = vmax.f32 %v2795, 1e-24
    %v2964 = vmax.f32 %v2798, 1e-24
    %v2965 = vmax.f32 %v2801, 1e-24
    %v2966 = vmax.f32 %v2804, 1e-24
    %v2967 = vmax.f32 %v2807, 1e-24
    %v2968 = vmax.f32 %v2810, 1e-24
    %v2969 = vmax.f32 %v2813, 1e-24
    %v2970 = vmax.f32 %v2816, 1e-24
    %v2971 = vmax.f32 %v2819, 1e-24
    %v2972 = vmax.f32 %v2822, 1e-24
    %v2973 = vmax.f32 %v2825, 1e-24
    %v2974 = vmax.f32 %v2828, 1e-24
    %v2975 = vmax.f32 %v2831, 1e-24
    %v2976 = vmax.f32 %v2834, 1e-24
    %v2977 = vmax.f32 %v2837, 1e-24
    %v2978 = vmax.f32 %v2840, 1e-24
    %v2979 = vmax.f32 %v2843, 1e-24
    %v2980 = vmax.f32 %v2846, 1e-24
    %v2981 = vmax.f32 %v2849, 1e-24
    %v2982 = vmax.f32 %v2852, 1e-24
    %v2983 = vmax.f32 %v2855, 1e-24
    %v2984 = vrsqrt.pop %v2856
    %v2985 = vrsqrt.pop %v2857
    %v2986 = vrsqrt.pop %v2858
    %v2987 = vrsqrt.pop %v2859
    %v2988 = vrsqrt.pop %v2860
    %v2989 = vrsqrt.pop %v2861
    %v2990 = vrsqrt.pop %v2862
    %v2991 = vrsqrt.pop %v2863
    %v2992 = vrsqrt.pop %v2864
    %v2993 = vrsqrt.pop %v2865
    %v2994 = vrsqrt.pop %v2866
    %v2995 = vrsqrt.pop %v2867
    %v2996 = vrsqrt.pop %v2868
    %v2997 = vrsqrt.pop %v2869
    %v2998 = vrsqrt.pop %v2870
    %v2999 = vrsqrt.pop %v2871
    %v3000 = vrsqrt.pop %v2872
    %v3001 = vrsqrt.pop %v2873
    %v3002 = vrsqrt.pop %v2874
    %v3003 = vrsqrt.pop %v2875
    %v3004 = vrsqrt.pop %v2876
    %v3005 = vrsqrt.pop %v2877
    %v3006 = vrsqrt.pop %v2878
    %v3007 = vrsqrt.pop %v2879
    %v3008 = vrsqrt.pop %v2880
    %v3009 = vrsqrt.pop %v2881
    %v3010 = vrsqrt.pop %v2882
    %v3011 = vrsqrt.pop %v2883
    %v3012 = vrsqrt.pop %v2884
    %v3013 = vrsqrt.pop %v2885
    %v3014 = vrsqrt.pop %v2886
    %v3015 = vrsqrt.pop %v2887
    %v3016 = vrsqrt.pop %v2888
    %v3017 = vrsqrt.pop %v2889
    %v3018 = vrsqrt.pop %v2890
    %v3019 = vrsqrt.pop %v2891
    %v3020 = vrsqrt.pop %v2892
    %v3021 = vrsqrt.pop %v2893
    %v3022 = vrsqrt.pop %v2894
    %v3023 = vrsqrt.pop %v2895
    %v3024 = vrsqrt.pop %v2896
    %v3025 = vrsqrt.pop %v2897
    %v3026 = vrsqrt.pop %v2898
    %v3027 = vrsqrt.pop %v2899
    %v3028 = vrsqrt.pop %v2900
    %v3029 = vrsqrt.pop %v2901
    %v3030 = vrsqrt.pop %v2902
    %v3031 = vrsqrt.pop %v2903
    %v3032 = vrsqrt.pop %v2904
    %v3033 = vrsqrt.pop %v2905
    %v3034 = vrsqrt.pop %v2906
    %v3035 = vrsqrt.pop %v2907
    %v3036 = vrsqrt.pop %v2908
    %v3037 = vrsqrt.pop %v2909
    %v3038 = vrsqrt.pop %v2910
    %v3039 = vrsqrt.pop %v2911
    %v3040 = vrsqrt.pop %v2912
    %v3041 = vrsqrt.pop %v2913
    %v3042 = vrsqrt.pop %v2914
    %v3043 = vrsqrt.pop %v2915
    %v3044 = vrsqrt.pop %v2916
    %v3045 = vrsqrt.pop %v2917
    %v3046 = vrsqrt.pop %v2918
    %v3047 = vrsqrt.pop %v2919
    %v3048 = vrsqrt.pop %v2920
    %v3049 = vrsqrt.pop %v2921
    %v3050 = vrsqrt.pop %v2922
    %v3051 = vrsqrt.pop %v2923
    %v3052 = vrsqrt.pop %v2924
    %v3053 = vrsqrt.pop %v2925
    %v3054 = vrsqrt.pop %v2926
    %v3055 = vrsqrt.pop %v2927
    %v3056 = vrsqrt.pop %v2928
    %v3057 = vrsqrt.pop %v2929
    %v3058 = vrsqrt.pop %v2930
    %v3059 = vrsqrt.pop %v2931
    %v3060 = vrsqrt.pop %v2932
    %v3061 = vrsqrt.pop %v2933
    %v3062 = vrsqrt.pop %v2934
    %v3063 = vrsqrt.pop %v2935
    %v3064 = vrsqrt.pop %v2936
    %v3065 = vrsqrt.pop %v2937
    %v3066 = vrsqrt.pop %v2938
    %v3067 = vrsqrt.pop %v2939
    %v3068 = vrsqrt.pop %v2940
    %v3069 = vrsqrt.pop %v2941
    %v3070 = vrsqrt.pop %v2942
    %v3071 = vrsqrt.pop %v2943
    %v3072 = vrsqrt.pop %v2944
    %v3073 = vrsqrt.pop %v2945
    %v3074 = vrsqrt.pop %v2946
    %v3075 = vrsqrt.pop %v2947
    %v3076 = vrsqrt.pop %v2948
    %v3077 = vrsqrt.pop %v2949
    %v3078 = vrsqrt.pop %v2950
    %v3079 = vrsqrt.pop %v2951
    %v3080 = vrsqrt.pop %v2952
    %v3081 = vrsqrt.pop %v2953
    %v3082 = vrsqrt.pop %v2954
    %v3083 = vrsqrt.pop %v2955
    %v3084 = vrsqrt.pop %v2956
    %v3085 = vrsqrt.pop %v2957
    %v3086 = vrsqrt.pop %v2958
    %v3087 = vrsqrt.pop %v2959
    %v3088 = vrsqrt.pop %v2960
    %v3089 = vrsqrt.pop %v2961
    %v3090 = vrsqrt.pop %v2962
    %v3091 = vrsqrt.pop %v2963
    %v3092 = vrsqrt.pop %v2964
    %v3093 = vrsqrt.pop %v2965
    %v3094 = vrsqrt.pop %v2966
    %v3095 = vrsqrt.pop %v2967
    %v3096 = vrsqrt.pop %v2968
    %v3097 = vrsqrt.pop %v2969
    %v3098 = vrsqrt.pop %v2970
    %v3099 = vrsqrt.pop %v2971
    %v3100 = vrsqrt.pop %v2972
    %v3101 = vrsqrt.pop %v2973
    %v3102 = vrsqrt.pop %v2974
    %v3103 = vrsqrt.pop %v2975
    %v3104 = vrsqrt.pop %v2976
    %v3105 = vrsqrt.pop %v2977
    %v3106 = vrsqrt.pop %v2978
    %v3107 = vrsqrt.pop %v2979
    %v3108 = vrsqrt.pop %v2980
    %v3109 = vrsqrt.pop %v2981
    %v3110 = vrsqrt.pop %v2982
    %v3111 = vrsqrt.pop %v2983
    %3112 = vadd.xlane.f32.xlu0 %v2090
    %v3113 = vpop.xlane.xlu0 %3112
    %3114 = vadd.xlane.f32.xlu0 %v2093
    %v3115 = vpop.xlane.xlu0 %3114
    %3116 = vadd.xlane.f32.xlu0 %v2096
    %v3117 = vpop.xlane.xlu0 %3116
    %3118 = vadd.xlane.f32.xlu0 %v2099
    %v3119 = vpop.xlane.xlu0 %3118
    %3120 = vadd.xlane.f32.xlu0 %v2102
    %v3121 = vpop.xlane.xlu0 %3120
    %3122 = vadd.xlane.f32.xlu0 %v2105
    %v3123 = vpop.xlane.xlu0 %3122
    %3124 = vadd.xlane.f32.xlu0 %v2108
    %v3125 = vpop.xlane.xlu0 %3124
    %3126 = vadd.xlane.f32.xlu0 %v2111
    %v3127 = vpop.xlane.xlu0 %3126
    %3128 = vadd.xlane.f32.xlu0 %v2114
    %v3129 = vpop.xlane.xlu0 %3128
    %3130 = vadd.xlane.f32.xlu0 %v2117
    %v3131 = vpop.xlane.xlu0 %3130
    %3132 = vadd.xlane.f32.xlu0 %v2120
    %v3133 = vpop.xlane.xlu0 %3132
    %3134 = vadd.xlane.f32.xlu0 %v2123
    %v3135 = vpop.xlane.xlu0 %3134
    %3136 = vadd.xlane.f32.xlu0 %v2126
    %v3137 = vpop.xlane.xlu0 %3136
    %3138 = vadd.xlane.f32.xlu0 %v2129
    %v3139 = vpop.xlane.xlu0 %3138
    %3140 = vadd.xlane.f32.xlu0 %v2132
    %v3141 = vpop.xlane.xlu0 %3140
    %3142 = vadd.xlane.f32.xlu0 %v2135
    %v3143 = vpop.xlane.xlu0 %3142
    %3144 = vadd.xlane.f32.xlu0 %v2138
    %v3145 = vpop.xlane.xlu0 %3144
    %3146 = vadd.xlane.f32.xlu0 %v2141
    %v3147 = vpop.xlane.xlu0 %3146
    %3148 = vadd.xlane.f32.xlu0 %v2144
    %v3149 = vpop.xlane.xlu0 %3148
    %3150 = vadd.xlane.f32.xlu0 %v2147
    %v3151 = vpop.xlane.xlu0 %3150
    %3152 = vadd.xlane.f32.xlu0 %v2150
    %v3153 = vpop.xlane.xlu0 %3152
    %3154 = vadd.xlane.f32.xlu0 %v2153
    %v3155 = vpop.xlane.xlu0 %3154
    %3156 = vadd.xlane.f32.xlu0 %v2156
    %v3157 = vpop.xlane.xlu0 %3156
    %3158 = vadd.xlane.f32.xlu0 %v2159
    %v3159 = vpop.xlane.xlu0 %3158
    %3160 = vadd.xlane.f32.xlu0 %v2162
    %v3161 = vpop.xlane.xlu0 %3160
    %3162 = vadd.xlane.f32.xlu0 %v2165
    %v3163 = vpop.xlane.xlu0 %3162
    %3164 = vadd.xlane.f32.xlu0 %v2168
    %v3165 = vpop.xlane.xlu0 %3164
    %3166 = vadd.xlane.f32.xlu0 %v2171
    %v3167 = vpop.xlane.xlu0 %3166
    %3168 = vadd.xlane.f32.xlu0 %v2174
    %v3169 = vpop.xlane.xlu0 %3168
    %3170 = vadd.xlane.f32.xlu0 %v2177
    %v3171 = vpop.xlane.xlu0 %3170
    %3172 = vadd.xlane.f32.xlu0 %v2180
    %v3173 = vpop.xlane.xlu0 %3172
    %3174 = vadd.xlane.f32.xlu0 %v2183
    %v3175 = vpop.xlane.xlu0 %3174
    %3176 = vadd.xlane.f32.xlu0 %v2186
    %v3177 = vpop.xlane.xlu0 %3176
    %3178 = vadd.xlane.f32.xlu0 %v2189
    %v3179 = vpop.xlane.xlu0 %3178
    %3180 = vadd.xlane.f32.xlu0 %v2192
    %v3181 = vpop.xlane.xlu0 %3180
    %3182 = vadd.xlane.f32.xlu0 %v2195
    %v3183 = vpop.xlane.xlu0 %3182
    %3184 = vadd.xlane.f32.xlu0 %v2198
    %v3185 = vpop.xlane.xlu0 %3184
    %3186 = vadd.xlane.f32.xlu0 %v2201
    %v3187 = vpop.xlane.xlu0 %3186
    %3188 = vadd.xlane.f32.xlu0 %v2204
    %v3189 = vpop.xlane.xlu0 %3188
    %3190 = vadd.xlane.f32.xlu0 %v2207
    %v3191 = vpop.xlane.xlu0 %3190
    %3192 = vadd.xlane.f32.xlu0 %v2210
    %v3193 = vpop.xlane.xlu0 %3192
    %3194 = vadd.xlane.f32.xlu0 %v2213
    %v3195 = vpop.xlane.xlu0 %3194
    %3196 = vadd.xlane.f32.xlu0 %v2216
    %v3197 = vpop.xlane.xlu0 %3196
    %3198 = vadd.xlane.f32.xlu0 %v2219
    %v3199 = vpop.xlane.xlu0 %3198
    %3200 = vadd.xlane.f32.xlu0 %v2222
    %v3201 = vpop.xlane.xlu0 %3200
    %3202 = vadd.xlane.f32.xlu0 %v2225
    %v3203 = vpop.xlane.xlu0 %3202
    %3204 = vadd.xlane.f32.xlu0 %v2228
    %v3205 = vpop.xlane.xlu0 %3204
    %3206 = vadd.xlane.f32.xlu0 %v2231
    %v3207 = vpop.xlane.xlu0 %3206
    %3208 = vadd.xlane.f32.xlu0 %v2234
    %v3209 = vpop.xlane.xlu0 %3208
    %3210 = vadd.xlane.f32.xlu0 %v2237
    %v3211 = vpop.xlane.xlu0 %3210
    %3212 = vadd.xlane.f32.xlu0 %v2240
    %v3213 = vpop.xlane.xlu0 %3212
    %3214 = vadd.xlane.f32.xlu0 %v2243
    %v3215 = vpop.xlane.xlu0 %3214
    %3216 = vadd.xlane.f32.xlu0 %v2246
    %v3217 = vpop.xlane.xlu0 %3216
    %3218 = vadd.xlane.f32.xlu0 %v2249
    %v3219 = vpop.xlane.xlu0 %3218
    %3220 = vadd.xlane.f32.xlu0 %v2252
    %v3221 = vpop.xlane.xlu0 %3220
    %3222 = vadd.xlane.f32.xlu0 %v2255
    %v3223 = vpop.xlane.xlu0 %3222
    %3224 = vadd.xlane.f32.xlu0 %v2258
    %v3225 = vpop.xlane.xlu0 %3224
    %3226 = vadd.xlane.f32.xlu0 %v2261
    %v3227 = vpop.xlane.xlu0 %3226
    %3228 = vadd.xlane.f32.xlu0 %v2264
    %v3229 = vpop.xlane.xlu0 %3228
    %3230 = vadd.xlane.f32.xlu0 %v2267
    %v3231 = vpop.xlane.xlu0 %3230
    %3232 = vadd.xlane.f32.xlu0 %v2270
    %v3233 = vpop.xlane.xlu0 %3232
    %3234 = vadd.xlane.f32.xlu0 %v2273
    %v3235 = vpop.xlane.xlu0 %3234
    %3236 = vadd.xlane.f32.xlu0 %v2276
    %v3237 = vpop.xlane.xlu0 %3236
    %3238 = vadd.xlane.f32.xlu0 %v2279
    %v3239 = vpop.xlane.xlu0 %3238
    %3240 = vadd.xlane.f32.xlu0 %v2282
    %v3241 = vpop.xlane.xlu0 %3240
    %3242 = vadd.xlane.f32.xlu0 %v2285
    %v3243 = vpop.xlane.xlu0 %3242
    %3244 = vadd.xlane.f32.xlu0 %v2288
    %v3245 = vpop.xlane.xlu0 %3244
    %3246 = vadd.xlane.f32.xlu0 %v2291
    %v3247 = vpop.xlane.xlu0 %3246
    %3248 = vadd.xlane.f32.xlu0 %v2294
    %v3249 = vpop.xlane.xlu0 %3248
    %3250 = vadd.xlane.f32.xlu0 %v2297
    %v3251 = vpop.xlane.xlu0 %3250
    %3252 = vadd.xlane.f32.xlu0 %v2300
    %v3253 = vpop.xlane.xlu0 %3252
    %3254 = vadd.xlane.f32.xlu0 %v2303
    %v3255 = vpop.xlane.xlu0 %3254
    %3256 = vadd.xlane.f32.xlu0 %v2306
    %v3257 = vpop.xlane.xlu0 %3256
    %3258 = vadd.xlane.f32.xlu0 %v2309
    %v3259 = vpop.xlane.xlu0 %3258
    %3260 = vadd.xlane.f32.xlu0 %v2312
    %v3261 = vpop.xlane.xlu0 %3260
    %3262 = vadd.xlane.f32.xlu0 %v2315
    %v3263 = vpop.xlane.xlu0 %3262
    %3264 = vadd.xlane.f32.xlu0 %v2318
    %v3265 = vpop.xlane.xlu0 %3264
    %3266 = vadd.xlane.f32.xlu0 %v2321
    %v3267 = vpop.xlane.xlu0 %3266
    %3268 = vadd.xlane.f32.xlu0 %v2324
    %v3269 = vpop.xlane.xlu0 %3268
    %3270 = vadd.xlane.f32.xlu0 %v2327
    %v3271 = vpop.xlane.xlu0 %3270
    %3272 = vadd.xlane.f32.xlu0 %v2330
    %v3273 = vpop.xlane.xlu0 %3272
    %3274 = vadd.xlane.f32.xlu0 %v2333
    %v3275 = vpop.xlane.xlu0 %3274
    %3276 = vadd.xlane.f32.xlu0 %v2336
    %v3277 = vpop.xlane.xlu0 %3276
    %3278 = vadd.xlane.f32.xlu0 %v2339
    %v3279 = vpop.xlane.xlu0 %3278
    %3280 = vadd.xlane.f32.xlu0 %v2342
    %v3281 = vpop.xlane.xlu0 %3280
    %3282 = vadd.xlane.f32.xlu0 %v2345
    %v3283 = vpop.xlane.xlu0 %3282
    %3284 = vadd.xlane.f32.xlu0 %v2348
    %v3285 = vpop.xlane.xlu0 %3284
    %3286 = vadd.xlane.f32.xlu0 %v2351
    %v3287 = vpop.xlane.xlu0 %3286
    %3288 = vadd.xlane.f32.xlu0 %v2354
    %v3289 = vpop.xlane.xlu0 %3288
    %3290 = vadd.xlane.f32.xlu0 %v2357
    %v3291 = vpop.xlane.xlu0 %3290
    %3292 = vadd.xlane.f32.xlu0 %v2360
    %v3293 = vpop.xlane.xlu0 %3292
    %3294 = vadd.xlane.f32.xlu0 %v2363
    %v3295 = vpop.xlane.xlu0 %3294
    %3296 = vadd.xlane.f32.xlu0 %v2366
    %v3297 = vpop.xlane.xlu0 %3296
    %3298 = vadd.xlane.f32.xlu0 %v2369
    %v3299 = vpop.xlane.xlu0 %3298
    %3300 = vadd.xlane.f32.xlu0 %v2372
    %v3301 = vpop.xlane.xlu0 %3300
    %3302 = vadd.xlane.f32.xlu0 %v2375
    %v3303 = vpop.xlane.xlu0 %3302
    %3304 = vadd.xlane.f32.xlu0 %v2378
    %v3305 = vpop.xlane.xlu0 %3304
    %3306 = vadd.xlane.f32.xlu0 %v2381
    %v3307 = vpop.xlane.xlu0 %3306
    %3308 = vadd.xlane.f32.xlu0 %v2384
    %v3309 = vpop.xlane.xlu0 %3308
    %3310 = vadd.xlane.f32.xlu0 %v2387
    %v3311 = vpop.xlane.xlu0 %3310
    %3312 = vadd.xlane.f32.xlu0 %v2390
    %v3313 = vpop.xlane.xlu0 %3312
    %3314 = vadd.xlane.f32.xlu0 %v2393
    %v3315 = vpop.xlane.xlu0 %3314
    %3316 = vadd.xlane.f32.xlu0 %v2396
    %v3317 = vpop.xlane.xlu0 %3316
    %3318 = vadd.xlane.f32.xlu0 %v2399
    %v3319 = vpop.xlane.xlu0 %3318
    %3320 = vadd.xlane.f32.xlu0 %v2402
    %v3321 = vpop.xlane.xlu0 %3320
    %3322 = vadd.xlane.f32.xlu0 %v2405
    %v3323 = vpop.xlane.xlu0 %3322
    %3324 = vadd.xlane.f32.xlu0 %v2408
    %v3325 = vpop.xlane.xlu0 %3324
    %3326 = vadd.xlane.f32.xlu0 %v2411
    %v3327 = vpop.xlane.xlu0 %3326
    %3328 = vadd.xlane.f32.xlu0 %v2414
    %v3329 = vpop.xlane.xlu0 %3328
    %3330 = vadd.xlane.f32.xlu0 %v2417
    %v3331 = vpop.xlane.xlu0 %3330
    %3332 = vadd.xlane.f32.xlu0 %v2420
    %v3333 = vpop.xlane.xlu0 %3332
    %3334 = vadd.xlane.f32.xlu0 %v2423
    %v3335 = vpop.xlane.xlu0 %3334
    %3336 = vadd.xlane.f32.xlu0 %v2426
    %v3337 = vpop.xlane.xlu0 %3336
    %3338 = vadd.xlane.f32.xlu0 %v2429
    %v3339 = vpop.xlane.xlu0 %3338
    %3340 = vadd.xlane.f32.xlu0 %v2432
    %v3341 = vpop.xlane.xlu0 %3340
    %3342 = vadd.xlane.f32.xlu0 %v2435
    %v3343 = vpop.xlane.xlu0 %3342
    %3344 = vadd.xlane.f32.xlu0 %v2438
    %v3345 = vpop.xlane.xlu0 %3344
    %3346 = vadd.xlane.f32.xlu0 %v2441
    %v3347 = vpop.xlane.xlu0 %3346
    %3348 = vadd.xlane.f32.xlu0 %v2444
    %v3349 = vpop.xlane.xlu0 %3348
    %3350 = vadd.xlane.f32.xlu0 %v2447
    %v3351 = vpop.xlane.xlu0 %3350
    %3352 = vadd.xlane.f32.xlu0 %v2450
    %v3353 = vpop.xlane.xlu0 %3352
    %3354 = vadd.xlane.f32.xlu0 %v2453
    %v3355 = vpop.xlane.xlu0 %3354
    %3356 = vadd.xlane.f32.xlu0 %v2456
    %v3357 = vpop.xlane.xlu0 %3356
    %3358 = vadd.xlane.f32.xlu0 %v2459
    %v3359 = vpop.xlane.xlu0 %3358
    %3360 = vadd.xlane.f32.xlu0 %v2462
    %v3361 = vpop.xlane.xlu0 %3360
    %3362 = vadd.xlane.f32.xlu0 %v2465
    %v3363 = vpop.xlane.xlu0 %3362
    %3364 = vadd.xlane.f32.xlu0 %v2468
    %v3365 = vpop.xlane.xlu0 %3364
    %3366 = vadd.xlane.f32.xlu0 %v2471
    %v3367 = vpop.xlane.xlu0 %3366
    %v3368 = vmax.f32 %v3113, 1e-24
    %v3369 = vmax.f32 %v3115, 1e-24
    %v3370 = vmax.f32 %v3117, 1e-24
    %v3371 = vmax.f32 %v3119, 1e-24
    %v3372 = vmax.f32 %v3121, 1e-24
    %v3373 = vmax.f32 %v3123, 1e-24
    %v3374 = vmax.f32 %v3125, 1e-24
    %v3375 = vmax.f32 %v3127, 1e-24
    %v3376 = vmax.f32 %v3129, 1e-24
    %v3377 = vmax.f32 %v3131, 1e-24
    %v3378 = vmax.f32 %v3133, 1e-24
    %v3379 = vmax.f32 %v3135, 1e-24
    %v3380 = vmax.f32 %v3137, 1e-24
    %v3381 = vmax.f32 %v3139, 1e-24
    %v3382 = vmax.f32 %v3141, 1e-24
    %v3383 = vmax.f32 %v3143, 1e-24
    %v3384 = vmax.f32 %v3145, 1e-24
    %v3385 = vmax.f32 %v3147, 1e-24
    %v3386 = vmax.f32 %v3149, 1e-24
    %v3387 = vmax.f32 %v3151, 1e-24
    %v3388 = vmax.f32 %v3153, 1e-24
    %v3389 = vmax.f32 %v3155, 1e-24
    %v3390 = vmax.f32 %v3157, 1e-24
    %v3391 = vmax.f32 %v3159, 1e-24
    %v3392 = vmax.f32 %v3161, 1e-24
    %v3393 = vmax.f32 %v3163, 1e-24
    %v3394 = vmax.f32 %v3165, 1e-24
    %v3395 = vmax.f32 %v3167, 1e-24
    %v3396 = vmax.f32 %v3169, 1e-24
    %v3397 = vmax.f32 %v3171, 1e-24
    %v3398 = vmax.f32 %v3173, 1e-24
    %v3399 = vmax.f32 %v3175, 1e-24
    %v3400 = vmax.f32 %v3177, 1e-24
    %v3401 = vmax.f32 %v3179, 1e-24
    %v3402 = vmax.f32 %v3181, 1e-24
    %v3403 = vmax.f32 %v3183, 1e-24
    %v3404 = vmax.f32 %v3185, 1e-24
    %v3405 = vmax.f32 %v3187, 1e-24
    %v3406 = vmax.f32 %v3189, 1e-24
    %v3407 = vmax.f32 %v3191, 1e-24
    %v3408 = vmax.f32 %v3193, 1e-24
    %v3409 = vmax.f32 %v3195, 1e-24
    %v3410 = vmax.f32 %v3197, 1e-24
    %v3411 = vmax.f32 %v3199, 1e-24
    %v3412 = vmax.f32 %v3201, 1e-24
    %v3413 = vmax.f32 %v3203, 1e-24
    %v3414 = vmax.f32 %v3205, 1e-24
    %v3415 = vmax.f32 %v3207, 1e-24
    %v3416 = vmax.f32 %v3209, 1e-24
    %v3417 = vmax.f32 %v3211, 1e-24
    %v3418 = vmax.f32 %v3213, 1e-24
    %v3419 = vmax.f32 %v3215, 1e-24
    %v3420 = vmax.f32 %v3217, 1e-24
    %v3421 = vmax.f32 %v3219, 1e-24
    %v3422 = vmax.f32 %v3221, 1e-24
    %v3423 = vmax.f32 %v3223, 1e-24
    %v3424 = vmax.f32 %v3225, 1e-24
    %v3425 = vmax.f32 %v3227, 1e-24
    %v3426 = vmax.f32 %v3229, 1e-24
    %v3427 = vmax.f32 %v3231, 1e-24
    %v3428 = vmax.f32 %v3233, 1e-24
    %v3429 = vmax.f32 %v3235, 1e-24
    %v3430 = vmax.f32 %v3237, 1e-24
    %v3431 = vmax.f32 %v3239, 1e-24
    %v3432 = vmax.f32 %v3241, 1e-24
    %v3433 = vmax.f32 %v3243, 1e-24
    %v3434 = vmax.f32 %v3245, 1e-24
    %v3435 = vmax.f32 %v3247, 1e-24
    %v3436 = vmax.f32 %v3249, 1e-24
    %v3437 = vmax.f32 %v3251, 1e-24
    %v3438 = vmax.f32 %v3253, 1e-24
    %v3439 = vmax.f32 %v3255, 1e-24
    %v3440 = vmax.f32 %v3257, 1e-24
    %v3441 = vmax.f32 %v3259, 1e-24
    %v3442 = vmax.f32 %v3261, 1e-24
    %v3443 = vmax.f32 %v3263, 1e-24
    %v3444 = vmax.f32 %v3265, 1e-24
    %v3445 = vmax.f32 %v3267, 1e-24
    %v3446 = vmax.f32 %v3269, 1e-24
    %v3447 = vmax.f32 %v3271, 1e-24
    %v3448 = vmax.f32 %v3273, 1e-24
    %v3449 = vmax.f32 %v3275, 1e-24
    %v3450 = vmax.f32 %v3277, 1e-24
    %v3451 = vmax.f32 %v3279, 1e-24
    %v3452 = vmax.f32 %v3281, 1e-24
    %v3453 = vmax.f32 %v3283, 1e-24
    %v3454 = vmax.f32 %v3285, 1e-24
    %v3455 = vmax.f32 %v3287, 1e-24
    %v3456 = vmax.f32 %v3289, 1e-24
    %v3457 = vmax.f32 %v3291, 1e-24
    %v3458 = vmax.f32 %v3293, 1e-24
    %v3459 = vmax.f32 %v3295, 1e-24
    %v3460 = vmax.f32 %v3297, 1e-24
    %v3461 = vmax.f32 %v3299, 1e-24
    %v3462 = vmax.f32 %v3301, 1e-24
    %v3463 = vmax.f32 %v3303, 1e-24
    %v3464 = vmax.f32 %v3305, 1e-24
    %v3465 = vmax.f32 %v3307, 1e-24
    %v3466 = vmax.f32 %v3309, 1e-24
    %v3467 = vmax.f32 %v3311, 1e-24
    %v3468 = vmax.f32 %v3313, 1e-24
    %v3469 = vmax.f32 %v3315, 1e-24
    %v3470 = vmax.f32 %v3317, 1e-24
    %v3471 = vmax.f32 %v3319, 1e-24
    %v3472 = vmax.f32 %v3321, 1e-24
    %v3473 = vmax.f32 %v3323, 1e-24
    %v3474 = vmax.f32 %v3325, 1e-24
    %v3475 = vmax.f32 %v3327, 1e-24
    %v3476 = vmax.f32 %v3329, 1e-24
    %v3477 = vmax.f32 %v3331, 1e-24
    %v3478 = vmax.f32 %v3333, 1e-24
    %v3479 = vmax.f32 %v3335, 1e-24
    %v3480 = vmax.f32 %v3337, 1e-24
    %v3481 = vmax.f32 %v3339, 1e-24
    %v3482 = vmax.f32 %v3341, 1e-24
    %v3483 = vmax.f32 %v3343, 1e-24
    %v3484 = vmax.f32 %v3345, 1e-24
    %v3485 = vmax.f32 %v3347, 1e-24
    %v3486 = vmax.f32 %v3349, 1e-24
    %v3487 = vmax.f32 %v3351, 1e-24
    %v3488 = vmax.f32 %v3353, 1e-24
    %v3489 = vmax.f32 %v3355, 1e-24
    %v3490 = vmax.f32 %v3357, 1e-24
    %v3491 = vmax.f32 %v3359, 1e-24
    %v3492 = vmax.f32 %v3361, 1e-24
    %v3493 = vmax.f32 %v3363, 1e-24
    %v3494 = vmax.f32 %v3365, 1e-24
    %v3495 = vmax.f32 %v3367, 1e-24
    %v3496 = vrsqrt.pop %v3368
    %v3497 = vrsqrt.pop %v3369
    %v3498 = vrsqrt.pop %v3370
    %v3499 = vrsqrt.pop %v3371
    %v3500 = vrsqrt.pop %v3372
    %v3501 = vrsqrt.pop %v3373
    %v3502 = vrsqrt.pop %v3374
    %v3503 = vrsqrt.pop %v3375
    %v3504 = vrsqrt.pop %v3376
    %v3505 = vrsqrt.pop %v3377
    %v3506 = vrsqrt.pop %v3378
    %v3507 = vrsqrt.pop %v3379
    %v3508 = vrsqrt.pop %v3380
    %v3509 = vrsqrt.pop %v3381
    %v3510 = vrsqrt.pop %v3382
    %v3511 = vrsqrt.pop %v3383
    %v3512 = vrsqrt.pop %v3384
    %v3513 = vrsqrt.pop %v3385
    %v3514 = vrsqrt.pop %v3386
    %v3515 = vrsqrt.pop %v3387
    %v3516 = vrsqrt.pop %v3388
    %v3517 = vrsqrt.pop %v3389
    %v3518 = vrsqrt.pop %v3390
    %v3519 = vrsqrt.pop %v3391
    %v3520 = vrsqrt.pop %v3392
    %v3521 = vrsqrt.pop %v3393
    %v3522 = vrsqrt.pop %v3394
    %v3523 = vrsqrt.pop %v3395
    %v3524 = vrsqrt.pop %v3396
    %v3525 = vrsqrt.pop %v3397
    %v3526 = vrsqrt.pop %v3398
    %v3527 = vrsqrt.pop %v3399
    %v3528 = vrsqrt.pop %v3400
    %v3529 = vrsqrt.pop %v3401
    %v3530 = vrsqrt.pop %v3402
    %v3531 = vrsqrt.pop %v3403
    %v3532 = vrsqrt.pop %v3404
    %v3533 = vrsqrt.pop %v3405
    %v3534 = vrsqrt.pop %v3406
    %v3535 = vrsqrt.pop %v3407
    %v3536 = vrsqrt.pop %v3408
    %v3537 = vrsqrt.pop %v3409
    %v3538 = vrsqrt.pop %v3410
    %v3539 = vrsqrt.pop %v3411
    %v3540 = vrsqrt.pop %v3412
    %v3541 = vrsqrt.pop %v3413
    %v3542 = vrsqrt.pop %v3414
    %v3543 = vrsqrt.pop %v3415
    %v3544 = vrsqrt.pop %v3416
    %v3545 = vrsqrt.pop %v3417
    %v3546 = vrsqrt.pop %v3418
    %v3547 = vrsqrt.pop %v3419
    %v3548 = vrsqrt.pop %v3420
    %v3549 = vrsqrt.pop %v3421
    %v3550 = vrsqrt.pop %v3422
    %v3551 = vrsqrt.pop %v3423
    %v3552 = vrsqrt.pop %v3424
    %v3553 = vrsqrt.pop %v3425
    %v3554 = vrsqrt.pop %v3426
    %v3555 = vrsqrt.pop %v3427
    %v3556 = vrsqrt.pop %v3428
    %v3557 = vrsqrt.pop %v3429
    %v3558 = vrsqrt.pop %v3430
    %v3559 = vrsqrt.pop %v3431
    %v3560 = vrsqrt.pop %v3432
    %v3561 = vrsqrt.pop %v3433
    %v3562 = vrsqrt.pop %v3434
    %v3563 = vrsqrt.pop %v3435
    %v3564 = vrsqrt.pop %v3436
    %v3565 = vrsqrt.pop %v3437
    %v3566 = vrsqrt.pop %v3438
    %v3567 = vrsqrt.pop %v3439
    %v3568 = vrsqrt.pop %v3440
    %v3569 = vrsqrt.pop %v3441
    %v3570 = vrsqrt.pop %v3442
    %v3571 = vrsqrt.pop %v3443
    %v3572 = vrsqrt.pop %v3444
    %v3573 = vrsqrt.pop %v3445
    %v3574 = vrsqrt.pop %v3446
    %v3575 = vrsqrt.pop %v3447
    %v3576 = vrsqrt.pop %v3448
    %v3577 = vrsqrt.pop %v3449
    %v3578 = vrsqrt.pop %v3450
    %v3579 = vrsqrt.pop %v3451
    %v3580 = vrsqrt.pop %v3452
    %v3581 = vrsqrt.pop %v3453
    %v3582 = vrsqrt.pop %v3454
    %v3583 = vrsqrt.pop %v3455
    %v3584 = vrsqrt.pop %v3456
    %v3585 = vrsqrt.pop %v3457
    %v3586 = vrsqrt.pop %v3458
    %v3587 = vrsqrt.pop %v3459
    %v3588 = vrsqrt.pop %v3460
    %v3589 = vrsqrt.pop %v3461
    %v3590 = vrsqrt.pop %v3462
    %v3591 = vrsqrt.pop %v3463
    %v3592 = vrsqrt.pop %v3464
    %v3593 = vrsqrt.pop %v3465
    %v3594 = vrsqrt.pop %v3466
    %v3595 = vrsqrt.pop %v3467
    %v3596 = vrsqrt.pop %v3468
    %v3597 = vrsqrt.pop %v3469
    %v3598 = vrsqrt.pop %v3470
    %v3599 = vrsqrt.pop %v3471
    %v3600 = vrsqrt.pop %v3472
    %v3601 = vrsqrt.pop %v3473
    %v3602 = vrsqrt.pop %v3474
    %v3603 = vrsqrt.pop %v3475
    %v3604 = vrsqrt.pop %v3476
    %v3605 = vrsqrt.pop %v3477
    %v3606 = vrsqrt.pop %v3478
    %v3607 = vrsqrt.pop %v3479
    %v3608 = vrsqrt.pop %v3480
    %v3609 = vrsqrt.pop %v3481
    %v3610 = vrsqrt.pop %v3482
    %v3611 = vrsqrt.pop %v3483
    %v3612 = vrsqrt.pop %v3484
    %v3613 = vrsqrt.pop %v3485
    %v3614 = vrsqrt.pop %v3486
    %v3615 = vrsqrt.pop %v3487
    %v3616 = vrsqrt.pop %v3488
    %v3617 = vrsqrt.pop %v3489
    %v3618 = vrsqrt.pop %v3490
    %v3619 = vrsqrt.pop %v3491
    %v3620 = vrsqrt.pop %v3492
    %v3621 = vrsqrt.pop %v3493
    %v3622 = vrsqrt.pop %v3494
    %v3623 = vrsqrt.pop %v3495
    %v3624 = vmul.f32 %v617, %v2984
    %v3625 = vmul.f32 %v619, %v2984
    %v3626 = vmul.f32 %v623, %v2985
    %v3627 = vmul.f32 %v625, %v2985
    %v3628 = vmul.f32 %v629, %v2986
    %v3629 = vmul.f32 %v631, %v2986
    %v3630 = vmul.f32 %v635, %v2987
    %v3631 = vmul.f32 %v637, %v2987
    %v3632 = vmul.f32 %v641, %v2988
    %v3633 = vmul.f32 %v643, %v2988
    %v3634 = vmul.f32 %v647, %v2989
    %v3635 = vmul.f32 %v649, %v2989
    %v3636 = vmul.f32 %v653, %v2990
    %v3637 = vmul.f32 %v655, %v2990
    %v3638 = vmul.f32 %v659, %v2991
    %v3639 = vmul.f32 %v661, %v2991
    %v3640 = vmul.f32 %v665, %v2992
    %v3641 = vmul.f32 %v667, %v2992
    %v3642 = vmul.f32 %v671, %v2993
    %v3643 = vmul.f32 %v673, %v2993
    %v3644 = vmul.f32 %v677, %v2994
    %v3645 = vmul.f32 %v679, %v2994
    %v3646 = vmul.f32 %v683, %v2995
    %v3647 = vmul.f32 %v685, %v2995
    %v3648 = vmul.f32 %v689, %v2996
    %v3649 = vmul.f32 %v691, %v2996
    %v3650 = vmul.f32 %v695, %v2997
    %v3651 = vmul.f32 %v697, %v2997
    %v3652 = vmul.f32 %v701, %v2998
    %v3653 = vmul.f32 %v703, %v2998
    %v3654 = vmul.f32 %v707, %v2999
    %v3655 = vmul.f32 %v709, %v2999
    %v3656 = vmul.f32 %v713, %v3000
    %v3657 = vmul.f32 %v715, %v3000
    %v3658 = vmul.f32 %v719, %v3001
    %v3659 = vmul.f32 %v721, %v3001
    %v3660 = vmul.f32 %v725, %v3002
    %v3661 = vmul.f32 %v727, %v3002
    %v3662 = vmul.f32 %v731, %v3003
    %v3663 = vmul.f32 %v733, %v3003
    %v3664 = vmul.f32 %v737, %v3004
    %v3665 = vmul.f32 %v739, %v3004
    %v3666 = vmul.f32 %v743, %v3005
    %v3667 = vmul.f32 %v745, %v3005
    %v3668 = vmul.f32 %v749, %v3006
    %v3669 = vmul.f32 %v751, %v3006
    %v3670 = vmul.f32 %v755, %v3007
    %v3671 = vmul.f32 %v757, %v3007
    %v3672 = vmul.f32 %v761, %v3008
    %v3673 = vmul.f32 %v763, %v3008
    %v3674 = vmul.f32 %v767, %v3009
    %v3675 = vmul.f32 %v769, %v3009
    %v3676 = vmul.f32 %v773, %v3010
    %v3677 = vmul.f32 %v775, %v3010
    %v3678 = vmul.f32 %v779, %v3011
    %v3679 = vmul.f32 %v781, %v3011
    %v3680 = vmul.f32 %v785, %v3012
    %v3681 = vmul.f32 %v787, %v3012
    %v3682 = vmul.f32 %v791, %v3013
    %v3683 = vmul.f32 %v793, %v3013
    %v3684 = vmul.f32 %v797, %v3014
    %v3685 = vmul.f32 %v799, %v3014
    %v3686 = vmul.f32 %v803, %v3015
    %v3687 = vmul.f32 %v805, %v3015
    %v3688 = vmul.f32 %v809, %v3016
    %v3689 = vmul.f32 %v811, %v3016
    %v3690 = vmul.f32 %v815, %v3017
    %v3691 = vmul.f32 %v817, %v3017
    %v3692 = vmul.f32 %v821, %v3018
    %v3693 = vmul.f32 %v823, %v3018
    %v3694 = vmul.f32 %v827, %v3019
    %v3695 = vmul.f32 %v829, %v3019
    %v3696 = vmul.f32 %v833, %v3020
    %v3697 = vmul.f32 %v835, %v3020
    %v3698 = vmul.f32 %v839, %v3021
    %v3699 = vmul.f32 %v841, %v3021
    %v3700 = vmul.f32 %v845, %v3022
    %v3701 = vmul.f32 %v847, %v3022
    %v3702 = vmul.f32 %v851, %v3023
    %v3703 = vmul.f32 %v853, %v3023
    %v3704 = vmul.f32 %v857, %v3024
    %v3705 = vmul.f32 %v859, %v3024
    %v3706 = vmul.f32 %v863, %v3025
    %v3707 = vmul.f32 %v865, %v3025
    %v3708 = vmul.f32 %v869, %v3026
    %v3709 = vmul.f32 %v871, %v3026
    %v3710 = vmul.f32 %v875, %v3027
    %v3711 = vmul.f32 %v877, %v3027
    %v3712 = vmul.f32 %v881, %v3028
    %v3713 = vmul.f32 %v883, %v3028
    %v3714 = vmul.f32 %v887, %v3029
    %v3715 = vmul.f32 %v889, %v3029
    %v3716 = vmul.f32 %v893, %v3030
    %v3717 = vmul.f32 %v895, %v3030
    %v3718 = vmul.f32 %v899, %v3031
    %v3719 = vmul.f32 %v901, %v3031
    %v3720 = vmul.f32 %v905, %v3032
    %v3721 = vmul.f32 %v907, %v3032
    %v3722 = vmul.f32 %v911, %v3033
    %v3723 = vmul.f32 %v913, %v3033
    %v3724 = vmul.f32 %v917, %v3034
    %v3725 = vmul.f32 %v919, %v3034
    %v3726 = vmul.f32 %v923, %v3035
    %v3727 = vmul.f32 %v925, %v3035
    %v3728 = vmul.f32 %v929, %v3036
    %v3729 = vmul.f32 %v931, %v3036
    %v3730 = vmul.f32 %v935, %v3037
    %v3731 = vmul.f32 %v937, %v3037
    %v3732 = vmul.f32 %v941, %v3038
    %v3733 = vmul.f32 %v943, %v3038
    %v3734 = vmul.f32 %v947, %v3039
    %v3735 = vmul.f32 %v949, %v3039
    %v3736 = vmul.f32 %v953, %v3040
    %v3737 = vmul.f32 %v955, %v3040
    %v3738 = vmul.f32 %v959, %v3041
    %v3739 = vmul.f32 %v961, %v3041
    %v3740 = vmul.f32 %v965, %v3042
    %v3741 = vmul.f32 %v967, %v3042
    %v3742 = vmul.f32 %v971, %v3043
    %v3743 = vmul.f32 %v973, %v3043
    %v3744 = vmul.f32 %v977, %v3044
    %v3745 = vmul.f32 %v979, %v3044
    %v3746 = vmul.f32 %v983, %v3045
    %v3747 = vmul.f32 %v985, %v3045
    %v3748 = vmul.f32 %v989, %v3046
    %v3749 = vmul.f32 %v991, %v3046
    %v3750 = vmul.f32 %v995, %v3047
    %v3751 = vmul.f32 %v997, %v3047
    %v3752 = vmul.f32 %v1001, %v3048
    %v3753 = vmul.f32 %v1003, %v3048
    %v3754 = vmul.f32 %v1007, %v3049
    %v3755 = vmul.f32 %v1009, %v3049
    %v3756 = vmul.f32 %v1013, %v3050
    %v3757 = vmul.f32 %v1015, %v3050
    %v3758 = vmul.f32 %v1019, %v3051
    %v3759 = vmul.f32 %v1021, %v3051
    %v3760 = vmul.f32 %v1025, %v3052
    %v3761 = vmul.f32 %v1027, %v3052
    %v3762 = vmul.f32 %v1031, %v3053
    %v3763 = vmul.f32 %v1033, %v3053
    %v3764 = vmul.f32 %v1037, %v3054
    %v3765 = vmul.f32 %v1039, %v3054
    %v3766 = vmul.f32 %v1043, %v3055
    %v3767 = vmul.f32 %v1045, %v3055
    %v3768 = vmul.f32 %v1049, %v3056
    %v3769 = vmul.f32 %v1051, %v3056
    %v3770 = vmul.f32 %v1055, %v3057
    %v3771 = vmul.f32 %v1057, %v3057
    %v3772 = vmul.f32 %v1061, %v3058
    %v3773 = vmul.f32 %v1063, %v3058
    %v3774 = vmul.f32 %v1067, %v3059
    %v3775 = vmul.f32 %v1069, %v3059
    %v3776 = vmul.f32 %v1073, %v3060
    %v3777 = vmul.f32 %v1075, %v3060
    %v3778 = vmul.f32 %v1079, %v3061
    %v3779 = vmul.f32 %v1081, %v3061
    %v3780 = vmul.f32 %v1085, %v3062
    %v3781 = vmul.f32 %v1087, %v3062
    %v3782 = vmul.f32 %v1091, %v3063
    %v3783 = vmul.f32 %v1093, %v3063
    %v3784 = vmul.f32 %v1097, %v3064
    %v3785 = vmul.f32 %v1099, %v3064
    %v3786 = vmul.f32 %v1103, %v3065
    %v3787 = vmul.f32 %v1105, %v3065
    %v3788 = vmul.f32 %v1109, %v3066
    %v3789 = vmul.f32 %v1111, %v3066
    %v3790 = vmul.f32 %v1115, %v3067
    %v3791 = vmul.f32 %v1117, %v3067
    %v3792 = vmul.f32 %v1121, %v3068
    %v3793 = vmul.f32 %v1123, %v3068
    %v3794 = vmul.f32 %v1127, %v3069
    %v3795 = vmul.f32 %v1129, %v3069
    %v3796 = vmul.f32 %v1133, %v3070
    %v3797 = vmul.f32 %v1135, %v3070
    %v3798 = vmul.f32 %v1139, %v3071
    %v3799 = vmul.f32 %v1141, %v3071
    %v3800 = vmul.f32 %v1145, %v3072
    %v3801 = vmul.f32 %v1147, %v3072
    %v3802 = vmul.f32 %v1151, %v3073
    %v3803 = vmul.f32 %v1153, %v3073
    %v3804 = vmul.f32 %v1157, %v3074
    %v3805 = vmul.f32 %v1159, %v3074
    %v3806 = vmul.f32 %v1163, %v3075
    %v3807 = vmul.f32 %v1165, %v3075
    %v3808 = vmul.f32 %v1169, %v3076
    %v3809 = vmul.f32 %v1171, %v3076
    %v3810 = vmul.f32 %v1175, %v3077
    %v3811 = vmul.f32 %v1177, %v3077
    %v3812 = vmul.f32 %v1181, %v3078
    %v3813 = vmul.f32 %v1183, %v3078
    %v3814 = vmul.f32 %v1187, %v3079
    %v3815 = vmul.f32 %v1189, %v3079
    %v3816 = vmul.f32 %v1193, %v3080
    %v3817 = vmul.f32 %v1195, %v3080
    %v3818 = vmul.f32 %v1199, %v3081
    %v3819 = vmul.f32 %v1201, %v3081
    %v3820 = vmul.f32 %v1205, %v3082
    %v3821 = vmul.f32 %v1207, %v3082
    %v3822 = vmul.f32 %v1211, %v3083
    %v3823 = vmul.f32 %v1213, %v3083
    %v3824 = vmul.f32 %v1217, %v3084
    %v3825 = vmul.f32 %v1219, %v3084
    %v3826 = vmul.f32 %v1223, %v3085
    %v3827 = vmul.f32 %v1225, %v3085
    %v3828 = vmul.f32 %v1229, %v3086
    %v3829 = vmul.f32 %v1231, %v3086
    %v3830 = vmul.f32 %v1235, %v3087
    %v3831 = vmul.f32 %v1237, %v3087
    %v3832 = vmul.f32 %v1241, %v3088
    %v3833 = vmul.f32 %v1243, %v3088
    %v3834 = vmul.f32 %v1247, %v3089
    %v3835 = vmul.f32 %v1249, %v3089
    %v3836 = vmul.f32 %v1253, %v3090
    %v3837 = vmul.f32 %v1255, %v3090
    %v3838 = vmul.f32 %v1259, %v3091
    %v3839 = vmul.f32 %v1261, %v3091
    %v3840 = vmul.f32 %v1265, %v3092
    %v3841 = vmul.f32 %v1267, %v3092
    %v3842 = vmul.f32 %v1271, %v3093
    %v3843 = vmul.f32 %v1273, %v3093
    %v3844 = vmul.f32 %v1277, %v3094
    %v3845 = vmul.f32 %v1279, %v3094
    %v3846 = vmul.f32 %v1283, %v3095
    %v3847 = vmul.f32 %v1285, %v3095
    %v3848 = vmul.f32 %v1289, %v3096
    %v3849 = vmul.f32 %v1291, %v3096
    %v3850 = vmul.f32 %v1295, %v3097
    %v3851 = vmul.f32 %v1297, %v3097
    %v3852 = vmul.f32 %v1301, %v3098
    %v3853 = vmul.f32 %v1303, %v3098
    %v3854 = vmul.f32 %v1307, %v3099
    %v3855 = vmul.f32 %v1309, %v3099
    %v3856 = vmul.f32 %v1313, %v3100
    %v3857 = vmul.f32 %v1315, %v3100
    %v3858 = vmul.f32 %v1319, %v3101
    %v3859 = vmul.f32 %v1321, %v3101
    %v3860 = vmul.f32 %v1325, %v3102
    %v3861 = vmul.f32 %v1327, %v3102
    %v3862 = vmul.f32 %v1331, %v3103
    %v3863 = vmul.f32 %v1333, %v3103
    %v3864 = vmul.f32 %v1337, %v3104
    %v3865 = vmul.f32 %v1339, %v3104
    %v3866 = vmul.f32 %v1343, %v3105
    %v3867 = vmul.f32 %v1345, %v3105
    %v3868 = vmul.f32 %v1349, %v3106
    %v3869 = vmul.f32 %v1351, %v3106
    %v3870 = vmul.f32 %v1355, %v3107
    %v3871 = vmul.f32 %v1357, %v3107
    %v3872 = vmul.f32 %v1361, %v3108
    %v3873 = vmul.f32 %v1363, %v3108
    %v3874 = vmul.f32 %v1367, %v3109
    %v3875 = vmul.f32 %v1369, %v3109
    %v3876 = vmul.f32 %v1373, %v3110
    %v3877 = vmul.f32 %v1375, %v3110
    %v3878 = vmul.f32 %v1379, %v3111
    %v3879 = vmul.f32 %v1381, %v3111
    %v3880 = vmul.f32 %v1450, %v3496
    %v3881 = vmul.f32 %v1455, %v3497
    %v3882 = vmul.f32 %v1460, %v3498
    %v3883 = vmul.f32 %v1465, %v3499
    %v3884 = vmul.f32 %v1470, %v3500
    %v3885 = vmul.f32 %v1475, %v3501
    %v3886 = vmul.f32 %v1480, %v3502
    %v3887 = vmul.f32 %v1485, %v3503
    %v3888 = vmul.f32 %v1490, %v3504
    %v3889 = vmul.f32 %v1495, %v3505
    %v3890 = vmul.f32 %v1500, %v3506
    %v3891 = vmul.f32 %v1505, %v3507
    %v3892 = vmul.f32 %v1510, %v3508
    %v3893 = vmul.f32 %v1515, %v3509
    %v3894 = vmul.f32 %v1520, %v3510
    %v3895 = vmul.f32 %v1525, %v3511
    %v3896 = vmul.f32 %v1530, %v3512
    %v3897 = vmul.f32 %v1535, %v3513
    %v3898 = vmul.f32 %v1540, %v3514
    %v3899 = vmul.f32 %v1545, %v3515
    %v3900 = vmul.f32 %v1550, %v3516
    %v3901 = vmul.f32 %v1555, %v3517
    %v3902 = vmul.f32 %v1560, %v3518
    %v3903 = vmul.f32 %v1565, %v3519
    %v3904 = vmul.f32 %v1570, %v3520
    %v3905 = vmul.f32 %v1575, %v3521
    %v3906 = vmul.f32 %v1580, %v3522
    %v3907 = vmul.f32 %v1585, %v3523
    %v3908 = vmul.f32 %v1590, %v3524
    %v3909 = vmul.f32 %v1595, %v3525
    %v3910 = vmul.f32 %v1600, %v3526
    %v3911 = vmul.f32 %v1605, %v3527
    %v3912 = vmul.f32 %v1610, %v3528
    %v3913 = vmul.f32 %v1615, %v3529
    %v3914 = vmul.f32 %v1620, %v3530
    %v3915 = vmul.f32 %v1625, %v3531
    %v3916 = vmul.f32 %v1630, %v3532
    %v3917 = vmul.f32 %v1635, %v3533
    %v3918 = vmul.f32 %v1640, %v3534
    %v3919 = vmul.f32 %v1645, %v3535
    %v3920 = vmul.f32 %v1650, %v3536
    %v3921 = vmul.f32 %v1655, %v3537
    %v3922 = vmul.f32 %v1660, %v3538
    %v3923 = vmul.f32 %v1665, %v3539
    %v3924 = vmul.f32 %v1670, %v3540
    %v3925 = vmul.f32 %v1675, %v3541
    %v3926 = vmul.f32 %v1680, %v3542
    %v3927 = vmul.f32 %v1685, %v3543
    %v3928 = vmul.f32 %v1690, %v3544
    %v3929 = vmul.f32 %v1695, %v3545
    %v3930 = vmul.f32 %v1700, %v3546
    %v3931 = vmul.f32 %v1705, %v3547
    %v3932 = vmul.f32 %v1710, %v3548
    %v3933 = vmul.f32 %v1715, %v3549
    %v3934 = vmul.f32 %v1720, %v3550
    %v3935 = vmul.f32 %v1725, %v3551
    %v3936 = vmul.f32 %v1730, %v3552
    %v3937 = vmul.f32 %v1735, %v3553
    %v3938 = vmul.f32 %v1740, %v3554
    %v3939 = vmul.f32 %v1745, %v3555
    %v3940 = vmul.f32 %v1750, %v3556
    %v3941 = vmul.f32 %v1755, %v3557
    %v3942 = vmul.f32 %v1760, %v3558
    %v3943 = vmul.f32 %v1765, %v3559
    %v3944 = vmul.f32 %v1770, %v3560
    %v3945 = vmul.f32 %v1775, %v3561
    %v3946 = vmul.f32 %v1780, %v3562
    %v3947 = vmul.f32 %v1785, %v3563
    %v3948 = vmul.f32 %v1790, %v3564
    %v3949 = vmul.f32 %v1795, %v3565
    %v3950 = vmul.f32 %v1800, %v3566
    %v3951 = vmul.f32 %v1805, %v3567
    %v3952 = vmul.f32 %v1810, %v3568
    %v3953 = vmul.f32 %v1815, %v3569
    %v3954 = vmul.f32 %v1820, %v3570
    %v3955 = vmul.f32 %v1825, %v3571
    %v3956 = vmul.f32 %v1830, %v3572
    %v3957 = vmul.f32 %v1835, %v3573
    %v3958 = vmul.f32 %v1840, %v3574
    %v3959 = vmul.f32 %v1845, %v3575
    %v3960 = vmul.f32 %v1850, %v3576
    %v3961 = vmul.f32 %v1855, %v3577
    %v3962 = vmul.f32 %v1860, %v3578
    %v3963 = vmul.f32 %v1865, %v3579
    %v3964 = vmul.f32 %v1870, %v3580
    %v3965 = vmul.f32 %v1875, %v3581
    %v3966 = vmul.f32 %v1880, %v3582
    %v3967 = vmul.f32 %v1885, %v3583
    %v3968 = vmul.f32 %v1890, %v3584
    %v3969 = vmul.f32 %v1895, %v3585
    %v3970 = vmul.f32 %v1900, %v3586
    %v3971 = vmul.f32 %v1905, %v3587
    %v3972 = vmul.f32 %v1910, %v3588
    %v3973 = vmul.f32 %v1915, %v3589
    %v3974 = vmul.f32 %v1920, %v3590
    %v3975 = vmul.f32 %v1925, %v3591
    %v3976 = vmul.f32 %v1930, %v3592
    %v3977 = vmul.f32 %v1935, %v3593
    %v3978 = vmul.f32 %v1940, %v3594
    %v3979 = vmul.f32 %v1945, %v3595
    %v3980 = vmul.f32 %v1950, %v3596
    %v3981 = vmul.f32 %v1955, %v3597
    %v3982 = vmul.f32 %v1960, %v3598
    %v3983 = vmul.f32 %v1965, %v3599
    %v3984 = vmul.f32 %v1970, %v3600
    %v3985 = vmul.f32 %v1975, %v3601
    %v3986 = vmul.f32 %v1980, %v3602
    %v3987 = vmul.f32 %v1985, %v3603
    %v3988 = vmul.f32 %v1990, %v3604
    %v3989 = vmul.f32 %v1995, %v3605
    %v3990 = vmul.f32 %v2000, %v3606
    %v3991 = vmul.f32 %v2005, %v3607
    %v3992 = vmul.f32 %v2010, %v3608
    %v3993 = vmul.f32 %v2015, %v3609
    %v3994 = vmul.f32 %v2020, %v3610
    %v3995 = vmul.f32 %v2025, %v3611
    %v3996 = vmul.f32 %v2030, %v3612
    %v3997 = vmul.f32 %v2035, %v3613
    %v3998 = vmul.f32 %v2040, %v3614
    %v3999 = vmul.f32 %v2045, %v3615
    %v4000 = vmul.f32 %v2050, %v3616
    %v4001 = vmul.f32 %v2055, %v3617
    %v4002 = vmul.f32 %v2060, %v3618
    %v4003 = vmul.f32 %v2065, %v3619
    %v4004 = vmul.f32 %v2070, %v3620
    %v4005 = vmul.f32 %v2075, %v3621
    %v4006 = vmul.f32 %v2080, %v3622
    %v4007 = vmul.f32 %v2085, %v3623
    %v4008 = vld [vmem:[%s2] sm:$0xff]
    %v4009 = vld [vmem:[%s2 + $0x8] sm:$0xff]
    %v4010 = vld [vmem:[%s2 + $0x10] sm:$0xff]
    %v4011 = vld [vmem:[%s2 + $0x18] sm:$0xff]
    %v4012 = vld [vmem:[%s3] sm:$0xff]
    %4014 = vset.pattern.permute.xlu0 0
    %4015 = vperm.xlu0 %4014, %v4012
    %v4016 = vpop.permute.xlu0 %4015
    %v4018 = vmul.f32 %v4008, %v4016
    %v4019 = vmul.f32 %v4009, %v4016
    %v4020 = vmul.f32 %v4010, %v4016
    %v4021 = vmul.f32 %v4011, %v4016
    %v4022 = vrot.slane %v4018, 4
    %v4023 = vadd.f32 %v4018, %v4022
    %v4024 = vrot.slane %v4023, 2
    %v4025 = vadd.f32 %v4023, %v4024
    %v4026 = vrot.slane %v4025, 1
    %v4027 = vadd.f32 %v4025, %v4026
    %v4028 = vrot.slane %v4019, 4
    %v4029 = vadd.f32 %v4019, %v4028
    %v4030 = vrot.slane %v4029, 2
    %v4031 = vadd.f32 %v4029, %v4030
    %v4032 = vrot.slane %v4031, 1
    %v4033 = vadd.f32 %v4031, %v4032
    %v4034 = vrot.slane %v4020, 4
    %v4035 = vadd.f32 %v4020, %v4034
    %v4036 = vrot.slane %v4035, 2
    %v4037 = vadd.f32 %v4035, %v4036
    %v4038 = vrot.slane %v4037, 1
    %v4039 = vadd.f32 %v4037, %v4038
    %v4040 = vrot.slane %v4021, 4
    %v4041 = vadd.f32 %v4021, %v4040
    %v4042 = vrot.slane %v4041, 2
    %v4043 = vadd.f32 %v4041, %v4042
    %v4044 = vrot.slane %v4043, 1
    %v4045 = vadd.f32 %v4043, %v4044
    %v4046 = vld [vmem:[%s4] sm:$0xf]
    %vm4047 = vcmp.ge.f32.partialorder %v4046, 0.5
    %v4048 = vsel %vm4047, 1, 0
    %v4049 = vcvt.s32.f32 %v4048
    %v4051 = vlaneseq
    %v4052 = vshrl.u32 %v4051, 7
    %v4053 = vsub.s32 0, %v4052
    %v4054 = vrot.slane %v4049, %v4053
    %v4055 = vlaneseq
    %v4056 = vshrl.u32 %v4055, 7
    %v4057 = vsub.s32 1, %v4056
    %v4058 = vrot.slane %v4049, %v4057
    %v4059 = vlaneseq
    %v4060 = vshrl.u32 %v4059, 7
    %v4061 = vsub.s32 2, %v4060
    %v4062 = vrot.slane %v4049, %v4061
    %v4063 = vlaneseq
    %v4064 = vshrl.u32 %v4063, 7
    %v4065 = vsub.s32 3, %v4064
    %v4066 = vrot.slane %v4049, %v4065
    %vm4071 = vcmask 1040384
    %v4072 = vsel %vm4071, %v4054, 0.0
    %v4073 = vsel %vm4071, %v4058, 0.0
    %v4074 = vadd.f32 %v4072, %v4073
    %v4075 = vsel %vm4071, %v4062, 0.0
    %v4076 = vadd.f32 %v4074, %v4075
    %v4077 = vsel %vm4071, %v4066, 0.0
    %v4078 = vadd.f32 %v4076, %v4077
    %4079 = vadd.xlane.f32.xlu0 %v4078
    %v4080 = vpop.xlane.xlu0 %4079
    %v4081 = vrot.slane %v4080, 4
    %v4082 = vadd.f32 %v4080, %v4081
    %v4083 = vrot.slane %v4082, 2
    %v4084 = vadd.f32 %v4082, %v4083
    %v4085 = vrot.slane %v4084, 1
    %v4086 = vadd.f32 %v4084, %v4085
    %s4087 = vtos %v4086
    %s4088 = ssub.f32 512.0, %s4087
    %v4089 = vrcp.pop 512.0
    %s4090 = vtos %v4089
    %s4091 = smul.f32 %s4088, %s4090
    %vm4092 = vcmp.ge.f32.partialorder %v4027, 0.0
    %vm4093 = vcmp.ge.f32.partialorder %v4033, 0.0
    %vm4094 = vcmp.ge.f32.partialorder %v4039, 0.0
    %vm4095 = vcmp.ge.f32.partialorder %v4045, 0.0
    %v4096 = vsel %vm4092, 1, 0
    %v4097 = vsel %vm4093, 1, 0
    %v4098 = vsel %vm4094, 1, 0
    %v4099 = vsel %vm4095, 1, 0
    %v4100 = vcvt.s32.f32 %v4096
    %v4101 = vcvt.s32.f32 %v4097
    %v4102 = vcvt.s32.f32 %v4098
    %v4103 = vcvt.s32.f32 %v4099
    %v4108 = vcombine.low %v4100, %v4101
    %v4109 = vcombine.low %v4102, %v4103
    %v4111 = vunpack.c.l.s4 1966171168
    %v4112 = vunpack.c.0.s8 %v4111
    %v4113 = vlaneseq
    %v4114 = vshrl.u32 %v4113, 7
    %v4115 = vsub.s32 %v4112, %v4114
    %v4116 = vrot.slane %v4108, %v4115
    %v4118 = vunpack.c.l.s4 1966171168
    %v4119 = vunpack.c.0.s8 %v4118
    %v4120 = vlaneseq
    %v4121 = vshrl.u32 %v4120, 7
    %v4122 = vsub.s32 %v4119, %v4121
    %v4123 = vrot.slane %v4109, %v4122
    %v4124 = vcombine.low %v4116, %v4123
    %v4126 = vunpack.c.l.s4 1966171168
    %v4127 = vunpack.c.0.s8 %v4126
    %v4128 = vlaneseq
    %v4129 = vshrl.u32 %v4128, 7
    %v4130 = vsub.s32 %v4127, %v4129
    %v4131 = vrot.slane %v4124, %v4130
    %v4133 = vsub.f32 %v4049, %v4131
    %v4135 = vlaneseq
    %v4136 = vshrl.u32 %v4135, 7
    %v4137 = vsub.s32 0, %v4136
    %v4138 = vrot.slane %v4133, %v4137
    %v4139 = vlaneseq
    %v4140 = vshrl.u32 %v4139, 7
    %v4141 = vsub.s32 1, %v4140
    %v4142 = vrot.slane %v4133, %v4141
    %v4143 = vlaneseq
    %v4144 = vshrl.u32 %v4143, 7
    %v4145 = vsub.s32 2, %v4144
    %v4146 = vrot.slane %v4133, %v4145
    %v4147 = vlaneseq
    %v4148 = vshrl.u32 %v4147, 7
    %v4149 = vsub.s32 3, %v4148
    %v4150 = vrot.slane %v4133, %v4149
    %v4155 = vmul.f32 %v4027, %v4138
    %v4156 = vmul.f32 %v4033, %v4142
    %v4157 = vmul.f32 %v4039, %v4146
    %v4158 = vmul.f32 %v4045, %v4150
    %v4159 = vmul.f32 %v4027, 2.0
    %v4160 = vmul.f32 %v4033, 2.0
    %v4161 = vmul.f32 %v4039, 2.0
    %v4162 = vmul.f32 %v4045, 2.0
    %v4163 = vmul.f32 %v4159, %v4100
    %v4164 = vmul.f32 %v4160, %v4101
    %v4165 = vmul.f32 %v4161, %v4102
    %v4166 = vmul.f32 %v4162, %v4103
    %v4167 = vsub.f32 %v4027, %v4163
    %v4168 = vsub.f32 %v4033, %v4164
    %v4169 = vsub.f32 %v4039, %v4165
    %v4170 = vsub.f32 %v4045, %v4166
    %v4171 = vmul.f32 %v4167, 1.442695
    %v4172 = vpow.pop %v4171
    %v4173 = vmul.f32 %v4168, 1.442695
    %v4174 = vpow.pop %v4173
    %v4175 = vmul.f32 %v4169, 1.442695
    %v4176 = vpow.pop %v4175
    %v4177 = vmul.f32 %v4170, 1.442695
    %v4178 = vpow.pop %v4177
    %v4179 = vadd.f32 %v4172, 1.0
    %v4180 = vadd.f32 %v4174, 1.0
    %v4181 = vadd.f32 %v4176, 1.0
    %v4182 = vadd.f32 %v4178, 1.0
    %v4183 = vlog2.pop %v4179
    %v4184 = vmul.f32 %v4183, 0.6931472
    %v4185 = vlog2.pop %v4180
    %v4186 = vmul.f32 %v4185, 0.6931472
    %v4187 = vlog2.pop %v4181
    %v4188 = vmul.f32 %v4187, 0.6931472
    %v4189 = vlog2.pop %v4182
    %v4190 = vmul.f32 %v4189, 0.6931472
    %v4191 = vsub.f32 %v4155, %v4184
    %v4192 = vsub.f32 %v4156, %v4186
    %v4193 = vsub.f32 %v4157, %v4188
    %v4194 = vsub.f32 %v4158, %v4190
    %v4195 = vsub.f32 0.0, %v4049
    %v4200 = vcombine.low %v4191, %v4192
    %v4201 = vcombine.low %v4193, %v4194
    %v4203 = vunpack.c.l.s4 1966171168
    %v4204 = vunpack.c.0.s8 %v4203
    %v4205 = vlaneseq
    %v4206 = vshrl.u32 %v4205, 7
    %v4207 = vsub.s32 %v4204, %v4206
    %v4208 = vrot.slane %v4200, %v4207
    %v4210 = vunpack.c.l.s4 1966171168
    %v4211 = vunpack.c.0.s8 %v4210
    %v4212 = vlaneseq
    %v4213 = vshrl.u32 %v4212, 7
    %v4214 = vsub.s32 %v4211, %v4213
    %v4215 = vrot.slane %v4201, %v4214
    %v4216 = vcombine.low %v4208, %v4215
    %v4218 = vunpack.c.l.s4 1966171168
    %v4219 = vunpack.c.0.s8 %v4218
    %v4220 = vlaneseq
    %v4221 = vshrl.u32 %v4220, 7
    %v4222 = vsub.s32 %v4219, %v4221
    %v4223 = vrot.slane %v4216, %v4222
    %v4225 = vmul.f32 %v4195, %v4223
    %v4227 = vlaneseq
    %v4228 = vshrl.u32 %v4227, 7
    %v4229 = vsub.s32 0, %v4228
    %v4230 = vrot.slane %v4225, %v4229
    %v4231 = vlaneseq
    %v4232 = vshrl.u32 %v4231, 7
    %v4233 = vsub.s32 1, %v4232
    %v4234 = vrot.slane %v4225, %v4233
    %v4235 = vlaneseq
    %v4236 = vshrl.u32 %v4235, 7
    %v4237 = vsub.s32 2, %v4236
    %v4238 = vrot.slane %v4225, %v4237
    %v4239 = vlaneseq
    %v4240 = vshrl.u32 %v4239, 7
    %v4241 = vsub.s32 3, %v4240
    %v4242 = vrot.slane %v4225, %v4241
    %v4247 = vsel %vm4071, %v4230, 0.0
    %v4248 = vsel %vm4071, %v4234, 0.0
    %v4249 = vadd.f32 %v4247, %v4248
    %v4250 = vsel %vm4071, %v4238, 0.0
    %v4251 = vadd.f32 %v4249, %v4250
    %v4252 = vsel %vm4071, %v4242, 0.0
    %v4253 = vadd.f32 %v4251, %v4252
    %4254 = vadd.xlane.f32.xlu0 %v4253
    %v4255 = vpop.xlane.xlu0 %4254
    %v4256 = vrot.slane %v4255, 4
    %v4257 = vadd.f32 %v4255, %v4256
    %v4258 = vrot.slane %v4257, 2
    %v4259 = vadd.f32 %v4257, %v4258
    %v4260 = vrot.slane %v4259, 1
    %v4261 = vadd.f32 %v4259, %v4260
    %s4262 = vtos %v4261
    %v4263 = vsub.f32 1.0, %v4049
    %v4264 = vsub.f32 0.0, %v4263
    %v4265 = vmul.f32 %v4264, %v4223
    %v4267 = vlaneseq
    %v4268 = vshrl.u32 %v4267, 7
    %v4269 = vsub.s32 0, %v4268
    %v4270 = vrot.slane %v4265, %v4269
    %v4271 = vlaneseq
    %v4272 = vshrl.u32 %v4271, 7
    %v4273 = vsub.s32 1, %v4272
    %v4274 = vrot.slane %v4265, %v4273
    %v4275 = vlaneseq
    %v4276 = vshrl.u32 %v4275, 7
    %v4277 = vsub.s32 2, %v4276
    %v4278 = vrot.slane %v4265, %v4277
    %v4279 = vlaneseq
    %v4280 = vshrl.u32 %v4279, 7
    %v4281 = vsub.s32 3, %v4280
    %v4282 = vrot.slane %v4265, %v4281
    %v4287 = vsel %vm4071, %v4270, 0.0
    %v4288 = vsel %vm4071, %v4274, 0.0
    %v4289 = vadd.f32 %v4287, %v4288
    %v4290 = vsel %vm4071, %v4278, 0.0
    %v4291 = vadd.f32 %v4289, %v4290
    %v4292 = vsel %vm4071, %v4282, 0.0
    %v4293 = vadd.f32 %v4291, %v4292
    %4294 = vadd.xlane.f32.xlu0 %v4293
    %v4295 = vpop.xlane.xlu0 %4294
    %v4296 = vrot.slane %v4295, 4
    %v4297 = vadd.f32 %v4295, %v4296
    %v4298 = vrot.slane %v4297, 2
    %v4299 = vadd.f32 %v4297, %v4298
    %v4300 = vrot.slane %v4299, 1
    %v4301 = vadd.f32 %v4299, %v4300
    %s4302 = vtos %v4301
    %s4303 = smul.f32 %s4091, %s4262
    %s4304 = ssub.f32 1.0, %s4091
    %s4305 = smul.f32 %s4304, %s4302
    %s4306 = sadd.f32 %s4303, %s4305
    %v4307 = vrcp.pop 512.0
    %s4308 = vtos %v4307
    %s4309 = smul.f32 %s4306, %s4308
    %s4310 = scalar_lea.smem [#allocation2], 0
    %4311 = sst [smem:[%s4310]] %s4309
    %v4312 = vld [vmem:[%s5] sm:$0xff]
    %v4313 = vld [vmem:[%s5 + $0x8] sm:$0xff]
    %v4314 = vld [vmem:[%s5 + $0x10] sm:$0xff]
    %v4315 = vld [vmem:[%s5 + $0x18] sm:$0xff]
    %v4316 = vld [vmem:[%s5 + $0x20] sm:$0xff]
    %v4317 = vld [vmem:[%s5 + $0x28] sm:$0xff]
    %v4318 = vld [vmem:[%s5 + $0x30] sm:$0xff]
    %v4319 = vld [vmem:[%s5 + $0x38] sm:$0xff]
    %4320 = vmatprep.subr.mxu0 %v3783
    %4321 = vmatpush1.msra.mxu0 %v3782
    %4322 = vmatprep.subr.mxu0 %v3781
    %4323 = vmatpush1.msra.mxu0 %v3780
    %4324 = vmatprep.subr.mxu0 %v3779
    %4325 = vmatpush1.msra.mxu0 %v3778
    %4326 = vmatprep.subr.mxu0 %v3777
    %4327 = vmatpush1.msra.mxu0 %v3776
    %4328 = vmatprep.subr.mxu0 %v3775
    %4329 = vmatpush1.msra.mxu0 %v3774
    %4330 = vmatprep.subr.mxu0 %v3773
    %4331 = vmatpush1.msra.mxu0 %v3772
    %4332 = vmatprep.subr.mxu0 %v3771
    %4333 = vmatpush1.msra.mxu0 %v3770
    %4334 = vmatprep.subr.mxu0 %v3769
    %4335 = vmatpush1.msra.mxu0 %v3768
    %4336 = vmatprep.subr.mxu0 %v3767
    %4337 = vmatpush1.msra.mxu0 %v3766
    %4338 = vmatprep.subr.mxu0 %v3765
    %4339 = vmatpush1.msra.mxu0 %v3764
    %4340 = vmatprep.subr.mxu0 %v3763
    %4341 = vmatpush1.msra.mxu0 %v3762
    %4342 = vmatprep.subr.mxu0 %v3761
    %4343 = vmatpush1.msra.mxu0 %v3760
    %4344 = vmatprep.subr.mxu0 %v3759
    %4345 = vmatpush1.msra.mxu0 %v3758
    %4346 = vmatprep.subr.mxu0 %v3757
    %4347 = vmatpush1.msra.mxu0 %v3756
    %4348 = vmatprep.subr.mxu0 %v3755
    %4349 = vmatpush1.msra.mxu0 %v3754
    %4350 = vmatprep.subr.mxu0 %v3753
    %4351 = vmatpush1.msra.mxu0 %v3752
    %4352 = vmatprep.subr.mxu0 %v3815
    %4353 = vmatpush2.msra.mxu0 %v3814
    %4354 = vmatprep.subr.mxu0 %v3813
    %4355 = vmatpush2.msra.mxu0 %v3812
    %4356 = vmatprep.subr.mxu0 %v3811
    %4357 = vmatpush2.msra.mxu0 %v3810
    %4358 = vmatprep.subr.mxu0 %v3809
    %4359 = vmatpush2.msra.mxu0 %v3808
    %4360 = vmatprep.subr.mxu0 %v3807
    %4361 = vmatpush2.msra.mxu0 %v3806
    %4362 = vmatprep.subr.mxu0 %v3805
    %4363 = vmatpush2.msra.mxu0 %v3804
    %4364 = vmatprep.subr.mxu0 %v3803
    %4365 = vmatpush2.msra.mxu0 %v3802
    %4366 = vmatprep.subr.mxu0 %v3801
    %4367 = vmatpush2.msra.mxu0 %v3800
    %4368 = vmatprep.subr.mxu0 %v3799
    %4369 = vmatpush2.msra.mxu0 %v3798
    %4370 = vmatprep.subr.mxu0 %v3797
    %4371 = vmatpush2.msra.mxu0 %v3796
    %4372 = vmatprep.subr.mxu0 %v3795
    %4373 = vmatpush2.msra.mxu0 %v3794
    %4374 = vmatprep.subr.mxu0 %v3793
    %4375 = vmatpush2.msra.mxu0 %v3792
    %4376 = vmatprep.subr.mxu0 %v3791
    %4377 = vmatpush2.msra.mxu0 %v3790
    %4378 = vmatprep.subr.mxu0 %v3789
    %4379 = vmatpush2.msra.mxu0 %v3788
    %4380 = vmatprep.subr.mxu0 %v3787
    %4381 = vmatpush2.msra.mxu0 %v3786
    %4382 = vmatprep.subr.mxu0 %v3785
    %4383 = vmatpush2.msra.mxu0 %v3784
    %4384 = vmatprep.mubr.f32.mxu0 %v4313
    %4385 = vmatmul.mubr.f32.gmra.mxu0 %v4312
    %v4386 = vpop.f32.mrf.mxu0
    %v4387 = vadd.f32 0.0, %v4386
    %v4388 = vpop.f32.mrf.mxu0
    %v4389 = vadd.f32 0.0, %v4388
    %4390 = vmatprep.mubr.f32.mxu0 %v4317
    %4391 = vmatmul.mubr.f32.gmra.mxu0 %v4316
    %v4392 = vpop.f32.mrf.mxu0
    %v4393 = vadd.f32 0.0, %v4392
    %v4394 = vpop.f32.mrf.mxu0
    %v4395 = vadd.f32 0.0, %v4394
    %4396 = vdwg.mxu0
    %4397 = vmatprep.subr.mxu0 %v3847
    %4398 = vmatpush1.msra.mxu0 %v3846
    %4399 = vmatprep.subr.mxu0 %v3845
    %4400 = vmatpush1.msra.mxu0 %v3844
    %4401 = vmatprep.subr.mxu0 %v3843
    %4402 = vmatpush1.msra.mxu0 %v3842
    %4403 = vmatprep.subr.mxu0 %v3841
    %4404 = vmatpush1.msra.mxu0 %v3840
    %4405 = vmatprep.subr.mxu0 %v3839
    %4406 = vmatpush1.msra.mxu0 %v3838
    %4407 = vmatprep.subr.mxu0 %v3837
    %4408 = vmatpush1.msra.mxu0 %v3836
    %4409 = vmatprep.subr.mxu0 %v3835
    %4410 = vmatpush1.msra.mxu0 %v3834
    %4411 = vmatprep.subr.mxu0 %v3833
    %4412 = vmatpush1.msra.mxu0 %v3832
    %4413 = vmatprep.subr.mxu0 %v3831
    %4414 = vmatpush1.msra.mxu0 %v3830
    %4415 = vmatprep.subr.mxu0 %v3829
    %4416 = vmatpush1.msra.mxu0 %v3828
    %4417 = vmatprep.subr.mxu0 %v3827
    %4418 = vmatpush1.msra.mxu0 %v3826
    %4419 = vmatprep.subr.mxu0 %v3825
    %4420 = vmatpush1.msra.mxu0 %v3824
    %4421 = vmatprep.subr.mxu0 %v3823
    %4422 = vmatpush1.msra.mxu0 %v3822
    %4423 = vmatprep.subr.mxu0 %v3821
    %4424 = vmatpush1.msra.mxu0 %v3820
    %4425 = vmatprep.subr.mxu0 %v3819
    %4426 = vmatpush1.msra.mxu0 %v3818
    %4427 = vmatprep.subr.mxu0 %v3817
    %4428 = vmatpush1.msra.mxu0 %v3816
    %4429 = vmatprep.subr.mxu0 %v3879
    %4430 = vmatpush2.msra.mxu0 %v3878
    %4431 = vmatprep.subr.mxu0 %v3877
    %4432 = vmatpush2.msra.mxu0 %v3876
    %4433 = vmatprep.subr.mxu0 %v3875
    %4434 = vmatpush2.msra.mxu0 %v3874
    %4435 = vmatprep.subr.mxu0 %v3873
    %4436 = vmatpush2.msra.mxu0 %v3872
    %4437 = vmatprep.subr.mxu0 %v3871
    %4438 = vmatpush2.msra.mxu0 %v3870
    %4439 = vmatprep.subr.mxu0 %v3869
    %4440 = vmatpush2.msra.mxu0 %v3868
    %4441 = vmatprep.subr.mxu0 %v3867
    %4442 = vmatpush2.msra.mxu0 %v3866
    %4443 = vmatprep.subr.mxu0 %v3865
    %4444 = vmatpush2.msra.mxu0 %v3864
    %4445 = vmatprep.subr.mxu0 %v3863
    %4446 = vmatpush2.msra.mxu0 %v3862
    %4447 = vmatprep.subr.mxu0 %v3861
    %4448 = vmatpush2.msra.mxu0 %v3860
    %4449 = vmatprep.subr.mxu0 %v3859
    %4450 = vmatpush2.msra.mxu0 %v3858
    %4451 = vmatprep.subr.mxu0 %v3857
    %4452 = vmatpush2.msra.mxu0 %v3856
    %4453 = vmatprep.subr.mxu0 %v3855
    %4454 = vmatpush2.msra.mxu0 %v3854
    %4455 = vmatprep.subr.mxu0 %v3853
    %4456 = vmatpush2.msra.mxu0 %v3852
    %4457 = vmatprep.subr.mxu0 %v3851
    %4458 = vmatpush2.msra.mxu0 %v3850
    %4459 = vmatprep.subr.mxu0 %v3849
    %4460 = vmatpush2.msra.mxu0 %v3848
    %4461 = vmatprep.mubr.f32.mxu0 %v4315
    %4462 = vmatmul.mubr.f32.gmra.mxu0 %v4314
    %v4463 = vpop.f32.mrf.mxu0
    %v4464 = vadd.f32 %v4387, %v4463
    %v4465 = vpop.f32.mrf.mxu0
    %v4466 = vadd.f32 %v4389, %v4465
    %4467 = vmatprep.mubr.f32.mxu0 %v4319
    %4468 = vmatmul.mubr.f32.gmra.mxu0 %v4318
    %v4469 = vpop.f32.mrf.mxu0
    %v4470 = vadd.f32 %v4393, %v4469
    %v4471 = vpop.f32.mrf.mxu0
    %v4472 = vadd.f32 %v4395, %v4471
    %4473 = vdwg.mxu0
    %4474 = vmatprep.subr.mxu0 0.0
    %4475 = vmatpush1.msra.mxu0 %v3959
    %4476 = vmatprep.subr.mxu0 0.0
    %4477 = vmatpush1.msra.mxu0 %v3958
    %4478 = vmatprep.subr.mxu0 0.0
    %4479 = vmatpush1.msra.mxu0 %v3957
    %4480 = vmatprep.subr.mxu0 0.0
    %4481 = vmatpush1.msra.mxu0 %v3956
    %4482 = vmatprep.subr.mxu0 0.0
    %4483 = vmatpush1.msra.mxu0 %v3955
    %4484 = vmatprep.subr.mxu0 0.0
    %4485 = vmatpush1.msra.mxu0 %v3954
    %4486 = vmatprep.subr.mxu0 0.0
    %4487 = vmatpush1.msra.mxu0 %v3953
    %4488 = vmatprep.subr.mxu0 0.0
    %4489 = vmatpush1.msra.mxu0 %v3952
    %4490 = vmatprep.subr.mxu0 0.0
    %4491 = vmatpush1.msra.mxu0 %v3951
    %4492 = vmatprep.subr.mxu0 0.0
    %4493 = vmatpush1.msra.mxu0 %v3950
    %4494 = vmatprep.subr.mxu0 0.0
    %4495 = vmatpush1.msra.mxu0 %v3949
    %4496 = vmatprep.subr.mxu0 0.0
    %4497 = vmatpush1.msra.mxu0 %v3948
    %4498 = vmatprep.subr.mxu0 0.0
    %4499 = vmatpush1.msra.mxu0 %v3947
    %4500 = vmatprep.subr.mxu0 0.0
    %4501 = vmatpush1.msra.mxu0 %v3946
    %4502 = vmatprep.subr.mxu0 0.0
    %4503 = vmatpush1.msra.mxu0 %v3945
    %4504 = vmatprep.subr.mxu0 0.0
    %4505 = vmatpush1.msra.mxu0 %v3944
    %4506 = vmatprep.subr.mxu0 0.0
    %4507 = vmatpush2.msra.mxu0 %v3975
    %4508 = vmatprep.subr.mxu0 0.0
    %4509 = vmatpush2.msra.mxu0 %v3974
    %4510 = vmatprep.subr.mxu0 0.0
    %4511 = vmatpush2.msra.mxu0 %v3973
    %4512 = vmatprep.subr.mxu0 0.0
    %4513 = vmatpush2.msra.mxu0 %v3972
    %4514 = vmatprep.subr.mxu0 0.0
    %4515 = vmatpush2.msra.mxu0 %v3971
    %4516 = vmatprep.subr.mxu0 0.0
    %4517 = vmatpush2.msra.mxu0 %v3970
    %4518 = vmatprep.subr.mxu0 0.0
    %4519 = vmatpush2.msra.mxu0 %v3969
    %4520 = vmatprep.subr.mxu0 0.0
    %4521 = vmatpush2.msra.mxu0 %v3968
    %4522 = vmatprep.subr.mxu0 0.0
    %4523 = vmatpush2.msra.mxu0 %v3967
    %4524 = vmatprep.subr.mxu0 0.0
    %4525 = vmatpush2.msra.mxu0 %v3966
    %4526 = vmatprep.subr.mxu0 0.0
    %4527 = vmatpush2.msra.mxu0 %v3965
    %4528 = vmatprep.subr.mxu0 0.0
    %4529 = vmatpush2.msra.mxu0 %v3964
    %4530 = vmatprep.subr.mxu0 0.0
    %4531 = vmatpush2.msra.mxu0 %v3963
    %4532 = vmatprep.subr.mxu0 0.0
    %4533 = vmatpush2.msra.mxu0 %v3962
    %4534 = vmatprep.subr.mxu0 0.0
    %4535 = vmatpush2.msra.mxu0 %v3961
    %4536 = vmatprep.subr.mxu0 0.0
    %4537 = vmatpush2.msra.mxu0 %v3960
    %4538 = vmatprep.mubr.f32.mxu0 %v4313
    %4539 = vmatmul.mubr.f32.gmra.mxu0 %v4312
    %v4540 = vpop.f32.mrf.mxu0
    %v4541 = vadd.f32 0.0, %v4540
    %v4542 = vpop.f32.mrf.mxu0
    %4543 = vmatprep.mubr.f32.mxu0 %v4317
    %4544 = vmatmul.mubr.f32.gmra.mxu0 %v4316
    %v4545 = vpop.f32.mrf.mxu0
    %v4546 = vadd.f32 0.0, %v4545
    %v4547 = vpop.f32.mrf.mxu0
    %4548 = vdwg.mxu0
    %4549 = vmatprep.subr.mxu0 0.0
    %4550 = vmatpush1.msra.mxu0 %v3991
    %4551 = vmatprep.subr.mxu0 0.0
    %4552 = vmatpush1.msra.mxu0 %v3990
    %4553 = vmatprep.subr.mxu0 0.0
    %4554 = vmatpush1.msra.mxu0 %v3989
    %4555 = vmatprep.subr.mxu0 0.0
    %4556 = vmatpush1.msra.mxu0 %v3988
    %4557 = vmatprep.subr.mxu0 0.0
    %4558 = vmatpush1.msra.mxu0 %v3987
    %4559 = vmatprep.subr.mxu0 0.0
    %4560 = vmatpush1.msra.mxu0 %v3986
    %4561 = vmatprep.subr.mxu0 0.0
    %4562 = vmatpush1.msra.mxu0 %v3985
    %4563 = vmatprep.subr.mxu0 0.0
    %4564 = vmatpush1.msra.mxu0 %v3984
    %4565 = vmatprep.subr.mxu0 0.0
    %4566 = vmatpush1.msra.mxu0 %v3983
    %4567 = vmatprep.subr.mxu0 0.0
    %4568 = vmatpush1.msra.mxu0 %v3982
    %4569 = vmatprep.subr.mxu0 0.0
    %4570 = vmatpush1.msra.mxu0 %v3981
    %4571 = vmatprep.subr.mxu0 0.0
    %4572 = vmatpush1.msra.mxu0 %v3980
    %4573 = vmatprep.subr.mxu0 0.0
    %4574 = vmatpush1.msra.mxu0 %v3979
    %4575 = vmatprep.subr.mxu0 0.0
    %4576 = vmatpush1.msra.mxu0 %v3978
    %4577 = vmatprep.subr.mxu0 0.0
    %4578 = vmatpush1.msra.mxu0 %v3977
    %4579 = vmatprep.subr.mxu0 0.0
    %4580 = vmatpush1.msra.mxu0 %v3976
    %4581 = vmatprep.subr.mxu0 0.0
    %4582 = vmatpush2.msra.mxu0 %v4007
    %4583 = vmatprep.subr.mxu0 0.0
    %4584 = vmatpush2.msra.mxu0 %v4006
    %4585 = vmatprep.subr.mxu0 0.0
    %4586 = vmatpush2.msra.mxu0 %v4005
    %4587 = vmatprep.subr.mxu0 0.0
    %4588 = vmatpush2.msra.mxu0 %v4004
    %4589 = vmatprep.subr.mxu0 0.0
    %4590 = vmatpush2.msra.mxu0 %v4003
    %4591 = vmatprep.subr.mxu0 0.0
    %4592 = vmatpush2.msra.mxu0 %v4002
    %4593 = vmatprep.subr.mxu0 0.0
    %4594 = vmatpush2.msra.mxu0 %v4001
    %4595 = vmatprep.subr.mxu0 0.0
    %4596 = vmatpush2.msra.mxu0 %v4000
    %4597 = vmatprep.subr.mxu0 0.0
    %4598 = vmatpush2.msra.mxu0 %v3999
    %4599 = vmatprep.subr.mxu0 0.0
    %4600 = vmatpush2.msra.mxu0 %v3998
    %4601 = vmatprep.subr.mxu0 0.0
    %4602 = vmatpush2.msra.mxu0 %v3997
    %4603 = vmatprep.subr.mxu0 0.0
    %4604 = vmatpush2.msra.mxu0 %v3996
    %4605 = vmatprep.subr.mxu0 0.0
    %4606 = vmatpush2.msra.mxu0 %v3995
    %4607 = vmatprep.subr.mxu0 0.0
    %4608 = vmatpush2.msra.mxu0 %v3994
    %4609 = vmatprep.subr.mxu0 0.0
    %4610 = vmatpush2.msra.mxu0 %v3993
    %4611 = vmatprep.subr.mxu0 0.0
    %4612 = vmatpush2.msra.mxu0 %v3992
    %4613 = vmatprep.mubr.f32.mxu0 %v4315
    %4614 = vmatmul.mubr.f32.gmra.mxu0 %v4314
    %v4615 = vpop.f32.mrf.mxu0
    %v4616 = vadd.f32 %v4541, %v4615
    %v4617 = vpop.f32.mrf.mxu0
    %4618 = vmatprep.mubr.f32.mxu0 %v4319
    %4619 = vmatmul.mubr.f32.gmra.mxu0 %v4318
    %v4620 = vpop.f32.mrf.mxu0
    %v4621 = vadd.f32 %v4546, %v4620
    %v4622 = vpop.f32.mrf.mxu0
    %4623 = vdwg.mxu0
    %v4624 = vlaneseq
    %v4625 = vshrl.u32 %v4624, 7
    %v4626 = vadd.s32 %v4625, 8
    %v4627 = vlaneseq
    %v4628 = vand.u32 %v4627, 127
    %v4629 = vadd.s32 %v4628, 128
    %v4630 = vadd.s32 %v4628, 256
    %vm4631 = vcmp.lt.s32.totalorder %v4625, 8
    %vm4632 = vcmp.lt.s32.totalorder %v4626, 8
    %v4633 = vsel %vm4631, 1, 0
    %v4634 = vsel %vm4632, 1, 0
    %v4635 = vcvt.s32.f32 %v4633
    %v4636 = vcvt.s32.f32 %v4634
    %vm4637 = vcmp.lt.s32.totalorder %v4628, 256
    %vm4638 = vcmp.lt.s32.totalorder %v4629, 256
    %vm4639 = vcmp.lt.s32.totalorder %v4630, 256
    %v4640 = vsel %vm4637, 1, 0
    %v4641 = vsel %vm4638, 1, 0
    %v4642 = vsel %vm4639, 1, 0
    %v4643 = vcvt.s32.f32 %v4640
    %v4644 = vcvt.s32.f32 %v4641
    %v4645 = vcvt.s32.f32 %v4642
    %v4646 = vmul.f32 %v4635, %v4643
    %v4647 = vmul.f32 %v4635, %v4644
    %v4648 = vmul.f32 %v4635, %v4645
    %v4649 = vmul.f32 %v4636, %v4643
    %v4650 = vmul.f32 %v4636, %v4644
    %v4651 = vmul.f32 %v4636, %v4645
    %v4652 = vsub.f32 1.0, %v4635
    %v4653 = vsub.f32 1.0, %v4636
    %v4654 = vsub.f32 1.0, %v4643
    %v4655 = vsub.f32 1.0, %v4644
    %v4656 = vsub.f32 1.0, %v4645
    %v4657 = vmul.f32 %v4652, %v4654
    %v4658 = vmul.f32 %v4652, %v4655
    %v4659 = vmul.f32 %v4652, %v4656
    %v4660 = vmul.f32 %v4653, %v4654
    %v4661 = vmul.f32 %v4653, %v4655
    %v4662 = vmul.f32 %v4653, %v4656
    %v4663 = vadd.f32 %v4646, %v4657
    %v4664 = vadd.f32 %v4647, %v4658
    %v4665 = vadd.f32 %v4648, %v4659
    %v4666 = vadd.f32 %v4649, %v4660
    %v4667 = vadd.f32 %v4650, %v4661
    %v4668 = vadd.f32 %v4651, %v4662
    %v4669 = vmul.f32 %v4464, %v4663
    %v4670 = vmul.f32 %v4466, %v4664
    %v4671 = vmul.f32 %v4616, %v4665
    %v4672 = vmul.f32 %v4470, %v4666
    %v4673 = vmul.f32 %v4472, %v4667
    %v4674 = vmul.f32 %v4621, %v4668
    %v4675 = vmul.f32 %v4669, %v4669
    %v4676 = vmul.f32 %v4670, %v4670
    %v4677 = vmul.f32 %v4671, %v4671
    %v4678 = vmul.f32 %v4672, %v4672
    %v4679 = vmul.f32 %v4673, %v4673
    %v4680 = vmul.f32 %v4674, %v4674
    %v4681 = vadd.f32 %v4675, %v4676
    %v4682 = vadd.f32 %v4681, %v4677
    %4683 = vadd.xlane.f32.xlu0 %v4682
    %v4684 = vpop.xlane.xlu0 %4683
    %v4685 = vadd.f32 %v4678, %v4679
    %v4686 = vadd.f32 %v4685, %v4680
    %4687 = vadd.xlane.f32.xlu0 %v4686
    %v4688 = vpop.xlane.xlu0 %4687
    %v4689 = vmax.f32 %v4684, 1e-24
    %v4690 = vmax.f32 %v4688, 1e-24
    %v4691 = vrsqrt.pop %v4689
    %v4692 = vrsqrt.pop %v4690
    %v4693 = vmul.f32 %v4669, %v4691
    %v4694 = vmul.f32 %v4670, %v4691
    %v4695 = vmul.f32 %v4671, %v4691
    %v4696 = vmul.f32 %v4672, %v4692
    %v4697 = vmul.f32 %v4673, %v4692
    %v4698 = vmul.f32 %v4674, %v4692
    %4699 = vst [vmem:[%s9] sm:$0x3] %v4698
    %4700 = vmatprep.subr.mxu0 %v3655
    %4701 = vmatpush1.xpose.msra.mxu0 %v3654
    %4702 = vmatprep.subr.mxu0 %v3653
    %4703 = vmatpush1.xpose.msra.mxu0 %v3652
    %4704 = vmatprep.subr.mxu0 %v3651
    %4705 = vmatpush1.xpose.msra.mxu0 %v3650
    %4706 = vmatprep.subr.mxu0 %v3649
    %4707 = vmatpush1.xpose.msra.mxu0 %v3648
    %4708 = vmatprep.subr.mxu0 %v3647
    %4709 = vmatpush1.xpose.msra.mxu0 %v3646
    %4710 = vmatprep.subr.mxu0 %v3645
    %4711 = vmatpush1.xpose.msra.mxu0 %v3644
    %4712 = vmatprep.subr.mxu0 %v3643
    %4713 = vmatpush1.xpose.msra.mxu0 %v3642
    %4714 = vmatprep.subr.mxu0 %v3641
    %4715 = vmatpush1.xpose.msra.mxu0 %v3640
    %4716 = vmatprep.subr.mxu0 %v3639
    %4717 = vmatpush1.xpose.msra.mxu0 %v3638
    %4718 = vmatprep.subr.mxu0 %v3637
    %4719 = vmatpush1.xpose.msra.mxu0 %v3636
    %4720 = vmatprep.subr.mxu0 %v3635
    %4721 = vmatpush1.xpose.msra.mxu0 %v3634
    %4722 = vmatprep.subr.mxu0 %v3633
    %4723 = vmatpush1.xpose.msra.mxu0 %v3632
    %4724 = vmatprep.subr.mxu0 %v3631
    %4725 = vmatpush1.xpose.msra.mxu0 %v3630
    %4726 = vmatprep.subr.mxu0 %v3629
    %4727 = vmatpush1.xpose.msra.mxu0 %v3628
    %4728 = vmatprep.subr.mxu0 %v3627
    %4729 = vmatpush1.xpose.msra.mxu0 %v3626
    %4730 = vmatprep.subr.mxu0 %v3625
    %4731 = vmatpush1.xpose.msra.mxu0 %v3624
    %4732 = vmatprep.subr.mxu0 %v3687
    %4733 = vmatpush2.xpose.msra.mxu0 %v3686
    %4734 = vmatprep.subr.mxu0 %v3685
    %4735 = vmatpush2.xpose.msra.mxu0 %v3684
    %4736 = vmatprep.subr.mxu0 %v3683
    %4737 = vmatpush2.xpose.msra.mxu0 %v3682
    %4738 = vmatprep.subr.mxu0 %v3681
    %4739 = vmatpush2.xpose.msra.mxu0 %v3680
    %4740 = vmatprep.subr.mxu0 %v3679
    %4741 = vmatpush2.xpose.msra.mxu0 %v3678
    %4742 = vmatprep.subr.mxu0 %v3677
    %4743 = vmatpush2.xpose.msra.mxu0 %v3676
    %4744 = vmatprep.subr.mxu0 %v3675
    %4745 = vmatpush2.xpose.msra.mxu0 %v3674
    %4746 = vmatprep.subr.mxu0 %v3673
    %4747 = vmatpush2.xpose.msra.mxu0 %v3672
    %4748 = vmatprep.subr.mxu0 %v3671
    %4749 = vmatpush2.xpose.msra.mxu0 %v3670
    %4750 = vmatprep.subr.mxu0 %v3669
    %4751 = vmatpush2.xpose.msra.mxu0 %v3668
    %4752 = vmatprep.subr.mxu0 %v3667
    %4753 = vmatpush2.xpose.msra.mxu0 %v3666
    %4754 = vmatprep.subr.mxu0 %v3665
    %4755 = vmatpush2.xpose.msra.mxu0 %v3664
    %4756 = vmatprep.subr.mxu0 %v3663
    %4757 = vmatpush2.xpose.msra.mxu0 %v3662
    %4758 = vmatprep.subr.mxu0 %v3661
    %4759 = vmatpush2.xpose.msra.mxu0 %v3660
    %4760 = vmatprep.subr.mxu0 %v3659
    %4761 = vmatpush2.xpose.msra.mxu0 %v3658
    %4762 = vmatprep.subr.mxu0 %v3657
    %4763 = vmatpush2.xpose.msra.mxu0 %v3656
    %4764 = vmatprep.mubr.f32.mxu0 %v4694
    %4765 = vmatmul.mubr.f32.gmra.mxu0 %v4693
    %v4766 = vpop.f32.mrf.mxu0
    %v4767 = vadd.f32 0.0, %v4766
    %v4768 = vpop.f32.mrf.mxu0
    %v4769 = vadd.f32 0.0, %v4768
    %4770 = vmatprep.mubr.f32.mxu0 %v4697
    %4771 = vmatmul.mubr.f32.gmra.mxu0 %v4696
    %v4772 = vpop.f32.mrf.mxu0
    %v4773 = vadd.f32 0.0, %v4772
    %v4774 = vpop.f32.mrf.mxu0
    %v4775 = vadd.f32 0.0, %v4774
    %4776 = vdwg.mxu0
    %4777 = vmatprep.subr.mxu0 0.0
    %4778 = vmatpush1.xpose.msra.mxu0 %v3895
    %4779 = vmatprep.subr.mxu0 0.0
    %4780 = vmatpush1.xpose.msra.mxu0 %v3894
    %4781 = vmatprep.subr.mxu0 0.0
    %4782 = vmatpush1.xpose.msra.mxu0 %v3893
    %4783 = vmatprep.subr.mxu0 0.0
    %4784 = vmatpush1.xpose.msra.mxu0 %v3892
    %4785 = vmatprep.subr.mxu0 0.0
    %4786 = vmatpush1.xpose.msra.mxu0 %v3891
    %4787 = vmatprep.subr.mxu0 0.0
    %4788 = vmatpush1.xpose.msra.mxu0 %v3890
    %4789 = vmatprep.subr.mxu0 0.0
    %4790 = vmatpush1.xpose.msra.mxu0 %v3889
    %4791 = vmatprep.subr.mxu0 0.0
    %4792 = vmatpush1.xpose.msra.mxu0 %v3888
    %4793 = vmatprep.subr.mxu0 0.0
    %4794 = vmatpush1.xpose.msra.mxu0 %v3887
    %4795 = vmatprep.subr.mxu0 0.0
    %4796 = vmatpush1.xpose.msra.mxu0 %v3886
    %4797 = vmatprep.subr.mxu0 0.0
    %4798 = vmatpush1.xpose.msra.mxu0 %v3885
    %4799 = vmatprep.subr.mxu0 0.0
    %4800 = vmatpush1.xpose.msra.mxu0 %v3884
    %4801 = vmatprep.subr.mxu0 0.0
    %4802 = vmatpush1.xpose.msra.mxu0 %v3883
    %4803 = vmatprep.subr.mxu0 0.0
    %4804 = vmatpush1.xpose.msra.mxu0 %v3882
    %4805 = vmatprep.subr.mxu0 0.0
    %4806 = vmatpush1.xpose.msra.mxu0 %v3881
    %4807 = vmatprep.subr.mxu0 0.0
    %4808 = vmatpush1.xpose.msra.mxu0 %v3880
    %4809 = vmatprep.subr.mxu0 0.0
    %4810 = vmatpush2.xpose.msra.mxu0 %v3911
    %4811 = vmatprep.subr.mxu0 0.0
    %4812 = vmatpush2.xpose.msra.mxu0 %v3910
    %4813 = vmatprep.subr.mxu0 0.0
    %4814 = vmatpush2.xpose.msra.mxu0 %v3909
    %4815 = vmatprep.subr.mxu0 0.0
    %4816 = vmatpush2.xpose.msra.mxu0 %v3908
    %4817 = vmatprep.subr.mxu0 0.0
    %4818 = vmatpush2.xpose.msra.mxu0 %v3907
    %4819 = vmatprep.subr.mxu0 0.0
    %4820 = vmatpush2.xpose.msra.mxu0 %v3906
    %4821 = vmatprep.subr.mxu0 0.0
    %4822 = vmatpush2.xpose.msra.mxu0 %v3905
    %4823 = vmatprep.subr.mxu0 0.0
    %4824 = vmatpush2.xpose.msra.mxu0 %v3904
    %4825 = vmatprep.subr.mxu0 0.0
    %4826 = vmatpush2.xpose.msra.mxu0 %v3903
    %4827 = vmatprep.subr.mxu0 0.0
    %4828 = vmatpush2.xpose.msra.mxu0 %v3902
    %4829 = vmatprep.subr.mxu0 0.0
    %4830 = vmatpush2.xpose.msra.mxu0 %v3901
    %4831 = vmatprep.subr.mxu0 0.0
    %4832 = vmatpush2.xpose.msra.mxu0 %v3900
    %4833 = vmatprep.subr.mxu0 0.0
    %4834 = vmatpush2.xpose.msra.mxu0 %v3899
    %4835 = vmatprep.subr.mxu0 0.0
    %4836 = vmatpush2.xpose.msra.mxu0 %v3898
    %4837 = vmatprep.subr.mxu0 0.0
    %4838 = vmatpush2.xpose.msra.mxu0 %v3897
    %4839 = vmatprep.subr.mxu0 0.0
    %4840 = vmatpush2.xpose.msra.mxu0 %v3896
    %4841 = vmatprep.mubr.f32.mxu0 0.0
    %4842 = vmatmul.mubr.f32.gmra.mxu0 %v4695
    %v4843 = vpop.f32.mrf.mxu0
    %v4844 = vadd.f32 %v4767, %v4843
    %v4845 = vpop.f32.mrf.mxu0
    %v4846 = vadd.f32 %v4769, %v4845
    %4847 = vmatprep.mubr.f32.mxu0 0.0
    %4848 = vmatmul.mubr.f32.gmra.mxu0 %v4698
    %v4849 = vpop.f32.mrf.mxu0
    %v4850 = vadd.f32 %v4773, %v4849
    %v4851 = vpop.f32.mrf.mxu0
    %v4852 = vadd.f32 %v4775, %v4851
    %4853 = vdwg.mxu0
    %4854 = vmatprep.subr.mxu0 %v3719
    %4855 = vmatpush1.xpose.msra.mxu0 %v3718
    %4856 = vmatprep.subr.mxu0 %v3717
    %4857 = vmatpush1.xpose.msra.mxu0 %v3716
    %4858 = vmatprep.subr.mxu0 %v3715
    %4859 = vmatpush1.xpose.msra.mxu0 %v3714
    %4860 = vmatprep.subr.mxu0 %v3713
    %4861 = vmatpush1.xpose.msra.mxu0 %v3712
    %4862 = vmatprep.subr.mxu0 %v3711
    %4863 = vmatpush1.xpose.msra.mxu0 %v3710
    %4864 = vmatprep.subr.mxu0 %v3709
    %4865 = vmatpush1.xpose.msra.mxu0 %v3708
    %4866 = vmatprep.subr.mxu0 %v3707
    %4867 = vmatpush1.xpose.msra.mxu0 %v3706
    %4868 = vmatprep.subr.mxu0 %v3705
    %4869 = vmatpush1.xpose.msra.mxu0 %v3704
    %4870 = vmatprep.subr.mxu0 %v3703
    %4871 = vmatpush1.xpose.msra.mxu0 %v3702
    %4872 = vmatprep.subr.mxu0 %v3701
    %4873 = vmatpush1.xpose.msra.mxu0 %v3700
    %4874 = vmatprep.subr.mxu0 %v3699
    %4875 = vmatpush1.xpose.msra.mxu0 %v3698
    %4876 = vmatprep.subr.mxu0 %v3697
    %4877 = vmatpush1.xpose.msra.mxu0 %v3696
    %4878 = vmatprep.subr.mxu0 %v3695
    %4879 = vmatpush1.xpose.msra.mxu0 %v3694
    %4880 = vmatprep.subr.mxu0 %v3693
    %4881 = vmatpush1.xpose.msra.mxu0 %v3692
    %4882 = vmatprep.subr.mxu0 %v3691
    %4883 = vmatpush1.xpose.msra.mxu0 %v3690
    %4884 = vmatprep.subr.mxu0 %v3689
    %4885 = vmatpush1.xpose.msra.mxu0 %v3688
    %4886 = vmatprep.subr.mxu0 %v3751
    %4887 = vmatpush2.xpose.msra.mxu0 %v3750
    %4888 = vmatprep.subr.mxu0 %v3749
    %4889 = vmatpush2.xpose.msra.mxu0 %v3748
    %4890 = vmatprep.subr.mxu0 %v3747
    %4891 = vmatpush2.xpose.msra.mxu0 %v3746
    %4892 = vmatprep.subr.mxu0 %v3745
    %4893 = vmatpush2.xpose.msra.mxu0 %v3744
    %4894 = vmatprep.subr.mxu0 %v3743
    %4895 = vmatpush2.xpose.msra.mxu0 %v3742
    %4896 = vmatprep.subr.mxu0 %v3741
    %4897 = vmatpush2.xpose.msra.mxu0 %v3740
    %4898 = vmatprep.subr.mxu0 %v3739
    %4899 = vmatpush2.xpose.msra.mxu0 %v3738
    %4900 = vmatprep.subr.mxu0 %v3737
    %4901 = vmatpush2.xpose.msra.mxu0 %v3736
    %4902 = vmatprep.subr.mxu0 %v3735
    %4903 = vmatpush2.xpose.msra.mxu0 %v3734
    %4904 = vmatprep.subr.mxu0 %v3733
    %4905 = vmatpush2.xpose.msra.mxu0 %v3732
    %4906 = vmatprep.subr.mxu0 %v3731
    %4907 = vmatpush2.xpose.msra.mxu0 %v3730
    %4908 = vmatprep.subr.mxu0 %v3729
    %4909 = vmatpush2.xpose.msra.mxu0 %v3728
    %4910 = vmatprep.subr.mxu0 %v3727
    %4911 = vmatpush2.xpose.msra.mxu0 %v3726
    %4912 = vmatprep.subr.mxu0 %v3725
    %4913 = vmatpush2.xpose.msra.mxu0 %v3724
    %4914 = vmatprep.subr.mxu0 %v3723
    %4915 = vmatpush2.xpose.msra.mxu0 %v3722
    %4916 = vmatprep.subr.mxu0 %v3721
    %4917 = vmatpush2.xpose.msra.mxu0 %v3720
    %4918 = vmatprep.mubr.f32.mxu0 %v4694
    %4919 = vmatmul.mubr.f32.gmra.mxu0 %v4693
    %v4920 = vpop.f32.mrf.mxu0
    %v4921 = vadd.f32 0.0, %v4920
    %v4922 = vpop.f32.mrf.mxu0
    %v4923 = vadd.f32 0.0, %v4922
    %4924 = vmatprep.mubr.f32.mxu0 %v4697
    %4925 = vmatmul.mubr.f32.gmra.mxu0 %v4696
    %v4926 = vpop.f32.mrf.mxu0
    %v4927 = vadd.f32 0.0, %v4926
    %v4928 = vpop.f32.mrf.mxu0
    %v4929 = vadd.f32 0.0, %v4928
    %4930 = vdwg.mxu0
    %4931 = vmatprep.subr.mxu0 0.0
    %4932 = vmatpush1.xpose.msra.mxu0 %v3927
    %4933 = vmatprep.subr.mxu0 0.0
    %4934 = vmatpush1.xpose.msra.mxu0 %v3926
    %4935 = vmatprep.subr.mxu0 0.0
    %4936 = vmatpush1.xpose.msra.mxu0 %v3925
    %4937 = vmatprep.subr.mxu0 0.0
    %4938 = vmatpush1.xpose.msra.mxu0 %v3924
    %4939 = vmatprep.subr.mxu0 0.0
    %4940 = vmatpush1.xpose.msra.mxu0 %v3923
    %4941 = vmatprep.subr.mxu0 0.0
    %4942 = vmatpush1.xpose.msra.mxu0 %v3922
    %4943 = vmatprep.subr.mxu0 0.0
    %4944 = vmatpush1.xpose.msra.mxu0 %v3921
    %4945 = vmatprep.subr.mxu0 0.0
    %4946 = vmatpush1.xpose.msra.mxu0 %v3920
    %4947 = vmatprep.subr.mxu0 0.0
    %4948 = vmatpush1.xpose.msra.mxu0 %v3919
    %4949 = vmatprep.subr.mxu0 0.0
    %4950 = vmatpush1.xpose.msra.mxu0 %v3918
    %4951 = vmatprep.subr.mxu0 0.0
    %4952 = vmatpush1.xpose.msra.mxu0 %v3917
    %4953 = vmatprep.subr.mxu0 0.0
    %4954 = vmatpush1.xpose.msra.mxu0 %v3916
    %4955 = vmatprep.subr.mxu0 0.0
    %4956 = vmatpush1.xpose.msra.mxu0 %v3915
    %4957 = vmatprep.subr.mxu0 0.0
    %4958 = vmatpush1.xpose.msra.mxu0 %v3914
    %4959 = vmatprep.subr.mxu0 0.0
    %4960 = vmatpush1.xpose.msra.mxu0 %v3913
    %4961 = vmatprep.subr.mxu0 0.0
    %4962 = vmatpush1.xpose.msra.mxu0 %v3912
    %4963 = vmatprep.subr.mxu0 0.0
    %4964 = vmatpush2.xpose.msra.mxu0 %v3943
    %4965 = vmatprep.subr.mxu0 0.0
    %4966 = vmatpush2.xpose.msra.mxu0 %v3942
    %4967 = vmatprep.subr.mxu0 0.0
    %4968 = vmatpush2.xpose.msra.mxu0 %v3941
    %4969 = vmatprep.subr.mxu0 0.0
    %4970 = vmatpush2.xpose.msra.mxu0 %v3940
    %4971 = vmatprep.subr.mxu0 0.0
    %4972 = vmatpush2.xpose.msra.mxu0 %v3939
    %4973 = vmatprep.subr.mxu0 0.0
    %4974 = vmatpush2.xpose.msra.mxu0 %v3938
    %4975 = vmatprep.subr.mxu0 0.0
    %4976 = vmatpush2.xpose.msra.mxu0 %v3937
    %4977 = vmatprep.subr.mxu0 0.0
    %4978 = vmatpush2.xpose.msra.mxu0 %v3936
    %4979 = vmatprep.subr.mxu0 0.0
    %4980 = vmatpush2.xpose.msra.mxu0 %v3935
    %4981 = vmatprep.subr.mxu0 0.0
    %4982 = vmatpush2.xpose.msra.mxu0 %v3934
    %4983 = vmatprep.subr.mxu0 0.0
    %4984 = vmatpush2.xpose.msra.mxu0 %v3933
    %4985 = vmatprep.subr.mxu0 0.0
    %4986 = vmatpush2.xpose.msra.mxu0 %v3932
    %4987 = vmatprep.subr.mxu0 0.0
    %4988 = vmatpush2.xpose.msra.mxu0 %v3931
    %4989 = vmatprep.subr.mxu0 0.0
    %4990 = vmatpush2.xpose.msra.mxu0 %v3930
    %4991 = vmatprep.subr.mxu0 0.0
    %4992 = vmatpush2.xpose.msra.mxu0 %v3929
    %4993 = vmatprep.subr.mxu0 0.0
    %4994 = vmatpush2.xpose.msra.mxu0 %v3928
    %4995 = vmatprep.mubr.f32.mxu0 0.0
    %4996 = vmatmul.mubr.f32.gmra.mxu0 %v4695
    %v4997 = vpop.f32.mrf.mxu0
    %v4998 = vadd.f32 %v4921, %v4997
    %v4999 = vpop.f32.mrf.mxu0
    %v5000 = vadd.f32 %v4923, %v4999
    %5001 = vmatprep.mubr.f32.mxu0 0.0
    %5002 = vmatmul.mubr.f32.gmra.mxu0 %v4698
    %v5003 = vpop.f32.mrf.mxu0
    %v5004 = vadd.f32 %v4927, %v5003
    %v5005 = vpop.f32.mrf.mxu0
    %v5006 = vadd.f32 %v4929, %v5005
    %5007 = vdwg.mxu0
    %v5008 = vmul.f32 %v4844, 2.0
    %v5009 = vmul.f32 %v4846, 2.0
    %v5010 = vmul.f32 %v4998, 2.0
    %v5011 = vmul.f32 %v5000, 2.0
    %v5012 = vmul.f32 %v4850, 2.0
    %v5013 = vmul.f32 %v4852, 2.0
    %v5014 = vmul.f32 %v5004, 2.0
    %v5015 = vmul.f32 %v5006, 2.0
    %v5016 = vsub.f32 2.0, %v5008
    %v5017 = vsub.f32 2.0, %v5009
    %v5018 = vsub.f32 2.0, %v5010
    %v5019 = vsub.f32 2.0, %v5011
    %v5020 = vsub.f32 2.0, %v5012
    %v5021 = vsub.f32 2.0, %v5013
    %v5022 = vsub.f32 2.0, %v5014
    %v5023 = vsub.f32 2.0, %v5015
    %v5024 = vmax.f32 %v5016, 1e-12
    %v5025 = vmax.f32 %v5017, 1e-12
    %v5026 = vmax.f32 %v5018, 1e-12
    %v5027 = vmax.f32 %v5019, 1e-12
    %v5028 = vmax.f32 %v5020, 1e-12
    %v5029 = vmax.f32 %v5021, 1e-12
    %v5030 = vmax.f32 %v5022, 1e-12
    %v5031 = vmax.f32 %v5023, 1e-12
    %v5032 = vld [vmem:[%s6] sm:$0xff]
    %v5034 = vcombine.high %v5032, %v5032
    %v5036 = vunpack.c.l.s4 1983009808
    %v5037 = vunpack.c.0.s8 %v5036
    %v5038 = vlaneseq
    %v5039 = vshrl.u32 %v5038, 7
    %v5040 = vsub.s32 %v5037, %v5039
    %v5041 = vrot.slane %v5032, %v5040
    %v5043 = vunpack.c.l.s4 1983009808
    %v5044 = vunpack.c.0.s8 %v5043
    %v5045 = vlaneseq
    %v5046 = vshrl.u32 %v5045, 7
    %v5047 = vsub.s32 %v5044, %v5046
    %v5048 = vrot.slane %v5034, %v5047
    %v5049 = vcombine.high %v5041, %v5041
    %v5050 = vcombine.high %v5048, %v5048
    %v5055 = vmul.f32 %v5024, %v5041
    %v5056 = vmul.f32 %v5025, %v5049
    %v5057 = vmul.f32 %v5026, %v5048
    %v5058 = vmul.f32 %v5027, %v5050
    %v5059 = vmul.f32 %v5055, 0.01
    %v5060 = vmul.f32 %v5056, 0.01
    %v5061 = vmul.f32 %v5057, 0.01
    %v5062 = vmul.f32 %v5058, 0.01
    %v5063 = vadd.f32 %v5059, 1.0
    %v5064 = vadd.f32 %v5060, 1.0
    %v5065 = vadd.f32 %v5061, 1.0
    %v5066 = vadd.f32 %v5062, 1.0
    %v5067 = vlog2.pop %v5063
    %v5068 = vmul.f32 %v5067, 0.6931472
    %v5069 = vlog2.pop %v5064
    %v5070 = vmul.f32 %v5069, 0.6931472
    %v5071 = vlog2.pop %v5065
    %v5072 = vmul.f32 %v5071, 0.6931472
    %v5073 = vlog2.pop %v5066
    %v5074 = vmul.f32 %v5073, 0.6931472
    %v5075 = vmul.f32 %v5068, -101.0
    %v5076 = vmul.f32 %v5070, -101.0
    %v5077 = vmul.f32 %v5072, -101.0
    %v5078 = vmul.f32 %v5074, -101.0
    %v5079 = vmul.f32 %v5075, 1.442695
    %v5080 = vpow.pop %v5079
    %v5081 = vmul.f32 %v5076, 1.442695
    %v5082 = vpow.pop %v5081
    %v5083 = vmul.f32 %v5077, 1.442695
    %v5084 = vpow.pop %v5083
    %v5085 = vmul.f32 %v5078, 1.442695
    %v5086 = vpow.pop %v5085
    %v5087 = vmul.f32 %v5080, 0.99450815
    %v5088 = vmul.f32 %v5082, 0.99450815
    %v5089 = vmul.f32 %v5084, 0.99450815
    %v5090 = vmul.f32 %v5086, 0.99450815
    %v5095 = vcombine.low %v5087, %v5088
    %v5096 = vcombine.low %v5089, %v5090
    %v5098 = vunpack.c.l.s4 1983009808
    %v5099 = vunpack.c.0.s8 %v5098
    %v5100 = vlaneseq
    %v5101 = vshrl.u32 %v5100, 7
    %v5102 = vsub.s32 %v5099, %v5101
    %v5103 = vrot.slane %v5095, %v5102
    %v5105 = vunpack.c.l.s4 1983009808
    %v5106 = vunpack.c.0.s8 %v5105
    %v5107 = vlaneseq
    %v5108 = vshrl.u32 %v5107, 7
    %v5109 = vsub.s32 %v5106, %v5108
    %v5110 = vrot.slane %v5096, %v5109
    %v5111 = vcombine.low %v5103, %v5110
    %5113 = vst [vmem:[%s8] sm:$0xff] %v5111
    %v5114 = vadd.f32 %v5028, 1.0
    %v5115 = vadd.f32 %v5029, 1.0
    %v5116 = vadd.f32 %v5030, 1.0
    %v5117 = vadd.f32 %v5031, 1.0
    %v5118 = vrcp.pop %v5114
    %v5119 = vrcp.pop %v5115
    %v5120 = vrcp.pop %v5116
    %v5121 = vrcp.pop %v5117
    %v5122 = vmul.f32 %v5118, %v5118
    %v5123 = vmul.f32 %v5119, %v5119
    %v5124 = vmul.f32 %v5120, %v5120
    %v5125 = vmul.f32 %v5121, %v5121
    %v5126 = vmul.f32 %v5122, 0.63629705
    %v5127 = vmul.f32 %v5123, 0.63629705
    %v5128 = vmul.f32 %v5124, 0.63629705
    %v5129 = vmul.f32 %v5125, 0.63629705
    %v5134 = vcombine.low %v5126, %v5127
    %v5135 = vcombine.low %v5128, %v5129
    %v5137 = vunpack.c.l.s4 1983009808
    %v5138 = vunpack.c.0.s8 %v5137
    %v5139 = vlaneseq
    %v5140 = vshrl.u32 %v5139, 7
    %v5141 = vsub.s32 %v5138, %v5140
    %v5142 = vrot.slane %v5134, %v5141
    %v5144 = vunpack.c.l.s4 1983009808
    %v5145 = vunpack.c.0.s8 %v5144
    %v5146 = vlaneseq
    %v5147 = vshrl.u32 %v5146, 7
    %v5148 = vsub.s32 %v5145, %v5147
    %v5149 = vrot.slane %v5135, %v5148
    %v5150 = vcombine.low %v5142, %v5149
    %5152 = vst [vmem:[%s7] sm:$0xff] %v5150
    // Predicated region
    $region30: #{contrastive_forward.1} parent=1 // pred_check
      _
    $region31: #{contrastive_forward.1} parent=1 // pred_check_branch
      %5154 = sbr.rel (0) target = $region33
    $region32: #{contrastive_forward.1} parent=1 // pred_region
      _
    $region33: #{contrastive_forward.1} parent=1 // pred_fallthru
      _
    // Predicated region
    $region34: #{contrastive_forward.1} parent=1 // pred_check
      _
    $region35: #{contrastive_forward.1} parent=1 // pred_check_branch
      %5156 = sbr.rel (0) target = $region37
    $region36: #{contrastive_forward.1} parent=1 // pred_region
      _
    $region37: #{contrastive_forward.1} parent=1 // pred_fallthru
      _
    // Predicated region
    $region38: #{contrastive_forward.1} parent=1 // pred_check
      _
    $region39: #{contrastive_forward.1} parent=1 // pred_check_branch
      %5158 = sbr.rel (0) target = $region41
    $region40: #{contrastive_forward.1} parent=1 // pred_region
      _
    $region41: #{contrastive_forward.1} parent=1 // pred_fallthru
      _
    // Predicated region
    $region42: #{contrastive_forward.1} parent=1 // pred_check
      _
    $region43: #{contrastive_forward.1} parent=1 // pred_check_branch
      %5160 = sbr.rel (0) target = $region45
    $region44: #{contrastive_forward.1} parent=1 // pred_region
      %s5162 = ssub.s32 16, 16
      %5163 = vsyncadd [#allocation3], %s5162
      %5166 = dma.smem_to_hbm [#allocation2], 16, %s10, [#allocation3]
    $region45: #{contrastive_forward.1} parent=1 // pred_fallthru
      _
    // Predicated region
    $region46: #{contrastive_forward.1} parent=1 // pred_check
      _
    $region47: #{contrastive_forward.1} parent=1 // pred_check_branch
      %5168 = sbr.rel (0) target = $region49
    $region48: #{contrastive_forward.1} parent=1 // pred_region
      _
    $region49: #{contrastive_forward.1} parent=1 // pred_fallthru
      _
    // Predicated region
    $region50: #{contrastive_forward.1} parent=1 // pred_check
      _
    $region51: #{contrastive_forward.1} parent=1 // pred_check_branch
      %5170 = sbr.rel (0) target = $region53
    $region52: #{contrastive_forward.1} parent=1 // pred_region
      _
    $region53: #{contrastive_forward.1} parent=1 // pred_fallthru
      _
    // Predicated region
    $region54: #{contrastive_forward.1} parent=1 // pred_check
      _
    $region55: #{contrastive_forward.1} parent=1 // pred_check_branch
      %5172 = sbr.rel (0) target = $region57
    $region56: #{contrastive_forward.1} parent=1 // pred_region
      _
    $region57: #{contrastive_forward.1} parent=1 // pred_fallthru
      _
    // Predicated region
    $region58: #{contrastive_forward.1} parent=1 // pred_check
      _
    $region59: #{contrastive_forward.1} parent=1 // pred_check_branch
      %5174 = sbr.rel (0) target = $region61
    $region60: #{contrastive_forward.1} parent=1 // pred_region
      %5175 = dma.done [#allocation3], 16
    $region61: #{contrastive_forward.1} parent=1 // pred_fallthru
      _
    %5176 = sfence
    %5177 = vsyncpa [#allocation3], 1

</llo_original>
